<compile_context>
chip_gen: v6e
topology: v6e:2x2x1
jax: 0.10.0
libtpu: 0.0.40
codegen_flags: <defaults>
</compile_context>

<pallas_src>
import jax
import jax.numpy as jnp
from jax.experimental import pallas as pl
from jax.experimental.pallas import tpu as pltpu

IN_FEATURES = 768
OUT_FEATURES = 768
DROP_P = 0.1
KEEP_SCALE = 1.0 / (1.0 - DROP_P)
# drop iff hash < round(p * 2^32)  ->  P(keep) = 1 - p
DROP_THRESHOLD = int(round(DROP_P * (1 << 32)))  # 429496730

TILE_N = 384  # N-axis tile: grid=(2,), lane-dense (3 x 128) output stores


def _linear_dropout_kernel(seed_ref, x_ref, wt_ref, b_ref, o_ref):
    # ---- Linear: y[m, n] = sum_k x[m, k] * Wt[k, n] + b[n] ----
    # x_ref: (M, IN) f32, constant index_map -> DMA'd once, resident.
    # wt_ref: (IN, TILE_N) bf16, pre-transposed (in, out) layout -> plain
    # ((1,),(0,)) contraction, no per-step XLU transpose of the weight.
    x_bf16 = x_ref[...].astype(jnp.bfloat16)
    y = jnp.dot(x_bf16, wt_ref[...], preferred_element_type=jnp.float32)
    y = y + b_ref[...]  # b_ref is (1, TILE_N) f32 -> broadcasts over rows

    # ---- Dropout (training semantics), deterministic per (seed, element) ----
    m, n = y.shape
    row = jax.lax.broadcasted_iota(jnp.uint32, (m, n), 0)
    col = jax.lax.broadcasted_iota(jnp.uint32, (m, n), 1)
    col0 = (pl.program_id(0) * TILE_N).astype(jnp.uint32)
    # global index = row * 768 + global_col;  768*r == (r<<9) + (r<<8)
    gidx = (row << 9) + (row << 8) + (col + col0)

    seed_mix = seed_ref[0].astype(jnp.uint32) * jnp.uint32(0x9E3779B9)

    # lowbias32 integer hash -> well-mixed 32-bit stream per element.
    h = gidx ^ seed_mix
    h = h ^ (h >> 16)
    h = h * jnp.uint32(0x7FEB352D)
    h = h ^ (h >> 15)
    h = h * jnp.uint32(0x846CA68B)
    h = h ^ (h >> 16)

    keep = h >= jnp.uint32(DROP_THRESHOLD)  # single integer compare
    o_ref[...] = jnp.where(keep, y * jnp.float32(KEEP_SCALE),
                           jnp.float32(0.0)).astype(o_ref.dtype)


def prepare_params(weight, bias):
    """One-time parameter preparation (cache the results outside the hot path).

    weight: [OUT, IN] f32 (PyTorch layout) -> [IN, OUT] bf16
    bias:   [OUT]     f32                  -> [1, OUT]  f32
    """
    wt_bf16 = jnp.asarray(weight.T, dtype=jnp.bfloat16)
    bias2d = jnp.asarray(bias, dtype=jnp.float32).reshape(1, OUT_FEATURES)
    return wt_bf16, bias2d


@jax.jit
def linear_dropout(x, wt_bf16, bias2d, seed):
    """x: [B, S, IN] f32, wt_bf16: [IN, OUT] bf16, bias2d: [1, OUT] f32."""
    B, S, _ = x.shape
    M = B * S
    assert OUT_FEATURES % TILE_N == 0

    x2d = x.reshape(M, IN_FEATURES)
    seed_arr = jnp.asarray(seed, dtype=jnp.int32).reshape(1)

    grid = (OUT_FEATURES // TILE_N,)

    bytes_accessed = (
        4 * M * IN_FEATURES                # x (f32, resident -> read once)
        + 2 * IN_FEATURES * OUT_FEATURES   # weight (bf16, read once)
        + 4 * OUT_FEATURES                 # bias (f32)
        + 4 * M * OUT_FEATURES             # out (f32)
    )

    out2d = pl.pallas_call(
        _linear_dropout_kernel,
        out_shape=jax.ShapeDtypeStruct((M, OUT_FEATURES), x.dtype),
        grid_spec=pltpu.PrefetchScalarGridSpec(
            num_scalar_prefetch=1,
            grid=grid,
            in_specs=[
                # x resident across all N-tiles (constant block index)
                pl.BlockSpec((M, IN_FEATURES), lambda j, seed: (0, 0)),
                # weight marches over output columns -> never replicated
                pl.BlockSpec((IN_FEATURES, TILE_N), lambda j, seed: (0, j)),
                # matching bias slice
                pl.BlockSpec((1, TILE_N), lambda j, seed: (0, j)),
            ],
            out_specs=pl.BlockSpec((M, TILE_N), lambda j, seed: (0, j)),
        ),
        compiler_params=pltpu.CompilerParams(
            # Disjoint output tiles; mask depends only on (seed, global index),
            # so the N-split is safe to shard across v7x's two TensorCores.
            dimension_semantics=("parallel",),
        ),
        cost_estimate=pl.CostEstimate(
            flops=2 * M * IN_FEATURES * OUT_FEATURES,
            transcendentals=0,
            bytes_accessed=bytes_accessed,
        ),
    )(seed_arr, x2d, wt_bf16, bias2d)

    return out2d.reshape(B, S, OUT_FEATURES)


if __name__ == "__main__":
    key = jax.random.PRNGKey(0)
    k_x, k_w, k_b = jax.random.split(key, 3)

    # Input consistent with the module's forward: [1, 384, 768]
    B, S = 1, 384
    x = jax.random.normal(k_x, (B, S, IN_FEATURES), dtype=jnp.float32)

    # Deterministic parameter init (PyTorch Linear default: U(-1/sqrt(in), 1/sqrt(in)))
    bound = 1.0 / (IN_FEATURES ** 0.5)
    weight = jax.random.uniform(
        k_w, (OUT_FEATURES, IN_FEATURES), minval=-bound, maxval=bound, dtype=jnp.float32
    )
    bias = jax.random.uniform(
        k_b, (OUT_FEATURES,), minval=-bound, maxval=bound, dtype=jnp.float32
    )

    wt_bf16, bias2d = prepare_params(weight, bias)

    out = linear_dropout(x, wt_bf16, bias2d, 1234)
    out = jax.block_until_ready(out)

    assert out.shape == (B, S, OUT_FEATURES)
    assert out.dtype == jnp.float32
    assert bool(jnp.all(jnp.isfinite(out)))

    # Sanity: dropout rate ~ 0.1 and surviving elements match the linear output
    # (bf16 matmul -> loose tolerance).
    zero_frac = float(jnp.mean(out == 0.0))
    assert abs(zero_frac - DROP_P) < 0.05, f"unexpected drop rate {zero_frac}"

    ref = (jnp.einsum("bsi,oi->bso", x, weight) + bias) * KEEP_SCALE
    kept = out != 0.0
    max_err = float(jnp.max(jnp.abs(jnp.where(kept, out - ref, 0.0))))
    assert max_err < 0.1, f"kept-element mismatch {max_err}"

    print("KERNEL_OK")
</pallas_src>

<mosaic_0001>
module attributes {stable_mosaic.version = 11 : i64} {
  func.func @_linear_dropout_kernel(%arg0: i32, %arg1: memref<1xi32, #tpu.memory_space<smem>>, %arg2: memref<384x768xf32, #tpu.memory_space<vmem>>, %arg3: memref<768x384xbf16, #tpu.memory_space<vmem>>, %arg4: memref<1x384xf32, #tpu.memory_space<vmem>>, %arg5: memref<384x384xf32, #tpu.memory_space<vmem>>) attributes {dimension_semantics = [#tpu.dimension_semantics<parallel>], iteration_bounds = array<i64: 2>, scalar_prefetch = 1 : i64, scratch_operands = 0 : i64, tpu.core_type = #tpu.core_type<tc>, window_params = [{pipeline_mode = #tpu.pipeline_mode<synchronous>, transform_indices = @transform_0, window_bounds = array<i64: 384, 768>}, {transform_indices = @transform_1, window_bounds = array<i64: 768, 384>}, {transform_indices = @transform_2, window_bounds = array<i64: 1, 384>}, {transform_indices = @transform_3, window_bounds = array<i64: 384, 384>}]} {
    %c0 = arith.constant 0 : index
    %c0_0 = arith.constant 0 : index
    %0 = vector.load %arg2[%c0, %c0_0] : memref<384x768xf32, #tpu.memory_space<vmem>>, vector<384x768xf32>
    %1 = arith.truncf %0 : vector<384x768xf32> to vector<384x768xbf16>
    %c0_1 = arith.constant 0 : index
    %c0_2 = arith.constant 0 : index
    %2 = vector.load %arg3[%c0_1, %c0_2] : memref<768x384xbf16, #tpu.memory_space<vmem>>, vector<768x384xbf16>
    %cst = arith.constant dense<0.000000e+00> : vector<384x384xf32>
    %3 = tpu.matmul %1, %2, %cst {dimension_numbers = #tpu.dot_dimension_numbers<[1], [0], [0], [1], [0, 0, 1, 1], [], []>} : vector<384x768xbf16>, vector<768x384xbf16>, vector<384x384xf32> -> vector<384x384xf32>
    %c0_3 = arith.constant 0 : index
    %c0_4 = arith.constant 0 : index
    %4 = vector.load %arg4[%c0_3, %c0_4] : memref<1x384xf32, #tpu.memory_space<vmem>>, vector<1x384xf32>
    %5 = vector.broadcast %4 : vector<1x384xf32> to vector<384x384xf32>
    %6 = arith.addf %3, %5 : vector<384x384xf32>
    %7 = tpu.iota {dimensions = array<i32: 0>} : vector<384x384xi32>
    %8 = tpu.iota {dimensions = array<i32: 1>} : vector<384x384xi32>
    %c384_i32 = arith.constant 384 : i32
    %9 = arith.muli %arg0, %c384_i32 : i32
    %c9_i32 = arith.constant 9 : i32
    %10 = vector.broadcast %c9_i32 : i32 to vector<384x384xi32>
    %11 = arith.shli %7, %10 : vector<384x384xi32>
    %c8_i32 = arith.constant 8 : i32
    %12 = vector.broadcast %c8_i32 : i32 to vector<384x384xi32>
    %13 = arith.shli %7, %12 : vector<384x384xi32>
    %14 = arith.addi %11, %13 : vector<384x384xi32>
    %15 = vector.broadcast %9 : i32 to vector<384x384xi32>
    %16 = arith.addi %8, %15 : vector<384x384xi32>
    %17 = arith.addi %14, %16 : vector<384x384xi32>
    %c0_5 = arith.constant 0 : index
    %18 = memref.load %arg1[%c0_5] : memref<1xi32, #tpu.memory_space<smem>>
    %c-1640531527_i32 = arith.constant -1640531527 : i32
    %19 = arith.muli %18, %c-1640531527_i32 : i32
    %20 = vector.broadcast %19 : i32 to vector<384x384xi32>
    %21 = arith.xori %17, %20 : vector<384x384xi32>
    %c16_i32 = arith.constant 16 : i32
    %22 = vector.broadcast %c16_i32 : i32 to vector<384x384xi32>
    %23 = arith.shrui %21, %22 : vector<384x384xi32>
    %24 = arith.xori %21, %23 : vector<384x384xi32>
    %c2146121005_i32 = arith.constant 2146121005 : i32
    %25 = vector.broadcast %c2146121005_i32 : i32 to vector<384x384xi32>
    %26 = arith.muli %24, %25 : vector<384x384xi32>
    %c15_i32 = arith.constant 15 : i32
    %27 = vector.broadcast %c15_i32 : i32 to vector<384x384xi32>
    %28 = arith.shrui %26, %27 : vector<384x384xi32>
    %29 = arith.xori %26, %28 : vector<384x384xi32>
    %c-2073254261_i32 = arith.constant -2073254261 : i32
    %30 = vector.broadcast %c-2073254261_i32 : i32 to vector<384x384xi32>
    %31 = arith.muli %29, %30 : vector<384x384xi32>
    %c16_i32_6 = arith.constant 16 : i32
    %32 = vector.broadcast %c16_i32_6 : i32 to vector<384x384xi32>
    %33 = arith.shrui %31, %32 : vector<384x384xi32>
    %34 = arith.xori %31, %33 : vector<384x384xi32>
    %c429496730_i32 = arith.constant 429496730 : i32
    %35 = vector.broadcast %c429496730_i32 : i32 to vector<384x384xi32>
    %36 = arith.cmpi uge, %34, %35 : vector<384x384xi32>
    %cst_7 = arith.constant 1.11111116 : f32
    %37 = vector.broadcast %cst_7 : f32 to vector<384x384xf32>
    %38 = arith.mulf %6, %37 : vector<384x384xf32>
    %cst_8 = arith.constant 0.000000e+00 : f32
    %39 = vector.broadcast %cst_8 : f32 to vector<384x384xf32>
    %40 = arith.select %36, %38, %39 : vector<384x384xi1>, vector<384x384xf32>
    %c0_9 = arith.constant 0 : index
    %c0_10 = arith.constant 0 : index
    %41 = vector.load %arg5[%c0_9, %c0_10] : memref<384x384xf32, #tpu.memory_space<vmem>>, vector<384x384xf32>
    tpu.vector_store %arg5[%c0_9, %c0_10], %40 {strides = array<i32>} : memref<384x384xf32, #tpu.memory_space<vmem>>, vector<384x384xf32>,
    return
  }
  func.func @transform_0(%arg0: i32, %arg1: memref<1xi32, #tpu.memory_space<smem>>) -> (i32, i32) {
    %c0_i32 = arith.constant 0 : i32
    %c0_i32_0 = arith.constant 0 : i32
    %c0_i32_1 = arith.constant 0 : i32
    return %c0_i32, %c0_i32_0 : i32, i32
  }
  func.func @transform_1(%arg0: i32, %arg1: memref<1xi32, #tpu.memory_space<smem>>) -> (i32, i32) {
    %c0_i32 = arith.constant 0 : i32
    %c0_i32_0 = arith.constant 0 : i32
    return %c0_i32, %arg0 : i32, i32
  }
  func.func @transform_2(%arg0: i32, %arg1: memref<1xi32, #tpu.memory_space<smem>>) -> (i32, i32) {
    %c0_i32 = arith.constant 0 : i32
    %c0_i32_0 = arith.constant 0 : i32
    return %c0_i32, %arg0 : i32, i32
  }
  func.func @transform_3(%arg0: i32, %arg1: memref<1xi32, #tpu.memory_space<smem>>) -> (i32, i32) {
    %c0_i32 = arith.constant 0 : i32
    %c0_i32_0 = arith.constant 0 : i32
    return %c0_i32, %arg0 : i32, i32
  }
}

</mosaic_0001>

<llo_original>
// kernel: linear_dropout.1
$region0: #{linear_dropout.1}
  #allocation0 [shape = 'u32[]', space=smem, size = 0x4, offset = 0x4, fixed_abs, tag = 'smem constant byte address 0x4 - core index']
  #allocation1 [shape = 'u32[144,128]{1,0:T(1,128)}', space=vmem, size = 0x12000, scoped, tag = 'internal scratch']
  #allocation2 [shape = 's32[1]{0}', space=sflag, size = 0x4, scoped, tag = 'scoped memory for linear_dropout.1']
  #allocation3 [shape = 's32[1]{0:T(128)S(6)}', space=smem, size = 0x200, scoped, tag = 'prefetched SMEM operand 0']
  %s0 = inlined_call_operand.<no memory space> [shape: s32[1], index: 0, kind: input, shape index: {}]
  %s1 = inlined_call_operand.hbm [shape: f32[384,768], index: 1, kind: input, shape index: {}]
  %s2 = inlined_call_operand.hbm [shape: bf16[768,768], index: 2, kind: input, shape index: {}]
  %s3 = inlined_call_operand.hbm [shape: f32[1,768], index: 3, kind: input, shape index: {}]
  %s4 = inlined_call_operand.hbm [shape: f32[384,768], index: 4, kind: output, shape index: {}]
  %s5 = sld [smem:[#allocation0]]
  $region57: #{linear_dropout.1} parent=0
    _
  %s7 = ssub.s32 1, %s5
  %s8 = scalar_select 0, %s7, %s5
  %9 = sst [smem:[#allocation3]] %s0
  $region1: #{linear_dropout.1} parent=0
    #allocation4 [shape = 'u8[1179648]{0}', space=vmem, size = 0x120000, scoped, tag = 'input window, operand 1, single buffered']
    #allocation5 [shape = 's32[2]{0}', space=sflag, size = 0x8, scoped, tag = 'scoped memory for linear_dropout.1']
    #allocation6 [shape = 's32[2]{0}', space=sflag, size = 0x8, scoped, tag = 'scoped memory for linear_dropout.1']
    #allocation7 [shape = 'u8[1179648]{0}', space=vmem, size = 0x120000, scoped, tag = 'input window, operand 2']
    #allocation8 [shape = 's32[2]{0}', space=sflag, size = 0x8, scoped, tag = 'scoped memory for linear_dropout.1']
    #allocation9 [shape = 'u8[3072]{0}', space=vmem, size = 0xc00, scoped, tag = 'input window, operand 3']
    #allocation10 [shape = 'u8[1179648]{0}', space=vmem, size = 0x120000, scoped, tag = 'output window, operand 0']
    %10 = vsyncpa [#allocation5], 0
    %11 = vsyncpa [#allocation8], 0
    %s12 = scalar_lea.sflag [#allocation8], 1
    %13 = vsyncpa %s12, 0
    %14 = vsyncpa [#allocation6], 0
    %s15 = scalar_lea.sflag [#allocation6], 1
    %16 = vsyncpa %s15, 0
    loop: start=0, step=1, limit=4
    $region2: #{linear_dropout.1} parent=1 // loop_pre_header
      _
    $region3: #{linear_dropout.1} parent=1 // loop_header
      %s18 = sphi 0, %s22
      %p19 = scmp.ge.s32.totalorder %s18, 4
      %s26 = sphi 0, %s26
      %s28 = sphi 0, %s26
      %s29 = sphi 0, %s28
      %s43 = sphi 0, %s29
      %s49 = sphi 0, %s51
      %s52 = sphi 0, %s49
      %s53 = sphi 0, %s52
      %s69 = sphi 0, %s53
      %s75 = sphi 0, %s77
      %s78 = sphi 0, %s75
      %s79 = sphi 0, %s78
      %s95 = sphi 0, %s79
      %s101 = sphi 0, %s103
      %s104 = sphi 0, %s101
      %s105 = sphi 0, %s104
      %s121 = sphi 0, %s105
    $region4: #{linear_dropout.1} parent=1 // loop_header_branch
      %21 = sbr.rel (%p19) target = $region8
    $region5: #{linear_dropout.1} parent=1 // loop_body
      %s23 = ssub.s32 %s18, 1
      %s24 = ssub.s32 %s18, 2
      %s25 = sadd.s32 %s18, 1
      %s27 = sadd.s32 %s26, 1
      %p30 = scmp.eq.s32.totalorder %s18, 1
      %p31 = scmp.ne.s32.totalorder %s26, %s28
      %p32 = scmp.eq.s32.totalorder %s18, 0
      %p33 = por %p31, %p32
      %p34 = scmp.ne.s32.totalorder %s26, %s28
      %p35 = scmp.eq.s32.totalorder %s23, 1
      %p36 = por %p34, %p35
      %p37 = scmp.ne.s32.totalorder %s28, %s29
      %p38 = scmp.eq.s32.totalorder %s23, 0
      %p39 = por %p37, %p38
      %p40 = scmp.ne.s32.totalorder %s28, %s29
      %p41 = scmp.eq.s32.totalorder %s24, 1
      %p42 = por %p40, %p41
      %p44 = scmp.ne.s32.totalorder %s29, %s43
      %p45 = scmp.eq.s32.totalorder %s24, 0
      %p46 = por %p44, %p45
      %s47 = ssub.s32 %s18, %s25
      %p48 = scmp.eq.s32.totalorder %s47, 0
      %s50 = sadd.s32 %s49, 1
      %s51 = scalar_select %p48, %s49, %s50
      %p54 = pneg %p48
      %p55 = scmp.eq.s32.totalorder %s18, 1
      %p56 = por %p54, %p55
      %p57 = scmp.ne.s32.totalorder %s49, %s52
      %p58 = scmp.eq.s32.totalorder %s18, 0
      %p59 = por %p57, %p58
      %p60 = scmp.ne.s32.totalorder %s49, %s52
      %p61 = scmp.eq.s32.totalorder %s23, 1
      %p62 = por %p60, %p61
      %p63 = scmp.ne.s32.totalorder %s52, %s53
      %p64 = scmp.eq.s32.totalorder %s23, 0
      %p65 = por %p63, %p64
      %p66 = scmp.ne.s32.totalorder %s52, %s53
      %p67 = scmp.eq.s32.totalorder %s24, 1
      %p68 = por %p66, %p67
      %p70 = scmp.ne.s32.totalorder %s53, %s69
      %p71 = scmp.eq.s32.totalorder %s24, 0
      %p72 = por %p70, %p71
      %s73 = ssub.s32 %s18, %s25
      %p74 = scmp.eq.s32.totalorder %s73, 0
      %s76 = sadd.s32 %s75, 1
      %s77 = scalar_select %p74, %s75, %s76
      %p80 = pneg %p74
      %p81 = scmp.eq.s32.totalorder %s18, 1
      %p82 = por %p80, %p81
      %p83 = scmp.ne.s32.totalorder %s75, %s78
      %p84 = scmp.eq.s32.totalorder %s18, 0
      %p85 = por %p83, %p84
      %p86 = scmp.ne.s32.totalorder %s75, %s78
      %p87 = scmp.eq.s32.totalorder %s23, 1
      %p88 = por %p86, %p87
      %p89 = scmp.ne.s32.totalorder %s78, %s79
      %p90 = scmp.eq.s32.totalorder %s23, 0
      %p91 = por %p89, %p90
      %p92 = scmp.ne.s32.totalorder %s78, %s79
      %p93 = scmp.eq.s32.totalorder %s24, 1
      %p94 = por %p92, %p93
      %p96 = scmp.ne.s32.totalorder %s79, %s95
      %p97 = scmp.eq.s32.totalorder %s24, 0
      %p98 = por %p96, %p97
      %s99 = ssub.s32 %s18, %s25
      %p100 = scmp.eq.s32.totalorder %s99, 0
      %s102 = sadd.s32 %s101, 1
      %s103 = scalar_select %p100, %s101, %s102
      %p106 = pneg %p100
      %p107 = scmp.eq.s32.totalorder %s18, 1
      %p108 = por %p106, %p107
      %p109 = scmp.ne.s32.totalorder %s101, %s104
      %p110 = scmp.eq.s32.totalorder %s18, 0
      %p111 = por %p109, %p110
      %p112 = scmp.ne.s32.totalorder %s101, %s104
      %p113 = scmp.eq.s32.totalorder %s23, 1
      %p114 = por %p112, %p113
      %p115 = scmp.ne.s32.totalorder %s104, %s105
      %p116 = scmp.eq.s32.totalorder %s23, 0
      %p117 = por %p115, %p116
      %p118 = scmp.ne.s32.totalorder %s104, %s105
      %p119 = scmp.eq.s32.totalorder %s24, 1
      %p120 = por %p118, %p119
      %p122 = scmp.ne.s32.totalorder %s105, %s121
      %p123 = scmp.eq.s32.totalorder %s24, 0
      %p124 = por %p122, %p123
      %p125 = scmp.le.s32.totalorder 1, %s18
      %p126 = scmp.lt.s32.totalorder %s18, 3
      %p127 = pnand %p125, %p126
      %p128 = pneg %p127
      // Predicated region
      $region9: #{linear_dropout.1} parent=5 // pred_check
        _
      $region10: #{linear_dropout.1} parent=5 // pred_check_branch
        %130 = sbr.rel (%p127) target = $region12
      $region11: #{linear_dropout.1} parent=5 // pred_region
        %s131 = ssub.s32 %s18, 1
        // Predicated region
        $region13: #{linear_dropout.1} parent=11 // pred_check
          %p132 = pneg %p39
        $region14: #{linear_dropout.1} parent=11 // pred_check_branch
          %134 = sbr.rel (%p132) target = $region16
        $region15: #{linear_dropout.1} parent=11 // pred_region
          %s136 = ssub.s32 36864, 36864
          %137 = vsyncadd [#allocation5], %s136
          %s138 = sshll.u32 [#allocation4], 4
          %s139 = int_to_ptr.vmem [resolvable:$true] %s138
          %144 = dma.hbm_to_vmem [thread:$0]  %s1, 36864, %s139, [#allocation5], 768, 768, 48
        $region16: #{linear_dropout.1} parent=11 // pred_fallthru
          _
      $region12: #{linear_dropout.1} parent=5 // pred_fallthru
        _
      %p145 = scmp.lt.s32.totalorder %s18, 2
      // Predicated region
      $region17: #{linear_dropout.1} parent=5 // pred_check
        %p146 = pneg %p145
      $region18: #{linear_dropout.1} parent=5 // pred_check_branch
        %148 = sbr.rel (%p146) target = $region20
      $region19: #{linear_dropout.1} parent=5 // pred_region
        // Predicated region
        $region21: #{linear_dropout.1} parent=19 // pred_check
          %p149 = pneg %p59
        $region22: #{linear_dropout.1} parent=19 // pred_check_branch
          %151 = sbr.rel (%p149) target = $region24
        $region23: #{linear_dropout.1} parent=19 // pred_region
          %s152 = sand.u32 %s18, 1
          %s153 = scalar_lea.sflag [#allocation8], %s152
          %s154 = sand.u32 %s49, 1
          %s155 = smul.addr %s154, 1152
          %s156 = scalar_lea.vmem [#allocation7], %s155
          %s157 = smul.u32 3, %s18
          %s159 = ssub.s32 18432, 18432
          %160 = vsyncadd %s153, %s159
          %s161 = smul.addr %s157, 64
          %s162 = scalar_lea.hbm %s2, %s161
          %s163 = sshll.u32 %s156, 4
          %s164 = int_to_ptr.vmem [resolvable:$true] %s163
          %169 = dma.hbm_to_vmem [thread:$0]  %s162, 18432, %s164, %s153, 384, 192, 12
        $region24: #{linear_dropout.1} parent=19 // pred_fallthru
          _
        // Predicated region
        $region25: #{linear_dropout.1} parent=19 // pred_check
          %p170 = pneg %p85
        $region26: #{linear_dropout.1} parent=19 // pred_check_branch
          %172 = sbr.rel (%p170) target = $region28
        $region27: #{linear_dropout.1} parent=19 // pred_region
          %s173 = sand.u32 %s18, 1
          %s174 = scalar_lea.sflag [#allocation8], %s173
          %s175 = sand.u32 %s75, 1
          %s176 = smul.addr %s175, 3
          %s177 = scalar_lea.vmem [#allocation9], %s176
          %s178 = smul.u32 3, %s18
          %s180 = ssub.s32 48, 48
          %181 = vsyncadd %s174, %s180
          %s182 = smul.addr %s178, 16
          %s183 = scalar_lea.hbm %s3, %s182
          %s185 = sshll.u32 %s177, 4
          %s186 = int_to_ptr.vmem [resolvable:$true] %s185
          %188 = dma.hbm_to_vmem [thread:$0]  %s183, 48, %s186, %s174
        $region28: #{linear_dropout.1} parent=19 // pred_fallthru
          _
      $region20: #{linear_dropout.1} parent=5 // pred_fallthru
        _
      %p189 = scmp.le.s32.totalorder 1, %s18
      %p190 = scmp.lt.s32.totalorder %s18, 3
      %p191 = pnand %p189, %p190
      %p192 = pneg %p191
      // Predicated region
      $region29: #{linear_dropout.1} parent=5 // pred_check
        _
      $region30: #{linear_dropout.1} parent=5 // pred_check_branch
        %194 = sbr.rel (%p191) target = $region32
      $region31: #{linear_dropout.1} parent=5 // pred_region
        %s195 = ssub.s32 %s18, 1
        // Predicated region
        $region33: #{linear_dropout.1} parent=31 // pred_check
          %p196 = pneg %p39
        $region34: #{linear_dropout.1} parent=31 // pred_check_branch
          %198 = sbr.rel (%p196) target = $region36
        $region35: #{linear_dropout.1} parent=31 // pred_region
          %199 = dma.done [#allocation5], 36864
        $region36: #{linear_dropout.1} parent=31 // pred_fallthru
          _
        %s200 = sand.u32 %s23, 1
        %s201 = scalar_lea.sflag [#allocation8], %s200
        %s202 = sand.u32 %s52, 1
        %s203 = smul.addr %s202, 1152
        %s204 = scalar_lea.vmem [#allocation7], %s203
        // Predicated region
        $region37: #{linear_dropout.1} parent=31 // pred_check
          %p205 = pneg %p65
        $region38: #{linear_dropout.1} parent=31 // pred_check_branch
          %207 = sbr.rel (%p205) target = $region40
        $region39: #{linear_dropout.1} parent=31 // pred_region
          %208 = dma.done %s201, 18432
        $region40: #{linear_dropout.1} parent=31 // pred_fallthru
          _
        %s209 = sand.u32 %s23, 1
        %s210 = scalar_lea.sflag [#allocation8], %s209
        %s211 = sand.u32 %s78, 1
        %s212 = smul.addr %s211, 3
        %s213 = scalar_lea.vmem [#allocation9], %s212
        // Predicated region
        $region41: #{linear_dropout.1} parent=31 // pred_check
          %p214 = pneg %p91
        $region42: #{linear_dropout.1} parent=31 // pred_check_branch
          %216 = sbr.rel (%p214) target = $region44
        $region43: #{linear_dropout.1} parent=31 // pred_region
          %217 = dma.done %s210, 48
        $region44: #{linear_dropout.1} parent=31 // pred_fallthru
          _
        %p218 = pneg %p39
        %p219 = pneg %p36
        %s220 = sand.u32 %s23, 1
        %s221 = scalar_lea.sflag [#allocation8], %s220
        %s222 = sand.u32 %s52, 1
        %s223 = smul.addr %s222, 1152
        %s224 = scalar_lea.vmem [#allocation7], %s223
        %p225 = pneg %p65
        %p226 = pneg %p62
        %s227 = sand.u32 %s23, 1
        %s228 = scalar_lea.sflag [#allocation8], %s227
        %s229 = sand.u32 %s78, 1
        %s230 = smul.addr %s229, 3
        %s231 = scalar_lea.vmem [#allocation9], %s230
        %p232 = pneg %p91
        %p233 = pneg %p88
        %p234 = pneg %p117
        %p235 = pneg %p114
        %s236 = sand.u32 %s104, 1
        %s237 = scalar_lea.sflag [#allocation6], %s236
        %s238 = sand.u32 %s104, 1
        %s239 = smul.addr %s238, 1152
        %s240 = scalar_lea.vmem [#allocation10], %s239
        %s241 = smul.u32 3, %s23
        %s242 = smul.u32 3, %s23
        %s243 = smul.u32 3, %s23
        %v245 = vld [vmem:[#allocation4] sm:$0xff]
        %v246 = vld [vmem:[#allocation4 + $0x8] sm:$0xff]
        %v247 = vld [vmem:[#allocation4 + $0x10] sm:$0xff]
        %v248 = vld [vmem:[#allocation4 + $0x18] sm:$0xff]
        %v249 = vld [vmem:[#allocation4 + $0x20] sm:$0xff]
        %v250 = vld [vmem:[#allocation4 + $0x28] sm:$0xff]
        %v251 = vld [vmem:[#allocation4 + $0x30] sm:$0xff]
        %v252 = vld [vmem:[#allocation4 + $0x38] sm:$0xff]
        %v253 = vld [vmem:[#allocation4 + $0x40] sm:$0xff]
        %v254 = vld [vmem:[#allocation4 + $0x48] sm:$0xff]
        %v255 = vld [vmem:[#allocation4 + $0x50] sm:$0xff]
        %v256 = vld [vmem:[#allocation4 + $0x58] sm:$0xff]
        %v257 = vld [vmem:[#allocation4 + $0x60] sm:$0xff]
        %v258 = vld [vmem:[#allocation4 + $0x68] sm:$0xff]
        %v259 = vld [vmem:[#allocation4 + $0x70] sm:$0xff]
        %v260 = vld [vmem:[#allocation4 + $0x78] sm:$0xff]
        %v261 = vld [vmem:[#allocation4 + $0x80] sm:$0xff]
        %v262 = vld [vmem:[#allocation4 + $0x88] sm:$0xff]
        %v263 = vld [vmem:[#allocation4 + $0x90] sm:$0xff]
        %v264 = vld [vmem:[#allocation4 + $0x98] sm:$0xff]
        %v265 = vld [vmem:[#allocation4 + $0xa0] sm:$0xff]
        %v266 = vld [vmem:[#allocation4 + $0xa8] sm:$0xff]
        %v267 = vld [vmem:[#allocation4 + $0xb0] sm:$0xff]
        %v268 = vld [vmem:[#allocation4 + $0xb8] sm:$0xff]
        %v269 = vld [vmem:[#allocation4 + $0xc0] sm:$0xff]
        %v270 = vld [vmem:[#allocation4 + $0xc8] sm:$0xff]
        %v271 = vld [vmem:[#allocation4 + $0xd0] sm:$0xff]
        %v272 = vld [vmem:[#allocation4 + $0xd8] sm:$0xff]
        %v273 = vld [vmem:[#allocation4 + $0xe0] sm:$0xff]
        %v274 = vld [vmem:[#allocation4 + $0xe8] sm:$0xff]
        %v275 = vld [vmem:[#allocation4 + $0xf0] sm:$0xff]
        %v276 = vld [vmem:[#allocation4 + $0xf8] sm:$0xff]
        %v277 = vld [vmem:[#allocation4 + $0x100] sm:$0xff]
        %v278 = vld [vmem:[#allocation4 + $0x108] sm:$0xff]
        %v279 = vld [vmem:[#allocation4 + $0x110] sm:$0xff]
        %v280 = vld [vmem:[#allocation4 + $0x118] sm:$0xff]
        %v281 = vld [vmem:[#allocation4 + $0x120] sm:$0xff]
        %v282 = vld [vmem:[#allocation4 + $0x128] sm:$0xff]
        %v283 = vld [vmem:[#allocation4 + $0x130] sm:$0xff]
        %v284 = vld [vmem:[#allocation4 + $0x138] sm:$0xff]
        %v285 = vld [vmem:[#allocation4 + $0x140] sm:$0xff]
        %v286 = vld [vmem:[#allocation4 + $0x148] sm:$0xff]
        %v287 = vld [vmem:[#allocation4 + $0x150] sm:$0xff]
        %v288 = vld [vmem:[#allocation4 + $0x158] sm:$0xff]
        %v289 = vld [vmem:[#allocation4 + $0x160] sm:$0xff]
        %v290 = vld [vmem:[#allocation4 + $0x168] sm:$0xff]
        %v291 = vld [vmem:[#allocation4 + $0x170] sm:$0xff]
        %v292 = vld [vmem:[#allocation4 + $0x178] sm:$0xff]
        %v293 = vld [vmem:[#allocation4 + $0x180] sm:$0xff]
        %v294 = vld [vmem:[#allocation4 + $0x188] sm:$0xff]
        %v295 = vld [vmem:[#allocation4 + $0x190] sm:$0xff]
        %v296 = vld [vmem:[#allocation4 + $0x198] sm:$0xff]
        %v297 = vld [vmem:[#allocation4 + $0x1a0] sm:$0xff]
        %v298 = vld [vmem:[#allocation4 + $0x1a8] sm:$0xff]
        %v299 = vld [vmem:[#allocation4 + $0x1b0] sm:$0xff]
        %v300 = vld [vmem:[#allocation4 + $0x1b8] sm:$0xff]
        %v301 = vld [vmem:[#allocation4 + $0x1c0] sm:$0xff]
        %v302 = vld [vmem:[#allocation4 + $0x1c8] sm:$0xff]
        %v303 = vld [vmem:[#allocation4 + $0x1d0] sm:$0xff]
        %v304 = vld [vmem:[#allocation4 + $0x1d8] sm:$0xff]
        %v305 = vld [vmem:[#allocation4 + $0x1e0] sm:$0xff]
        %v306 = vld [vmem:[#allocation4 + $0x1e8] sm:$0xff]
        %v307 = vld [vmem:[#allocation4 + $0x1f0] sm:$0xff]
        %v308 = vld [vmem:[#allocation4 + $0x1f8] sm:$0xff]
        %v309 = vld [vmem:[#allocation4 + $0x200] sm:$0xff]
        %v310 = vld [vmem:[#allocation4 + $0x208] sm:$0xff]
        %v311 = vld [vmem:[#allocation4 + $0x210] sm:$0xff]
        %v312 = vld [vmem:[#allocation4 + $0x218] sm:$0xff]
        %v313 = vld [vmem:[#allocation4 + $0x220] sm:$0xff]
        %v314 = vld [vmem:[#allocation4 + $0x228] sm:$0xff]
        %v315 = vld [vmem:[#allocation4 + $0x230] sm:$0xff]
        %v316 = vld [vmem:[#allocation4 + $0x238] sm:$0xff]
        %v317 = vld [vmem:[#allocation4 + $0x240] sm:$0xff]
        %v318 = vld [vmem:[#allocation4 + $0x248] sm:$0xff]
        %v319 = vld [vmem:[#allocation4 + $0x250] sm:$0xff]
        %v320 = vld [vmem:[#allocation4 + $0x258] sm:$0xff]
        %v321 = vld [vmem:[#allocation4 + $0x260] sm:$0xff]
        %v322 = vld [vmem:[#allocation4 + $0x268] sm:$0xff]
        %v323 = vld [vmem:[#allocation4 + $0x270] sm:$0xff]
        %v324 = vld [vmem:[#allocation4 + $0x278] sm:$0xff]
        %v325 = vld [vmem:[#allocation4 + $0x280] sm:$0xff]
        %v326 = vld [vmem:[#allocation4 + $0x288] sm:$0xff]
        %v327 = vld [vmem:[#allocation4 + $0x290] sm:$0xff]
        %v328 = vld [vmem:[#allocation4 + $0x298] sm:$0xff]
        %v329 = vld [vmem:[#allocation4 + $0x2a0] sm:$0xff]
        %v330 = vld [vmem:[#allocation4 + $0x2a8] sm:$0xff]
        %v331 = vld [vmem:[#allocation4 + $0x2b0] sm:$0xff]
        %v332 = vld [vmem:[#allocation4 + $0x2b8] sm:$0xff]
        %v333 = vld [vmem:[#allocation4 + $0x2c0] sm:$0xff]
        %v334 = vld [vmem:[#allocation4 + $0x2c8] sm:$0xff]
        %v335 = vld [vmem:[#allocation4 + $0x2d0] sm:$0xff]
        %v336 = vld [vmem:[#allocation4 + $0x2d8] sm:$0xff]
        %v337 = vld [vmem:[#allocation4 + $0x2e0] sm:$0xff]
        %v338 = vld [vmem:[#allocation4 + $0x2e8] sm:$0xff]
        %v339 = vld [vmem:[#allocation4 + $0x2f0] sm:$0xff]
        %v340 = vld [vmem:[#allocation4 + $0x2f8] sm:$0xff]
        %v341 = vld [vmem:[#allocation4 + $0x300] sm:$0xff]
        %v342 = vld [vmem:[#allocation4 + $0x308] sm:$0xff]
        %v343 = vld [vmem:[#allocation4 + $0x310] sm:$0xff]
        %v344 = vld [vmem:[#allocation4 + $0x318] sm:$0xff]
        %v345 = vld [vmem:[#allocation4 + $0x320] sm:$0xff]
        %v346 = vld [vmem:[#allocation4 + $0x328] sm:$0xff]
        %v347 = vld [vmem:[#allocation4 + $0x330] sm:$0xff]
        %v348 = vld [vmem:[#allocation4 + $0x338] sm:$0xff]
        %v349 = vld [vmem:[#allocation4 + $0x340] sm:$0xff]
        %v350 = vld [vmem:[#allocation4 + $0x348] sm:$0xff]
        %v351 = vld [vmem:[#allocation4 + $0x350] sm:$0xff]
        %v352 = vld [vmem:[#allocation4 + $0x358] sm:$0xff]
        %v353 = vld [vmem:[#allocation4 + $0x360] sm:$0xff]
        %v354 = vld [vmem:[#allocation4 + $0x368] sm:$0xff]
        %v355 = vld [vmem:[#allocation4 + $0x370] sm:$0xff]
        %v356 = vld [vmem:[#allocation4 + $0x378] sm:$0xff]
        %v357 = vld [vmem:[#allocation4 + $0x380] sm:$0xff]
        %v358 = vld [vmem:[#allocation4 + $0x388] sm:$0xff]
        %v359 = vld [vmem:[#allocation4 + $0x390] sm:$0xff]
        %v360 = vld [vmem:[#allocation4 + $0x398] sm:$0xff]
        %v361 = vld [vmem:[#allocation4 + $0x3a0] sm:$0xff]
        %v362 = vld [vmem:[#allocation4 + $0x3a8] sm:$0xff]
        %v363 = vld [vmem:[#allocation4 + $0x3b0] sm:$0xff]
        %v364 = vld [vmem:[#allocation4 + $0x3b8] sm:$0xff]
        %v365 = vld [vmem:[#allocation4 + $0x3c0] sm:$0xff]
        %v366 = vld [vmem:[#allocation4 + $0x3c8] sm:$0xff]
        %v367 = vld [vmem:[#allocation4 + $0x3d0] sm:$0xff]
        %v368 = vld [vmem:[#allocation4 + $0x3d8] sm:$0xff]
        %v369 = vld [vmem:[#allocation4 + $0x3e0] sm:$0xff]
        %v370 = vld [vmem:[#allocation4 + $0x3e8] sm:$0xff]
        %v371 = vld [vmem:[#allocation4 + $0x3f0] sm:$0xff]
        %v372 = vld [vmem:[#allocation4 + $0x3f8] sm:$0xff]
        %v373 = vld [vmem:[#allocation4 + $0x400] sm:$0xff]
        %v374 = vld [vmem:[#allocation4 + $0x408] sm:$0xff]
        %v375 = vld [vmem:[#allocation4 + $0x410] sm:$0xff]
        %v376 = vld [vmem:[#allocation4 + $0x418] sm:$0xff]
        %v377 = vld [vmem:[#allocation4 + $0x420] sm:$0xff]
        %v378 = vld [vmem:[#allocation4 + $0x428] sm:$0xff]
        %v379 = vld [vmem:[#allocation4 + $0x430] sm:$0xff]
        %v380 = vld [vmem:[#allocation4 + $0x438] sm:$0xff]
        %v381 = vld [vmem:[#allocation4 + $0x440] sm:$0xff]
        %v382 = vld [vmem:[#allocation4 + $0x448] sm:$0xff]
        %v383 = vld [vmem:[#allocation4 + $0x450] sm:$0xff]
        %v384 = vld [vmem:[#allocation4 + $0x458] sm:$0xff]
        %v385 = vld [vmem:[#allocation4 + $0x460] sm:$0xff]
        %v386 = vld [vmem:[#allocation4 + $0x468] sm:$0xff]
        %v387 = vld [vmem:[#allocation4 + $0x470] sm:$0xff]
        %v388 = vld [vmem:[#allocation4 + $0x478] sm:$0xff]
        %v389 = vld [vmem:[#allocation4 + $0x480] sm:$0xff]
        %v390 = vld [vmem:[#allocation4 + $0x488] sm:$0xff]
        %v391 = vld [vmem:[#allocation4 + $0x490] sm:$0xff]
        %v392 = vld [vmem:[#allocation4 + $0x498] sm:$0xff]
        %v393 = vld [vmem:[#allocation4 + $0x4a0] sm:$0xff]
        %v394 = vld [vmem:[#allocation4 + $0x4a8] sm:$0xff]
        %v395 = vld [vmem:[#allocation4 + $0x4b0] sm:$0xff]
        %v396 = vld [vmem:[#allocation4 + $0x4b8] sm:$0xff]
        %v397 = vld [vmem:[#allocation4 + $0x4c0] sm:$0xff]
        %v398 = vld [vmem:[#allocation4 + $0x4c8] sm:$0xff]
        %v399 = vld [vmem:[#allocation4 + $0x4d0] sm:$0xff]
        %v400 = vld [vmem:[#allocation4 + $0x4d8] sm:$0xff]
        %v401 = vld [vmem:[#allocation4 + $0x4e0] sm:$0xff]
        %v402 = vld [vmem:[#allocation4 + $0x4e8] sm:$0xff]
        %v403 = vld [vmem:[#allocation4 + $0x4f0] sm:$0xff]
        %v404 = vld [vmem:[#allocation4 + $0x4f8] sm:$0xff]
        %v405 = vld [vmem:[#allocation4 + $0x500] sm:$0xff]
        %v406 = vld [vmem:[#allocation4 + $0x508] sm:$0xff]
        %v407 = vld [vmem:[#allocation4 + $0x510] sm:$0xff]
        %v408 = vld [vmem:[#allocation4 + $0x518] sm:$0xff]
        %v409 = vld [vmem:[#allocation4 + $0x520] sm:$0xff]
        %v410 = vld [vmem:[#allocation4 + $0x528] sm:$0xff]
        %v411 = vld [vmem:[#allocation4 + $0x530] sm:$0xff]
        %v412 = vld [vmem:[#allocation4 + $0x538] sm:$0xff]
        %v413 = vld [vmem:[#allocation4 + $0x540] sm:$0xff]
        %v414 = vld [vmem:[#allocation4 + $0x548] sm:$0xff]
        %v415 = vld [vmem:[#allocation4 + $0x550] sm:$0xff]
        %v416 = vld [vmem:[#allocation4 + $0x558] sm:$0xff]
        %v417 = vld [vmem:[#allocation4 + $0x560] sm:$0xff]
        %v418 = vld [vmem:[#allocation4 + $0x568] sm:$0xff]
        %v419 = vld [vmem:[#allocation4 + $0x570] sm:$0xff]
        %v420 = vld [vmem:[#allocation4 + $0x578] sm:$0xff]
        %v421 = vld [vmem:[#allocation4 + $0x580] sm:$0xff]
        %v422 = vld [vmem:[#allocation4 + $0x588] sm:$0xff]
        %v423 = vld [vmem:[#allocation4 + $0x590] sm:$0xff]
        %v424 = vld [vmem:[#allocation4 + $0x598] sm:$0xff]
        %v425 = vld [vmem:[#allocation4 + $0x5a0] sm:$0xff]
        %v426 = vld [vmem:[#allocation4 + $0x5a8] sm:$0xff]
        %v427 = vld [vmem:[#allocation4 + $0x5b0] sm:$0xff]
        %v428 = vld [vmem:[#allocation4 + $0x5b8] sm:$0xff]
        %v429 = vld [vmem:[#allocation4 + $0x5c0] sm:$0xff]
        %v430 = vld [vmem:[#allocation4 + $0x5c8] sm:$0xff]
        %v431 = vld [vmem:[#allocation4 + $0x5d0] sm:$0xff]
        %v432 = vld [vmem:[#allocation4 + $0x5d8] sm:$0xff]
        %v433 = vld [vmem:[#allocation4 + $0x5e0] sm:$0xff]
        %v434 = vld [vmem:[#allocation4 + $0x5e8] sm:$0xff]
        %v435 = vld [vmem:[#allocation4 + $0x5f0] sm:$0xff]
        %v436 = vld [vmem:[#allocation4 + $0x5f8] sm:$0xff]
        %v437 = vld [vmem:[#allocation4 + $0x600] sm:$0xff]
        %v438 = vld [vmem:[#allocation4 + $0x608] sm:$0xff]
        %v439 = vld [vmem:[#allocation4 + $0x610] sm:$0xff]
        %v440 = vld [vmem:[#allocation4 + $0x618] sm:$0xff]
        %v441 = vld [vmem:[#allocation4 + $0x620] sm:$0xff]
        %v442 = vld [vmem:[#allocation4 + $0x628] sm:$0xff]
        %v443 = vld [vmem:[#allocation4 + $0x630] sm:$0xff]
        %v444 = vld [vmem:[#allocation4 + $0x638] sm:$0xff]
        %v445 = vld [vmem:[#allocation4 + $0x640] sm:$0xff]
        %v446 = vld [vmem:[#allocation4 + $0x648] sm:$0xff]
        %v447 = vld [vmem:[#allocation4 + $0x650] sm:$0xff]
        %v448 = vld [vmem:[#allocation4 + $0x658] sm:$0xff]
        %v449 = vld [vmem:[#allocation4 + $0x660] sm:$0xff]
        %v450 = vld [vmem:[#allocation4 + $0x668] sm:$0xff]
        %v451 = vld [vmem:[#allocation4 + $0x670] sm:$0xff]
        %v452 = vld [vmem:[#allocation4 + $0x678] sm:$0xff]
        %v453 = vld [vmem:[#allocation4 + $0x680] sm:$0xff]
        %v454 = vld [vmem:[#allocation4 + $0x688] sm:$0xff]
        %v455 = vld [vmem:[#allocation4 + $0x690] sm:$0xff]
        %v456 = vld [vmem:[#allocation4 + $0x698] sm:$0xff]
        %v457 = vld [vmem:[#allocation4 + $0x6a0] sm:$0xff]
        %v458 = vld [vmem:[#allocation4 + $0x6a8] sm:$0xff]
        %v459 = vld [vmem:[#allocation4 + $0x6b0] sm:$0xff]
        %v460 = vld [vmem:[#allocation4 + $0x6b8] sm:$0xff]
        %v461 = vld [vmem:[#allocation4 + $0x6c0] sm:$0xff]
        %v462 = vld [vmem:[#allocation4 + $0x6c8] sm:$0xff]
        %v463 = vld [vmem:[#allocation4 + $0x6d0] sm:$0xff]
        %v464 = vld [vmem:[#allocation4 + $0x6d8] sm:$0xff]
        %v465 = vld [vmem:[#allocation4 + $0x6e0] sm:$0xff]
        %v466 = vld [vmem:[#allocation4 + $0x6e8] sm:$0xff]
        %v467 = vld [vmem:[#allocation4 + $0x6f0] sm:$0xff]
        %v468 = vld [vmem:[#allocation4 + $0x6f8] sm:$0xff]
        %v469 = vld [vmem:[#allocation4 + $0x700] sm:$0xff]
        %v470 = vld [vmem:[#allocation4 + $0x708] sm:$0xff]
        %v471 = vld [vmem:[#allocation4 + $0x710] sm:$0xff]
        %v472 = vld [vmem:[#allocation4 + $0x718] sm:$0xff]
        %v473 = vld [vmem:[#allocation4 + $0x720] sm:$0xff]
        %v474 = vld [vmem:[#allocation4 + $0x728] sm:$0xff]
        %v475 = vld [vmem:[#allocation4 + $0x730] sm:$0xff]
        %v476 = vld [vmem:[#allocation4 + $0x738] sm:$0xff]
        %v477 = vld [vmem:[#allocation4 + $0x740] sm:$0xff]
        %v478 = vld [vmem:[#allocation4 + $0x748] sm:$0xff]
        %v479 = vld [vmem:[#allocation4 + $0x750] sm:$0xff]
        %v480 = vld [vmem:[#allocation4 + $0x758] sm:$0xff]
        %v481 = vld [vmem:[#allocation4 + $0x760] sm:$0xff]
        %v482 = vld [vmem:[#allocation4 + $0x768] sm:$0xff]
        %v483 = vld [vmem:[#allocation4 + $0x770] sm:$0xff]
        %v484 = vld [vmem:[#allocation4 + $0x778] sm:$0xff]
        %v485 = vld [vmem:[#allocation4 + $0x780] sm:$0xff]
        %v486 = vld [vmem:[#allocation4 + $0x788] sm:$0xff]
        %v487 = vld [vmem:[#allocation4 + $0x790] sm:$0xff]
        %v488 = vld [vmem:[#allocation4 + $0x798] sm:$0xff]
        %v489 = vld [vmem:[#allocation4 + $0x7a0] sm:$0xff]
        %v490 = vld [vmem:[#allocation4 + $0x7a8] sm:$0xff]
        %v491 = vld [vmem:[#allocation4 + $0x7b0] sm:$0xff]
        %v492 = vld [vmem:[#allocation4 + $0x7b8] sm:$0xff]
        %v493 = vld [vmem:[#allocation4 + $0x7c0] sm:$0xff]
        %v494 = vld [vmem:[#allocation4 + $0x7c8] sm:$0xff]
        %v495 = vld [vmem:[#allocation4 + $0x7d0] sm:$0xff]
        %v496 = vld [vmem:[#allocation4 + $0x7d8] sm:$0xff]
        %v497 = vld [vmem:[#allocation4 + $0x7e0] sm:$0xff]
        %v498 = vld [vmem:[#allocation4 + $0x7e8] sm:$0xff]
        %v499 = vld [vmem:[#allocation4 + $0x7f0] sm:$0xff]
        %v500 = vld [vmem:[#allocation4 + $0x7f8] sm:$0xff]
        %v501 = vld [vmem:[#allocation4 + $0x800] sm:$0xff]
        %v502 = vld [vmem:[#allocation4 + $0x808] sm:$0xff]
        %v503 = vld [vmem:[#allocation4 + $0x810] sm:$0xff]
        %v504 = vld [vmem:[#allocation4 + $0x818] sm:$0xff]
        %v505 = vld [vmem:[#allocation4 + $0x820] sm:$0xff]
        %v506 = vld [vmem:[#allocation4 + $0x828] sm:$0xff]
        %v507 = vld [vmem:[#allocation4 + $0x830] sm:$0xff]
        %v508 = vld [vmem:[#allocation4 + $0x838] sm:$0xff]
        %v509 = vld [vmem:[#allocation4 + $0x840] sm:$0xff]
        %v510 = vld [vmem:[#allocation4 + $0x848] sm:$0xff]
        %v511 = vld [vmem:[#allocation4 + $0x850] sm:$0xff]
        %v512 = vld [vmem:[#allocation4 + $0x858] sm:$0xff]
        %v513 = vld [vmem:[#allocation4 + $0x860] sm:$0xff]
        %v514 = vld [vmem:[#allocation4 + $0x868] sm:$0xff]
        %v515 = vld [vmem:[#allocation4 + $0x870] sm:$0xff]
        %v516 = vld [vmem:[#allocation4 + $0x878] sm:$0xff]
        %v517 = vld [vmem:[#allocation4 + $0x880] sm:$0xff]
        %v518 = vld [vmem:[#allocation4 + $0x888] sm:$0xff]
        %v519 = vld [vmem:[#allocation4 + $0x890] sm:$0xff]
        %v520 = vld [vmem:[#allocation4 + $0x898] sm:$0xff]
        %v521 = vld [vmem:[#allocation4 + $0x8a0] sm:$0xff]
        %v522 = vld [vmem:[#allocation4 + $0x8a8] sm:$0xff]
        %v523 = vld [vmem:[#allocation4 + $0x8b0] sm:$0xff]
        %v524 = vld [vmem:[#allocation4 + $0x8b8] sm:$0xff]
        %v525 = vld [vmem:[#allocation4 + $0x8c0] sm:$0xff]
        %v526 = vld [vmem:[#allocation4 + $0x8c8] sm:$0xff]
        %v527 = vld [vmem:[#allocation4 + $0x8d0] sm:$0xff]
        %v528 = vld [vmem:[#allocation4 + $0x8d8] sm:$0xff]
        %v529 = vld [vmem:[#allocation4 + $0x8e0] sm:$0xff]
        %v530 = vld [vmem:[#allocation4 + $0x8e8] sm:$0xff]
        %v531 = vld [vmem:[#allocation4 + $0x8f0] sm:$0xff]
        %v532 = vld [vmem:[#allocation4 + $0x8f8] sm:$0xff]
        %v533 = vpack.c.bf16 %v251, %v245
        %v534 = vpack.c.bf16 %v252, %v246
        %v535 = vpack.c.bf16 %v253, %v247
        %v536 = vpack.c.bf16 %v254, %v248
        %v537 = vpack.c.bf16 %v255, %v249
        %v538 = vpack.c.bf16 %v256, %v250
        %v539 = vpack.c.bf16 %v263, %v257
        %v540 = vpack.c.bf16 %v264, %v258
        %v541 = vpack.c.bf16 %v265, %v259
        %v542 = vpack.c.bf16 %v266, %v260
        %v543 = vpack.c.bf16 %v267, %v261
        %v544 = vpack.c.bf16 %v268, %v262
        %v545 = vpack.c.bf16 %v275, %v269
        %v546 = vpack.c.bf16 %v276, %v270
        %v547 = vpack.c.bf16 %v277, %v271
        %v548 = vpack.c.bf16 %v278, %v272
        %v549 = vpack.c.bf16 %v279, %v273
        %v550 = vpack.c.bf16 %v280, %v274
        %v551 = vpack.c.bf16 %v287, %v281
        %v552 = vpack.c.bf16 %v288, %v282
        %v553 = vpack.c.bf16 %v289, %v283
        %v554 = vpack.c.bf16 %v290, %v284
        %v555 = vpack.c.bf16 %v291, %v285
        %v556 = vpack.c.bf16 %v292, %v286
        %v557 = vpack.c.bf16 %v299, %v293
        %v558 = vpack.c.bf16 %v300, %v294
        %v559 = vpack.c.bf16 %v301, %v295
        %v560 = vpack.c.bf16 %v302, %v296
        %v561 = vpack.c.bf16 %v303, %v297
        %v562 = vpack.c.bf16 %v304, %v298
        %v563 = vpack.c.bf16 %v311, %v305
        %v564 = vpack.c.bf16 %v312, %v306
        %v565 = vpack.c.bf16 %v313, %v307
        %v566 = vpack.c.bf16 %v314, %v308
        %v567 = vpack.c.bf16 %v315, %v309
        %v568 = vpack.c.bf16 %v316, %v310
        %v569 = vpack.c.bf16 %v323, %v317
        %v570 = vpack.c.bf16 %v324, %v318
        %v571 = vpack.c.bf16 %v325, %v319
        %v572 = vpack.c.bf16 %v326, %v320
        %v573 = vpack.c.bf16 %v327, %v321
        %v574 = vpack.c.bf16 %v328, %v322
        %v575 = vpack.c.bf16 %v335, %v329
        %v576 = vpack.c.bf16 %v336, %v330
        %v577 = vpack.c.bf16 %v337, %v331
        %v578 = vpack.c.bf16 %v338, %v332
        %v579 = vpack.c.bf16 %v339, %v333
        %v580 = vpack.c.bf16 %v340, %v334
        %v581 = vpack.c.bf16 %v347, %v341
        %v582 = vpack.c.bf16 %v348, %v342
        %v583 = vpack.c.bf16 %v349, %v343
        %v584 = vpack.c.bf16 %v350, %v344
        %v585 = vpack.c.bf16 %v351, %v345
        %v586 = vpack.c.bf16 %v352, %v346
        %v587 = vpack.c.bf16 %v359, %v353
        %v588 = vpack.c.bf16 %v360, %v354
        %v589 = vpack.c.bf16 %v361, %v355
        %v590 = vpack.c.bf16 %v362, %v356
        %v591 = vpack.c.bf16 %v363, %v357
        %v592 = vpack.c.bf16 %v364, %v358
        %v593 = vpack.c.bf16 %v371, %v365
        %v594 = vpack.c.bf16 %v372, %v366
        %v595 = vpack.c.bf16 %v373, %v367
        %v596 = vpack.c.bf16 %v374, %v368
        %v597 = vpack.c.bf16 %v375, %v369
        %v598 = vpack.c.bf16 %v376, %v370
        %v599 = vpack.c.bf16 %v383, %v377
        %v600 = vpack.c.bf16 %v384, %v378
        %v601 = vpack.c.bf16 %v385, %v379
        %v602 = vpack.c.bf16 %v386, %v380
        %v603 = vpack.c.bf16 %v387, %v381
        %v604 = vpack.c.bf16 %v388, %v382
        %v605 = vpack.c.bf16 %v395, %v389
        %v606 = vpack.c.bf16 %v396, %v390
        %v607 = vpack.c.bf16 %v397, %v391
        %v608 = vpack.c.bf16 %v398, %v392
        %v609 = vpack.c.bf16 %v399, %v393
        %v610 = vpack.c.bf16 %v400, %v394
        %v611 = vpack.c.bf16 %v407, %v401
        %v612 = vpack.c.bf16 %v408, %v402
        %v613 = vpack.c.bf16 %v409, %v403
        %v614 = vpack.c.bf16 %v410, %v404
        %v615 = vpack.c.bf16 %v411, %v405
        %v616 = vpack.c.bf16 %v412, %v406
        %v617 = vpack.c.bf16 %v419, %v413
        %v618 = vpack.c.bf16 %v420, %v414
        %v619 = vpack.c.bf16 %v421, %v415
        %v620 = vpack.c.bf16 %v422, %v416
        %v621 = vpack.c.bf16 %v423, %v417
        %v622 = vpack.c.bf16 %v424, %v418
        %v623 = vpack.c.bf16 %v431, %v425
        %v624 = vpack.c.bf16 %v432, %v426
        %v625 = vpack.c.bf16 %v433, %v427
        %v626 = vpack.c.bf16 %v434, %v428
        %v627 = vpack.c.bf16 %v435, %v429
        %v628 = vpack.c.bf16 %v436, %v430
        %v629 = vpack.c.bf16 %v443, %v437
        %v630 = vpack.c.bf16 %v444, %v438
        %v631 = vpack.c.bf16 %v445, %v439
        %v632 = vpack.c.bf16 %v446, %v440
        %v633 = vpack.c.bf16 %v447, %v441
        %v634 = vpack.c.bf16 %v448, %v442
        %v635 = vpack.c.bf16 %v455, %v449
        %v636 = vpack.c.bf16 %v456, %v450
        %v637 = vpack.c.bf16 %v457, %v451
        %v638 = vpack.c.bf16 %v458, %v452
        %v639 = vpack.c.bf16 %v459, %v453
        %v640 = vpack.c.bf16 %v460, %v454
        %v641 = vpack.c.bf16 %v467, %v461
        %v642 = vpack.c.bf16 %v468, %v462
        %v643 = vpack.c.bf16 %v469, %v463
        %v644 = vpack.c.bf16 %v470, %v464
        %v645 = vpack.c.bf16 %v471, %v465
        %v646 = vpack.c.bf16 %v472, %v466
        %v647 = vpack.c.bf16 %v479, %v473
        %v648 = vpack.c.bf16 %v480, %v474
        %v649 = vpack.c.bf16 %v481, %v475
        %v650 = vpack.c.bf16 %v482, %v476
        %v651 = vpack.c.bf16 %v483, %v477
        %v652 = vpack.c.bf16 %v484, %v478
        %v653 = vpack.c.bf16 %v491, %v485
        %v654 = vpack.c.bf16 %v492, %v486
        %v655 = vpack.c.bf16 %v493, %v487
        %v656 = vpack.c.bf16 %v494, %v488
        %v657 = vpack.c.bf16 %v495, %v489
        %v658 = vpack.c.bf16 %v496, %v490
        %v659 = vpack.c.bf16 %v503, %v497
        %v660 = vpack.c.bf16 %v504, %v498
        %v661 = vpack.c.bf16 %v505, %v499
        %v662 = vpack.c.bf16 %v506, %v500
        %v663 = vpack.c.bf16 %v507, %v501
        %v664 = vpack.c.bf16 %v508, %v502
        %v665 = vpack.c.bf16 %v515, %v509
        %v666 = vpack.c.bf16 %v516, %v510
        %v667 = vpack.c.bf16 %v517, %v511
        %v668 = vpack.c.bf16 %v518, %v512
        %v669 = vpack.c.bf16 %v519, %v513
        %v670 = vpack.c.bf16 %v520, %v514
        %v671 = vpack.c.bf16 %v527, %v521
        %v672 = vpack.c.bf16 %v528, %v522
        %v673 = vpack.c.bf16 %v529, %v523
        %v674 = vpack.c.bf16 %v530, %v524
        %v675 = vpack.c.bf16 %v531, %v525
        %v676 = vpack.c.bf16 %v532, %v526
        %v677 = vld [vmem:[%s204] sm:$0xff]
        %v678 = vld [vmem:[%s204 + $0x8] sm:$0xf]
        %v679 = vld [vmem:[%s204 + $0xc] sm:$0xff]
        %v680 = vld [vmem:[%s204 + $0x14] sm:$0xf]
        %v681 = vld [vmem:[%s204 + $0x18] sm:$0xff]
        %v682 = vld [vmem:[%s204 + $0x20] sm:$0xf]
        %v683 = vld [vmem:[%s204 + $0x24] sm:$0xff]
        %v684 = vld [vmem:[%s204 + $0x2c] sm:$0xf]
        %v685 = vld [vmem:[%s204 + $0x30] sm:$0xff]
        %v686 = vld [vmem:[%s204 + $0x38] sm:$0xf]
        %v687 = vld [vmem:[%s204 + $0x3c] sm:$0xff]
        %v688 = vld [vmem:[%s204 + $0x44] sm:$0xf]
        %v689 = vld [vmem:[%s204 + $0x48] sm:$0xff]
        %v690 = vld [vmem:[%s204 + $0x50] sm:$0xf]
        %v691 = vld [vmem:[%s204 + $0x54] sm:$0xff]
        %v692 = vld [vmem:[%s204 + $0x5c] sm:$0xf]
        %v693 = vld [vmem:[%s204 + $0x60] sm:$0xff]
        %v694 = vld [vmem:[%s204 + $0x68] sm:$0xf]
        %v695 = vld [vmem:[%s204 + $0x6c] sm:$0xff]
        %v696 = vld [vmem:[%s204 + $0x74] sm:$0xf]
        %v697 = vld [vmem:[%s204 + $0x78] sm:$0xff]
        %v698 = vld [vmem:[%s204 + $0x80] sm:$0xf]
        %v699 = vld [vmem:[%s204 + $0x84] sm:$0xff]
        %v700 = vld [vmem:[%s204 + $0x8c] sm:$0xf]
        %v701 = vld [vmem:[%s204 + $0x90] sm:$0xff]
        %v702 = vld [vmem:[%s204 + $0x98] sm:$0xf]
        %v703 = vld [vmem:[%s204 + $0x9c] sm:$0xff]
        %v704 = vld [vmem:[%s204 + $0xa4] sm:$0xf]
        %v705 = vld [vmem:[%s204 + $0xa8] sm:$0xff]
        %v706 = vld [vmem:[%s204 + $0xb0] sm:$0xf]
        %v707 = vld [vmem:[%s204 + $0xb4] sm:$0xff]
        %v708 = vld [vmem:[%s204 + $0xbc] sm:$0xf]
        %v709 = vld [vmem:[%s204 + $0xc0] sm:$0xff]
        %v710 = vld [vmem:[%s204 + $0xc8] sm:$0xf]
        %v711 = vld [vmem:[%s204 + $0xcc] sm:$0xff]
        %v712 = vld [vmem:[%s204 + $0xd4] sm:$0xf]
        %v713 = vld [vmem:[%s204 + $0xd8] sm:$0xff]
        %v714 = vld [vmem:[%s204 + $0xe0] sm:$0xf]
        %v715 = vld [vmem:[%s204 + $0xe4] sm:$0xff]
        %v716 = vld [vmem:[%s204 + $0xec] sm:$0xf]
        %v717 = vld [vmem:[%s204 + $0xf0] sm:$0xff]
        %v718 = vld [vmem:[%s204 + $0xf8] sm:$0xf]
        %v719 = vld [vmem:[%s204 + $0xfc] sm:$0xff]
        %v720 = vld [vmem:[%s204 + $0x104] sm:$0xf]
        %v721 = vld [vmem:[%s204 + $0x108] sm:$0xff]
        %v722 = vld [vmem:[%s204 + $0x110] sm:$0xf]
        %v723 = vld [vmem:[%s204 + $0x114] sm:$0xff]
        %v724 = vld [vmem:[%s204 + $0x11c] sm:$0xf]
        %v725 = vld [vmem:[%s204 + $0x120] sm:$0xff]
        %v726 = vld [vmem:[%s204 + $0x128] sm:$0xf]
        %v727 = vld [vmem:[%s204 + $0x12c] sm:$0xff]
        %v728 = vld [vmem:[%s204 + $0x134] sm:$0xf]
        %v729 = vld [vmem:[%s204 + $0x138] sm:$0xff]
        %v730 = vld [vmem:[%s204 + $0x140] sm:$0xf]
        %v731 = vld [vmem:[%s204 + $0x144] sm:$0xff]
        %v732 = vld [vmem:[%s204 + $0x14c] sm:$0xf]
        %v733 = vld [vmem:[%s204 + $0x150] sm:$0xff]
        %v734 = vld [vmem:[%s204 + $0x158] sm:$0xf]
        %v735 = vld [vmem:[%s204 + $0x15c] sm:$0xff]
        %v736 = vld [vmem:[%s204 + $0x164] sm:$0xf]
        %v737 = vld [vmem:[%s204 + $0x168] sm:$0xff]
        %v738 = vld [vmem:[%s204 + $0x170] sm:$0xf]
        %v739 = vld [vmem:[%s204 + $0x174] sm:$0xff]
        %v740 = vld [vmem:[%s204 + $0x17c] sm:$0xf]
        %v741 = vld [vmem:[%s204 + $0x180] sm:$0xff]
        %v742 = vld [vmem:[%s204 + $0x188] sm:$0xf]
        %v743 = vld [vmem:[%s204 + $0x18c] sm:$0xff]
        %v744 = vld [vmem:[%s204 + $0x194] sm:$0xf]
        %v745 = vld [vmem:[%s204 + $0x198] sm:$0xff]
        %v746 = vld [vmem:[%s204 + $0x1a0] sm:$0xf]
        %v747 = vld [vmem:[%s204 + $0x1a4] sm:$0xff]
        %v748 = vld [vmem:[%s204 + $0x1ac] sm:$0xf]
        %v749 = vld [vmem:[%s204 + $0x1b0] sm:$0xff]
        %v750 = vld [vmem:[%s204 + $0x1b8] sm:$0xf]
        %v751 = vld [vmem:[%s204 + $0x1bc] sm:$0xff]
        %v752 = vld [vmem:[%s204 + $0x1c4] sm:$0xf]
        %v753 = vld [vmem:[%s204 + $0x1c8] sm:$0xff]
        %v754 = vld [vmem:[%s204 + $0x1d0] sm:$0xf]
        %v755 = vld [vmem:[%s204 + $0x1d4] sm:$0xff]
        %v756 = vld [vmem:[%s204 + $0x1dc] sm:$0xf]
        %v757 = vld [vmem:[%s204 + $0x1e0] sm:$0xff]
        %v758 = vld [vmem:[%s204 + $0x1e8] sm:$0xf]
        %v759 = vld [vmem:[%s204 + $0x1ec] sm:$0xff]
        %v760 = vld [vmem:[%s204 + $0x1f4] sm:$0xf]
        %v761 = vld [vmem:[%s204 + $0x1f8] sm:$0xff]
        %v762 = vld [vmem:[%s204 + $0x200] sm:$0xf]
        %v763 = vld [vmem:[%s204 + $0x204] sm:$0xff]
        %v764 = vld [vmem:[%s204 + $0x20c] sm:$0xf]
        %v765 = vld [vmem:[%s204 + $0x210] sm:$0xff]
        %v766 = vld [vmem:[%s204 + $0x218] sm:$0xf]
        %v767 = vld [vmem:[%s204 + $0x21c] sm:$0xff]
        %v768 = vld [vmem:[%s204 + $0x224] sm:$0xf]
        %v769 = vld [vmem:[%s204 + $0x228] sm:$0xff]
        %v770 = vld [vmem:[%s204 + $0x230] sm:$0xf]
        %v771 = vld [vmem:[%s204 + $0x234] sm:$0xff]
        %v772 = vld [vmem:[%s204 + $0x23c] sm:$0xf]
        %v773 = vld [vmem:[%s204 + $0x240] sm:$0xff]
        %v774 = vld [vmem:[%s204 + $0x248] sm:$0xf]
        %v775 = vld [vmem:[%s204 + $0x24c] sm:$0xff]
        %v776 = vld [vmem:[%s204 + $0x254] sm:$0xf]
        %v777 = vld [vmem:[%s204 + $0x258] sm:$0xff]
        %v778 = vld [vmem:[%s204 + $0x260] sm:$0xf]
        %v779 = vld [vmem:[%s204 + $0x264] sm:$0xff]
        %v780 = vld [vmem:[%s204 + $0x26c] sm:$0xf]
        %v781 = vld [vmem:[%s204 + $0x270] sm:$0xff]
        %v782 = vld [vmem:[%s204 + $0x278] sm:$0xf]
        %v783 = vld [vmem:[%s204 + $0x27c] sm:$0xff]
        %v784 = vld [vmem:[%s204 + $0x284] sm:$0xf]
        %v785 = vld [vmem:[%s204 + $0x288] sm:$0xff]
        %v786 = vld [vmem:[%s204 + $0x290] sm:$0xf]
        %v787 = vld [vmem:[%s204 + $0x294] sm:$0xff]
        %v788 = vld [vmem:[%s204 + $0x29c] sm:$0xf]
        %v789 = vld [vmem:[%s204 + $0x2a0] sm:$0xff]
        %v790 = vld [vmem:[%s204 + $0x2a8] sm:$0xf]
        %v791 = vld [vmem:[%s204 + $0x2ac] sm:$0xff]
        %v792 = vld [vmem:[%s204 + $0x2b4] sm:$0xf]
        %v793 = vld [vmem:[%s204 + $0x2b8] sm:$0xff]
        %v794 = vld [vmem:[%s204 + $0x2c0] sm:$0xf]
        %v795 = vld [vmem:[%s204 + $0x2c4] sm:$0xff]
        %v796 = vld [vmem:[%s204 + $0x2cc] sm:$0xf]
        %v797 = vld [vmem:[%s204 + $0x2d0] sm:$0xff]
        %v798 = vld [vmem:[%s204 + $0x2d8] sm:$0xf]
        %v799 = vld [vmem:[%s204 + $0x2dc] sm:$0xff]
        %v800 = vld [vmem:[%s204 + $0x2e4] sm:$0xf]
        %v801 = vld [vmem:[%s204 + $0x2e8] sm:$0xff]
        %v802 = vld [vmem:[%s204 + $0x2f0] sm:$0xf]
        %v803 = vld [vmem:[%s204 + $0x2f4] sm:$0xff]
        %v804 = vld [vmem:[%s204 + $0x2fc] sm:$0xf]
        %v805 = vld [vmem:[%s204 + $0x300] sm:$0xff]
        %v806 = vld [vmem:[%s204 + $0x308] sm:$0xf]
        %v807 = vld [vmem:[%s204 + $0x30c] sm:$0xff]
        %v808 = vld [vmem:[%s204 + $0x314] sm:$0xf]
        %v809 = vld [vmem:[%s204 + $0x318] sm:$0xff]
        %v810 = vld [vmem:[%s204 + $0x320] sm:$0xf]
        %v811 = vld [vmem:[%s204 + $0x324] sm:$0xff]
        %v812 = vld [vmem:[%s204 + $0x32c] sm:$0xf]
        %v813 = vld [vmem:[%s204 + $0x330] sm:$0xff]
        %v814 = vld [vmem:[%s204 + $0x338] sm:$0xf]
        %v815 = vld [vmem:[%s204 + $0x33c] sm:$0xff]
        %v816 = vld [vmem:[%s204 + $0x344] sm:$0xf]
        %v817 = vld [vmem:[%s204 + $0x348] sm:$0xff]
        %v818 = vld [vmem:[%s204 + $0x350] sm:$0xf]
        %v819 = vld [vmem:[%s204 + $0x354] sm:$0xff]
        %v820 = vld [vmem:[%s204 + $0x35c] sm:$0xf]
        %v821 = vld [vmem:[%s204 + $0x360] sm:$0xff]
        %v822 = vld [vmem:[%s204 + $0x368] sm:$0xf]
        %v823 = vld [vmem:[%s204 + $0x36c] sm:$0xff]
        %v824 = vld [vmem:[%s204 + $0x374] sm:$0xf]
        %v825 = vld [vmem:[%s204 + $0x378] sm:$0xff]
        %v826 = vld [vmem:[%s204 + $0x380] sm:$0xf]
        %v827 = vld [vmem:[%s204 + $0x384] sm:$0xff]
        %v828 = vld [vmem:[%s204 + $0x38c] sm:$0xf]
        %v829 = vld [vmem:[%s204 + $0x390] sm:$0xff]
        %v830 = vld [vmem:[%s204 + $0x398] sm:$0xf]
        %v831 = vld [vmem:[%s204 + $0x39c] sm:$0xff]
        %v832 = vld [vmem:[%s204 + $0x3a4] sm:$0xf]
        %v833 = vld [vmem:[%s204 + $0x3a8] sm:$0xff]
        %v834 = vld [vmem:[%s204 + $0x3b0] sm:$0xf]
        %v835 = vld [vmem:[%s204 + $0x3b4] sm:$0xff]
        %v836 = vld [vmem:[%s204 + $0x3bc] sm:$0xf]
        %v837 = vld [vmem:[%s204 + $0x3c0] sm:$0xff]
        %v838 = vld [vmem:[%s204 + $0x3c8] sm:$0xf]
        %v839 = vld [vmem:[%s204 + $0x3cc] sm:$0xff]
        %v840 = vld [vmem:[%s204 + $0x3d4] sm:$0xf]
        %v841 = vld [vmem:[%s204 + $0x3d8] sm:$0xff]
        %v842 = vld [vmem:[%s204 + $0x3e0] sm:$0xf]
        %v843 = vld [vmem:[%s204 + $0x3e4] sm:$0xff]
        %v844 = vld [vmem:[%s204 + $0x3ec] sm:$0xf]
        %v845 = vld [vmem:[%s204 + $0x3f0] sm:$0xff]
        %v846 = vld [vmem:[%s204 + $0x3f8] sm:$0xf]
        %v847 = vld [vmem:[%s204 + $0x3fc] sm:$0xff]
        %v848 = vld [vmem:[%s204 + $0x404] sm:$0xf]
        %v849 = vld [vmem:[%s204 + $0x408] sm:$0xff]
        %v850 = vld [vmem:[%s204 + $0x410] sm:$0xf]
        %v851 = vld [vmem:[%s204 + $0x414] sm:$0xff]
        %v852 = vld [vmem:[%s204 + $0x41c] sm:$0xf]
        %v853 = vld [vmem:[%s204 + $0x420] sm:$0xff]
        %v854 = vld [vmem:[%s204 + $0x428] sm:$0xf]
        %v855 = vld [vmem:[%s204 + $0x42c] sm:$0xff]
        %v856 = vld [vmem:[%s204 + $0x434] sm:$0xf]
        %v857 = vld [vmem:[%s204 + $0x438] sm:$0xff]
        %v858 = vld [vmem:[%s204 + $0x440] sm:$0xf]
        %v859 = vld [vmem:[%s204 + $0x444] sm:$0xff]
        %v860 = vld [vmem:[%s204 + $0x44c] sm:$0xf]
        %v861 = vld [vmem:[%s204 + $0x450] sm:$0xff]
        %v862 = vld [vmem:[%s204 + $0x458] sm:$0xf]
        %v863 = vld [vmem:[%s204 + $0x45c] sm:$0xff]
        %v864 = vld [vmem:[%s204 + $0x464] sm:$0xf]
        %v865 = vld [vmem:[%s204 + $0x468] sm:$0xff]
        %v866 = vld [vmem:[%s204 + $0x470] sm:$0xf]
        %v867 = vld [vmem:[%s204 + $0x474] sm:$0xff]
        %v868 = vld [vmem:[%s204 + $0x47c] sm:$0xf]
        %v869 = vld [vmem:[%s213] sm:$0x7]
        %v871 = vlaneseq
        %v872 = vshrl.u32 %v871, 7
        %v873 = vsub.s32 0, %v872
        %v874 = vrot.slane %v869, %v873
        %v875 = vlaneseq
        %v876 = vshrl.u32 %v875, 7
        %v877 = vsub.s32 1, %v876
        %v878 = vrot.slane %v869, %v877
        %v879 = vlaneseq
        %v880 = vshrl.u32 %v879, 7
        %v881 = vsub.s32 2, %v880
        %v882 = vrot.slane %v869, %v881
        %v1078 = vunpack.c.l.b16 %v677
        %v1079 = vunpack.c.h.b16 %v677
        %v1080 = vunpack.c.l.b16 %v678
        %v1081 = vunpack.c.l.b16 %v679
        %v1082 = vunpack.c.h.b16 %v679
        %v1083 = vunpack.c.l.b16 %v680
        %v1084 = vunpack.c.l.b16 %v681
        %v1085 = vunpack.c.h.b16 %v681
        %v1086 = vunpack.c.l.b16 %v682
        %v1087 = vunpack.c.l.b16 %v683
        %v1088 = vunpack.c.h.b16 %v683
        %v1089 = vunpack.c.l.b16 %v684
        %v1090 = vunpack.c.l.b16 %v685
        %v1091 = vunpack.c.h.b16 %v685
        %v1092 = vunpack.c.l.b16 %v686
        %v1093 = vunpack.c.l.b16 %v687
        %v1094 = vunpack.c.h.b16 %v687
        %v1095 = vunpack.c.l.b16 %v688
        %v1096 = vunpack.c.l.b16 %v689
        %v1097 = vunpack.c.h.b16 %v689
        %v1098 = vunpack.c.l.b16 %v690
        %v1099 = vunpack.c.l.b16 %v691
        %v1100 = vunpack.c.h.b16 %v691
        %v1101 = vunpack.c.l.b16 %v692
        %v1102 = vunpack.c.l.b16 %v693
        %v1103 = vunpack.c.h.b16 %v693
        %v1104 = vunpack.c.l.b16 %v694
        %v1105 = vunpack.c.l.b16 %v695
        %v1106 = vunpack.c.h.b16 %v695
        %v1107 = vunpack.c.l.b16 %v696
        %v1108 = vunpack.c.l.b16 %v697
        %v1109 = vunpack.c.h.b16 %v697
        %v1110 = vunpack.c.l.b16 %v698
        %v1111 = vunpack.c.l.b16 %v699
        %v1112 = vunpack.c.h.b16 %v699
        %v1113 = vunpack.c.l.b16 %v700
        %v1114 = vunpack.c.l.b16 %v701
        %v1115 = vunpack.c.h.b16 %v701
        %v1116 = vunpack.c.l.b16 %v702
        %v1117 = vunpack.c.l.b16 %v703
        %v1118 = vunpack.c.h.b16 %v703
        %v1119 = vunpack.c.l.b16 %v704
        %v1120 = vunpack.c.l.b16 %v705
        %v1121 = vunpack.c.h.b16 %v705
        %v1122 = vunpack.c.l.b16 %v706
        %v1123 = vunpack.c.l.b16 %v707
        %v1124 = vunpack.c.h.b16 %v707
        %v1125 = vunpack.c.l.b16 %v708
        %v1126 = vunpack.c.l.b16 %v709
        %v1127 = vunpack.c.h.b16 %v709
        %v1128 = vunpack.c.l.b16 %v710
        %v1129 = vunpack.c.l.b16 %v711
        %v1130 = vunpack.c.h.b16 %v711
        %v1131 = vunpack.c.l.b16 %v712
        %v1132 = vunpack.c.l.b16 %v713
        %v1133 = vunpack.c.h.b16 %v713
        %v1134 = vunpack.c.l.b16 %v714
        %v1135 = vunpack.c.l.b16 %v715
        %v1136 = vunpack.c.h.b16 %v715
        %v1137 = vunpack.c.l.b16 %v716
        %v1138 = vunpack.c.l.b16 %v717
        %v1139 = vunpack.c.h.b16 %v717
        %v1140 = vunpack.c.l.b16 %v718
        %v1141 = vunpack.c.l.b16 %v719
        %v1142 = vunpack.c.h.b16 %v719
        %v1143 = vunpack.c.l.b16 %v720
        %v1144 = vunpack.c.l.b16 %v721
        %v1145 = vunpack.c.h.b16 %v721
        %v1146 = vunpack.c.l.b16 %v722
        %v1147 = vunpack.c.l.b16 %v723
        %v1148 = vunpack.c.h.b16 %v723
        %v1149 = vunpack.c.l.b16 %v724
        %v1150 = vunpack.c.l.b16 %v725
        %v1151 = vunpack.c.h.b16 %v725
        %v1152 = vunpack.c.l.b16 %v726
        %v1153 = vunpack.c.l.b16 %v727
        %v1154 = vunpack.c.h.b16 %v727
        %v1155 = vunpack.c.l.b16 %v728
        %v1156 = vunpack.c.l.b16 %v729
        %v1157 = vunpack.c.h.b16 %v729
        %v1158 = vunpack.c.l.b16 %v730
        %v1159 = vunpack.c.l.b16 %v731
        %v1160 = vunpack.c.h.b16 %v731
        %v1161 = vunpack.c.l.b16 %v732
        %v1162 = vunpack.c.l.b16 %v733
        %v1163 = vunpack.c.h.b16 %v733
        %v1164 = vunpack.c.l.b16 %v734
        %v1165 = vunpack.c.l.b16 %v735
        %v1166 = vunpack.c.h.b16 %v735
        %v1167 = vunpack.c.l.b16 %v736
        %v1168 = vunpack.c.l.b16 %v737
        %v1169 = vunpack.c.h.b16 %v737
        %v1170 = vunpack.c.l.b16 %v738
        %v1171 = vunpack.c.l.b16 %v739
        %v1172 = vunpack.c.h.b16 %v739
        %v1173 = vunpack.c.l.b16 %v740
        %v1174 = vunpack.c.l.b16 %v741
        %v1175 = vunpack.c.h.b16 %v741
        %v1176 = vunpack.c.l.b16 %v742
        %v1177 = vunpack.c.l.b16 %v743
        %v1178 = vunpack.c.h.b16 %v743
        %v1179 = vunpack.c.l.b16 %v744
        %v1180 = vunpack.c.l.b16 %v745
        %v1181 = vunpack.c.h.b16 %v745
        %v1182 = vunpack.c.l.b16 %v746
        %v1183 = vunpack.c.l.b16 %v747
        %v1184 = vunpack.c.h.b16 %v747
        %v1185 = vunpack.c.l.b16 %v748
        %v1186 = vunpack.c.l.b16 %v749
        %v1187 = vunpack.c.h.b16 %v749
        %v1188 = vunpack.c.l.b16 %v750
        %v1189 = vunpack.c.l.b16 %v751
        %v1190 = vunpack.c.h.b16 %v751
        %v1191 = vunpack.c.l.b16 %v752
        %v1192 = vunpack.c.l.b16 %v753
        %v1193 = vunpack.c.h.b16 %v753
        %v1194 = vunpack.c.l.b16 %v754
        %v1195 = vunpack.c.l.b16 %v755
        %v1196 = vunpack.c.h.b16 %v755
        %v1197 = vunpack.c.l.b16 %v756
        %v1198 = vunpack.c.l.b16 %v757
        %v1199 = vunpack.c.h.b16 %v757
        %v1200 = vunpack.c.l.b16 %v758
        %v1201 = vunpack.c.l.b16 %v759
        %v1202 = vunpack.c.h.b16 %v759
        %v1203 = vunpack.c.l.b16 %v760
        %v1204 = vunpack.c.l.b16 %v761
        %v1205 = vunpack.c.h.b16 %v761
        %v1206 = vunpack.c.l.b16 %v762
        %v1207 = vunpack.c.l.b16 %v763
        %v1208 = vunpack.c.h.b16 %v763
        %v1209 = vunpack.c.l.b16 %v764
        %v1210 = vunpack.c.l.b16 %v765
        %v1211 = vunpack.c.h.b16 %v765
        %v1212 = vunpack.c.l.b16 %v766
        %v1213 = vunpack.c.l.b16 %v767
        %v1214 = vunpack.c.h.b16 %v767
        %v1215 = vunpack.c.l.b16 %v768
        %v1216 = vunpack.c.l.b16 %v769
        %v1217 = vunpack.c.h.b16 %v769
        %v1218 = vunpack.c.l.b16 %v770
        %v1219 = vunpack.c.l.b16 %v771
        %v1220 = vunpack.c.h.b16 %v771
        %v1221 = vunpack.c.l.b16 %v772
        %v1222 = vunpack.c.l.b16 %v773
        %v1223 = vunpack.c.h.b16 %v773
        %v1224 = vunpack.c.l.b16 %v774
        %v1225 = vunpack.c.l.b16 %v775
        %v1226 = vunpack.c.h.b16 %v775
        %v1227 = vunpack.c.l.b16 %v776
        %v1228 = vunpack.c.l.b16 %v777
        %v1229 = vunpack.c.h.b16 %v777
        %v1230 = vunpack.c.l.b16 %v778
        %v1231 = vunpack.c.l.b16 %v779
        %v1232 = vunpack.c.h.b16 %v779
        %v1233 = vunpack.c.l.b16 %v780
        %v1234 = vunpack.c.l.b16 %v781
        %v1235 = vunpack.c.h.b16 %v781
        %v1236 = vunpack.c.l.b16 %v782
        %v1237 = vunpack.c.l.b16 %v783
        %v1238 = vunpack.c.h.b16 %v783
        %v1239 = vunpack.c.l.b16 %v784
        %v1240 = vunpack.c.l.b16 %v785
        %v1241 = vunpack.c.h.b16 %v785
        %v1242 = vunpack.c.l.b16 %v786
        %v1243 = vunpack.c.l.b16 %v787
        %v1244 = vunpack.c.h.b16 %v787
        %v1245 = vunpack.c.l.b16 %v788
        %v1246 = vunpack.c.l.b16 %v789
        %v1247 = vunpack.c.h.b16 %v789
        %v1248 = vunpack.c.l.b16 %v790
        %v1249 = vunpack.c.l.b16 %v791
        %v1250 = vunpack.c.h.b16 %v791
        %v1251 = vunpack.c.l.b16 %v792
        %v1252 = vunpack.c.l.b16 %v793
        %v1253 = vunpack.c.h.b16 %v793
        %v1254 = vunpack.c.l.b16 %v794
        %v1255 = vunpack.c.l.b16 %v795
        %v1256 = vunpack.c.h.b16 %v795
        %v1257 = vunpack.c.l.b16 %v796
        %v1258 = vunpack.c.l.b16 %v797
        %v1259 = vunpack.c.h.b16 %v797
        %v1260 = vunpack.c.l.b16 %v798
        %v1261 = vunpack.c.l.b16 %v799
        %v1262 = vunpack.c.h.b16 %v799
        %v1263 = vunpack.c.l.b16 %v800
        %v1264 = vunpack.c.l.b16 %v801
        %v1265 = vunpack.c.h.b16 %v801
        %v1266 = vunpack.c.l.b16 %v802
        %v1267 = vunpack.c.l.b16 %v803
        %v1268 = vunpack.c.h.b16 %v803
        %v1269 = vunpack.c.l.b16 %v804
        %v1270 = vunpack.c.l.b16 %v805
        %v1271 = vunpack.c.h.b16 %v805
        %v1272 = vunpack.c.l.b16 %v806
        %v1273 = vunpack.c.l.b16 %v807
        %v1274 = vunpack.c.h.b16 %v807
        %v1275 = vunpack.c.l.b16 %v808
        %v1276 = vunpack.c.l.b16 %v809
        %v1277 = vunpack.c.h.b16 %v809
        %v1278 = vunpack.c.l.b16 %v810
        %v1279 = vunpack.c.l.b16 %v811
        %v1280 = vunpack.c.h.b16 %v811
        %v1281 = vunpack.c.l.b16 %v812
        %v1282 = vunpack.c.l.b16 %v813
        %v1283 = vunpack.c.h.b16 %v813
        %v1284 = vunpack.c.l.b16 %v814
        %v1285 = vunpack.c.l.b16 %v815
        %v1286 = vunpack.c.h.b16 %v815
        %v1287 = vunpack.c.l.b16 %v816
        %v1288 = vunpack.c.l.b16 %v817
        %v1289 = vunpack.c.h.b16 %v817
        %v1290 = vunpack.c.l.b16 %v818
        %v1291 = vunpack.c.l.b16 %v819
        %v1292 = vunpack.c.h.b16 %v819
        %v1293 = vunpack.c.l.b16 %v820
        %v1294 = vunpack.c.l.b16 %v821
        %v1295 = vunpack.c.h.b16 %v821
        %v1296 = vunpack.c.l.b16 %v822
        %v1297 = vunpack.c.l.b16 %v823
        %v1298 = vunpack.c.h.b16 %v823
        %v1299 = vunpack.c.l.b16 %v824
        %v1300 = vunpack.c.l.b16 %v825
        %v1301 = vunpack.c.h.b16 %v825
        %v1302 = vunpack.c.l.b16 %v826
        %v1303 = vunpack.c.l.b16 %v827
        %v1304 = vunpack.c.h.b16 %v827
        %v1305 = vunpack.c.l.b16 %v828
        %v1306 = vunpack.c.l.b16 %v829
        %v1307 = vunpack.c.h.b16 %v829
        %v1308 = vunpack.c.l.b16 %v830
        %v1309 = vunpack.c.l.b16 %v831
        %v1310 = vunpack.c.h.b16 %v831
        %v1311 = vunpack.c.l.b16 %v832
        %v1312 = vunpack.c.l.b16 %v833
        %v1313 = vunpack.c.h.b16 %v833
        %v1314 = vunpack.c.l.b16 %v834
        %v1315 = vunpack.c.l.b16 %v835
        %v1316 = vunpack.c.h.b16 %v835
        %v1317 = vunpack.c.l.b16 %v836
        %v1318 = vunpack.c.l.b16 %v837
        %v1319 = vunpack.c.h.b16 %v837
        %v1320 = vunpack.c.l.b16 %v838
        %v1321 = vunpack.c.l.b16 %v839
        %v1322 = vunpack.c.h.b16 %v839
        %v1323 = vunpack.c.l.b16 %v840
        %v1324 = vunpack.c.l.b16 %v841
        %v1325 = vunpack.c.h.b16 %v841
        %v1326 = vunpack.c.l.b16 %v842
        %v1327 = vunpack.c.l.b16 %v843
        %v1328 = vunpack.c.h.b16 %v843
        %v1329 = vunpack.c.l.b16 %v844
        %v1330 = vunpack.c.l.b16 %v845
        %v1331 = vunpack.c.h.b16 %v845
        %v1332 = vunpack.c.l.b16 %v846
        %v1333 = vunpack.c.l.b16 %v847
        %v1334 = vunpack.c.h.b16 %v847
        %v1335 = vunpack.c.l.b16 %v848
        %v1336 = vunpack.c.l.b16 %v849
        %v1337 = vunpack.c.h.b16 %v849
        %v1338 = vunpack.c.l.b16 %v850
        %v1339 = vunpack.c.l.b16 %v851
        %v1340 = vunpack.c.h.b16 %v851
        %v1341 = vunpack.c.l.b16 %v852
        %v1342 = vunpack.c.l.b16 %v853
        %v1343 = vunpack.c.h.b16 %v853
        %v1344 = vunpack.c.l.b16 %v854
        %v1345 = vunpack.c.l.b16 %v855
        %v1346 = vunpack.c.h.b16 %v855
        %v1347 = vunpack.c.l.b16 %v856
        %v1348 = vunpack.c.l.b16 %v857
        %v1349 = vunpack.c.h.b16 %v857
        %v1350 = vunpack.c.l.b16 %v858
        %v1351 = vunpack.c.l.b16 %v859
        %v1352 = vunpack.c.h.b16 %v859
        %v1353 = vunpack.c.l.b16 %v860
        %v1354 = vunpack.c.l.b16 %v861
        %v1355 = vunpack.c.h.b16 %v861
        %v1356 = vunpack.c.l.b16 %v862
        %v1357 = vunpack.c.l.b16 %v863
        %v1358 = vunpack.c.h.b16 %v863
        %v1359 = vunpack.c.l.b16 %v864
        %v1360 = vunpack.c.l.b16 %v865
        %v1361 = vunpack.c.h.b16 %v865
        %v1362 = vunpack.c.l.b16 %v866
        %v1363 = vunpack.c.l.b16 %v867
        %v1364 = vunpack.c.h.b16 %v867
        %v1365 = vunpack.c.l.b16 %v868
        %v1366 = vpack.c.b16 %v1081, %v1078
        %v1367 = vpack.c.b16 %v1082, %v1079
        %v1368 = vpack.c.b16 %v1083, %v1080
        %v1369 = vpack.c.b16 %v1087, %v1084
        %v1370 = vpack.c.b16 %v1088, %v1085
        %v1371 = vpack.c.b16 %v1089, %v1086
        %v1372 = vpack.c.b16 %v1093, %v1090
        %v1373 = vpack.c.b16 %v1094, %v1091
        %v1374 = vpack.c.b16 %v1095, %v1092
        %v1375 = vpack.c.b16 %v1099, %v1096
        %v1376 = vpack.c.b16 %v1100, %v1097
        %v1377 = vpack.c.b16 %v1101, %v1098
        %v1378 = vpack.c.b16 %v1105, %v1102
        %v1379 = vpack.c.b16 %v1106, %v1103
        %v1380 = vpack.c.b16 %v1107, %v1104
        %v1381 = vpack.c.b16 %v1111, %v1108
        %v1382 = vpack.c.b16 %v1112, %v1109
        %v1383 = vpack.c.b16 %v1113, %v1110
        %v1384 = vpack.c.b16 %v1117, %v1114
        %v1385 = vpack.c.b16 %v1118, %v1115
        %v1386 = vpack.c.b16 %v1119, %v1116
        %v1387 = vpack.c.b16 %v1123, %v1120
        %v1388 = vpack.c.b16 %v1124, %v1121
        %v1389 = vpack.c.b16 %v1125, %v1122
        %v1390 = vpack.c.b16 %v1129, %v1126
        %v1391 = vpack.c.b16 %v1130, %v1127
        %v1392 = vpack.c.b16 %v1131, %v1128
        %v1393 = vpack.c.b16 %v1135, %v1132
        %v1394 = vpack.c.b16 %v1136, %v1133
        %v1395 = vpack.c.b16 %v1137, %v1134
        %v1396 = vpack.c.b16 %v1141, %v1138
        %v1397 = vpack.c.b16 %v1142, %v1139
        %v1398 = vpack.c.b16 %v1143, %v1140
        %v1399 = vpack.c.b16 %v1147, %v1144
        %v1400 = vpack.c.b16 %v1148, %v1145
        %v1401 = vpack.c.b16 %v1149, %v1146
        %v1402 = vpack.c.b16 %v1153, %v1150
        %v1403 = vpack.c.b16 %v1154, %v1151
        %v1404 = vpack.c.b16 %v1155, %v1152
        %v1405 = vpack.c.b16 %v1159, %v1156
        %v1406 = vpack.c.b16 %v1160, %v1157
        %v1407 = vpack.c.b16 %v1161, %v1158
        %v1408 = vpack.c.b16 %v1165, %v1162
        %v1409 = vpack.c.b16 %v1166, %v1163
        %v1410 = vpack.c.b16 %v1167, %v1164
        %v1411 = vpack.c.b16 %v1171, %v1168
        %v1412 = vpack.c.b16 %v1172, %v1169
        %v1413 = vpack.c.b16 %v1173, %v1170
        %v1414 = vpack.c.b16 %v1177, %v1174
        %v1415 = vpack.c.b16 %v1178, %v1175
        %v1416 = vpack.c.b16 %v1179, %v1176
        %v1417 = vpack.c.b16 %v1183, %v1180
        %v1418 = vpack.c.b16 %v1184, %v1181
        %v1419 = vpack.c.b16 %v1185, %v1182
        %v1420 = vpack.c.b16 %v1189, %v1186
        %v1421 = vpack.c.b16 %v1190, %v1187
        %v1422 = vpack.c.b16 %v1191, %v1188
        %v1423 = vpack.c.b16 %v1195, %v1192
        %v1424 = vpack.c.b16 %v1196, %v1193
        %v1425 = vpack.c.b16 %v1197, %v1194
        %v1426 = vpack.c.b16 %v1201, %v1198
        %v1427 = vpack.c.b16 %v1202, %v1199
        %v1428 = vpack.c.b16 %v1203, %v1200
        %v1429 = vpack.c.b16 %v1207, %v1204
        %v1430 = vpack.c.b16 %v1208, %v1205
        %v1431 = vpack.c.b16 %v1209, %v1206
        %v1432 = vpack.c.b16 %v1213, %v1210
        %v1433 = vpack.c.b16 %v1214, %v1211
        %v1434 = vpack.c.b16 %v1215, %v1212
        %v1435 = vpack.c.b16 %v1219, %v1216
        %v1436 = vpack.c.b16 %v1220, %v1217
        %v1437 = vpack.c.b16 %v1221, %v1218
        %v1438 = vpack.c.b16 %v1225, %v1222
        %v1439 = vpack.c.b16 %v1226, %v1223
        %v1440 = vpack.c.b16 %v1227, %v1224
        %v1441 = vpack.c.b16 %v1231, %v1228
        %v1442 = vpack.c.b16 %v1232, %v1229
        %v1443 = vpack.c.b16 %v1233, %v1230
        %v1444 = vpack.c.b16 %v1237, %v1234
        %v1445 = vpack.c.b16 %v1238, %v1235
        %v1446 = vpack.c.b16 %v1239, %v1236
        %v1447 = vpack.c.b16 %v1243, %v1240
        %v1448 = vpack.c.b16 %v1244, %v1241
        %v1449 = vpack.c.b16 %v1245, %v1242
        %v1450 = vpack.c.b16 %v1249, %v1246
        %v1451 = vpack.c.b16 %v1250, %v1247
        %v1452 = vpack.c.b16 %v1251, %v1248
        %v1453 = vpack.c.b16 %v1255, %v1252
        %v1454 = vpack.c.b16 %v1256, %v1253
        %v1455 = vpack.c.b16 %v1257, %v1254
        %v1456 = vpack.c.b16 %v1261, %v1258
        %v1457 = vpack.c.b16 %v1262, %v1259
        %v1458 = vpack.c.b16 %v1263, %v1260
        %v1459 = vpack.c.b16 %v1267, %v1264
        %v1460 = vpack.c.b16 %v1268, %v1265
        %v1461 = vpack.c.b16 %v1269, %v1266
        %v1462 = vpack.c.b16 %v1273, %v1270
        %v1463 = vpack.c.b16 %v1274, %v1271
        %v1464 = vpack.c.b16 %v1275, %v1272
        %v1465 = vpack.c.b16 %v1279, %v1276
        %v1466 = vpack.c.b16 %v1280, %v1277
        %v1467 = vpack.c.b16 %v1281, %v1278
        %v1468 = vpack.c.b16 %v1285, %v1282
        %v1469 = vpack.c.b16 %v1286, %v1283
        %v1470 = vpack.c.b16 %v1287, %v1284
        %v1471 = vpack.c.b16 %v1291, %v1288
        %v1472 = vpack.c.b16 %v1292, %v1289
        %v1473 = vpack.c.b16 %v1293, %v1290
        %v1474 = vpack.c.b16 %v1297, %v1294
        %v1475 = vpack.c.b16 %v1298, %v1295
        %v1476 = vpack.c.b16 %v1299, %v1296
        %v1477 = vpack.c.b16 %v1303, %v1300
        %v1478 = vpack.c.b16 %v1304, %v1301
        %v1479 = vpack.c.b16 %v1305, %v1302
        %v1480 = vpack.c.b16 %v1309, %v1306
        %v1481 = vpack.c.b16 %v1310, %v1307
        %v1482 = vpack.c.b16 %v1311, %v1308
        %v1483 = vpack.c.b16 %v1315, %v1312
        %v1484 = vpack.c.b16 %v1316, %v1313
        %v1485 = vpack.c.b16 %v1317, %v1314
        %v1486 = vpack.c.b16 %v1321, %v1318
        %v1487 = vpack.c.b16 %v1322, %v1319
        %v1488 = vpack.c.b16 %v1323, %v1320
        %v1489 = vpack.c.b16 %v1327, %v1324
        %v1490 = vpack.c.b16 %v1328, %v1325
        %v1491 = vpack.c.b16 %v1329, %v1326
        %v1492 = vpack.c.b16 %v1333, %v1330
        %v1493 = vpack.c.b16 %v1334, %v1331
        %v1494 = vpack.c.b16 %v1335, %v1332
        %v1495 = vpack.c.b16 %v1339, %v1336
        %v1496 = vpack.c.b16 %v1340, %v1337
        %v1497 = vpack.c.b16 %v1341, %v1338
        %v1498 = vpack.c.b16 %v1345, %v1342
        %v1499 = vpack.c.b16 %v1346, %v1343
        %v1500 = vpack.c.b16 %v1347, %v1344
        %v1501 = vpack.c.b16 %v1351, %v1348
        %v1502 = vpack.c.b16 %v1352, %v1349
        %v1503 = vpack.c.b16 %v1353, %v1350
        %v1504 = vpack.c.b16 %v1357, %v1354
        %v1505 = vpack.c.b16 %v1358, %v1355
        %v1506 = vpack.c.b16 %v1359, %v1356
        %v1507 = vpack.c.b16 %v1363, %v1360
        %v1508 = vpack.c.b16 %v1364, %v1361
        %v1509 = vpack.c.b16 %v1365, %v1362
        %1654 = vmatprep.subr.bf16.mxu0 %v1388
        %1655 = vmatpush1.bf16.msra.mxu0 %v1387
        %1656 = vmatprep.subr.bf16.mxu0 %v1385
        %1657 = vmatpush1.bf16.msra.mxu0 %v1384
        %1658 = vmatprep.subr.bf16.mxu0 %v1382
        %1659 = vmatpush1.bf16.msra.mxu0 %v1381
        %1660 = vmatprep.subr.bf16.mxu0 %v1379
        %1661 = vmatpush1.bf16.msra.mxu0 %v1378
        %1662 = vmatprep.subr.bf16.mxu0 %v1376
        %1663 = vmatpush1.bf16.msra.mxu0 %v1375
        %1664 = vmatprep.subr.bf16.mxu0 %v1373
        %1665 = vmatpush1.bf16.msra.mxu0 %v1372
        %1666 = vmatprep.subr.bf16.mxu0 %v1370
        %1667 = vmatpush1.bf16.msra.mxu0 %v1369
        %1668 = vmatprep.subr.bf16.mxu0 %v1367
        %1669 = vmatpush1.bf16.msra.mxu0 %v1366
        %1670 = vmatprep.subr.bf16.mxu0 %v1412
        %1671 = vmatpush2.bf16.msra.mxu0 %v1411
        %1672 = vmatprep.subr.bf16.mxu0 %v1409
        %1673 = vmatpush2.bf16.msra.mxu0 %v1408
        %1674 = vmatprep.subr.bf16.mxu0 %v1406
        %1675 = vmatpush2.bf16.msra.mxu0 %v1405
        %1676 = vmatprep.subr.bf16.mxu0 %v1403
        %1677 = vmatpush2.bf16.msra.mxu0 %v1402
        %1678 = vmatprep.subr.bf16.mxu0 %v1400
        %1679 = vmatpush2.bf16.msra.mxu0 %v1399
        %1680 = vmatprep.subr.bf16.mxu0 %v1397
        %1681 = vmatpush2.bf16.msra.mxu0 %v1396
        %1682 = vmatprep.subr.bf16.mxu0 %v1394
        %1683 = vmatpush2.bf16.msra.mxu0 %v1393
        %1684 = vmatprep.subr.bf16.mxu0 %v1391
        %1685 = vmatpush2.bf16.msra.mxu0 %v1390
        %1686 = vmatprep.mubr.bf16.mxu0 %v534
        %1687 = vmatmul.mubr.bf16.gmra.mxu0 %v533
        %v1688 = vpop.f32.mrf.mxu0
        %v1689 = vadd.f32 %v874, %v1688
        %v1690 = vpop.f32.mrf.mxu0
        %v1691 = vadd.f32 %v878, %v1690
        %v1692 = vpop.f32.mrf.mxu0
        %v1693 = vadd.f32 %v874, %v1692
        %v1694 = vpop.f32.mrf.mxu0
        %v1695 = vadd.f32 %v878, %v1694
        %1696 = vmatprep.mubr.bf16.mxu0 %v540
        %1697 = vmatmul.mubr.bf16.gmra.mxu0 %v539
        %v1698 = vpop.f32.mrf.mxu0
        %v1699 = vadd.f32 %v874, %v1698
        %v1700 = vpop.f32.mrf.mxu0
        %v1701 = vadd.f32 %v878, %v1700
        %v1702 = vpop.f32.mrf.mxu0
        %v1703 = vadd.f32 %v874, %v1702
        %v1704 = vpop.f32.mrf.mxu0
        %v1705 = vadd.f32 %v878, %v1704
        %1706 = vmatprep.mubr.bf16.mxu0 %v546
        %1707 = vmatmul.mubr.bf16.gmra.mxu0 %v545
        %v1708 = vpop.f32.mrf.mxu0
        %v1709 = vadd.f32 %v874, %v1708
        %v1710 = vpop.f32.mrf.mxu0
        %v1711 = vadd.f32 %v878, %v1710
        %v1712 = vpop.f32.mrf.mxu0
        %v1713 = vadd.f32 %v874, %v1712
        %v1714 = vpop.f32.mrf.mxu0
        %v1715 = vadd.f32 %v878, %v1714
        %1716 = vmatprep.mubr.bf16.mxu0 %v552
        %1717 = vmatmul.mubr.bf16.gmra.mxu0 %v551
        %v1718 = vpop.f32.mrf.mxu0
        %v1719 = vadd.f32 %v874, %v1718
        %v1720 = vpop.f32.mrf.mxu0
        %v1721 = vadd.f32 %v878, %v1720
        %v1722 = vpop.f32.mrf.mxu0
        %v1723 = vadd.f32 %v874, %v1722
        %v1724 = vpop.f32.mrf.mxu0
        %v1725 = vadd.f32 %v878, %v1724
        %1726 = vmatprep.mubr.bf16.mxu0 %v558
        %1727 = vmatmul.mubr.bf16.gmra.mxu0 %v557
        %v1728 = vpop.f32.mrf.mxu0
        %v1729 = vadd.f32 %v874, %v1728
        %v1730 = vpop.f32.mrf.mxu0
        %v1731 = vadd.f32 %v878, %v1730
        %v1732 = vpop.f32.mrf.mxu0
        %v1733 = vadd.f32 %v874, %v1732
        %v1734 = vpop.f32.mrf.mxu0
        %v1735 = vadd.f32 %v878, %v1734
        %1736 = vmatprep.mubr.bf16.mxu0 %v564
        %1737 = vmatmul.mubr.bf16.gmra.mxu0 %v563
        %v1738 = vpop.f32.mrf.mxu0
        %v1739 = vadd.f32 %v874, %v1738
        %v1740 = vpop.f32.mrf.mxu0
        %v1741 = vadd.f32 %v878, %v1740
        %v1742 = vpop.f32.mrf.mxu0
        %v1743 = vadd.f32 %v874, %v1742
        %v1744 = vpop.f32.mrf.mxu0
        %v1745 = vadd.f32 %v878, %v1744
        %1746 = vmatprep.mubr.bf16.mxu0 %v570
        %1747 = vmatmul.mubr.bf16.gmra.mxu0 %v569
        %v1748 = vpop.f32.mrf.mxu0
        %v1749 = vadd.f32 %v874, %v1748
        %v1750 = vpop.f32.mrf.mxu0
        %v1751 = vadd.f32 %v878, %v1750
        %v1752 = vpop.f32.mrf.mxu0
        %v1753 = vadd.f32 %v874, %v1752
        %v1754 = vpop.f32.mrf.mxu0
        %v1755 = vadd.f32 %v878, %v1754
        %1756 = vmatprep.mubr.bf16.mxu0 %v576
        %1757 = vmatmul.mubr.bf16.gmra.mxu0 %v575
        %v1758 = vpop.f32.mrf.mxu0
        %v1759 = vadd.f32 %v874, %v1758
        %v1760 = vpop.f32.mrf.mxu0
        %v1761 = vadd.f32 %v878, %v1760
        %v1762 = vpop.f32.mrf.mxu0
        %v1763 = vadd.f32 %v874, %v1762
        %v1764 = vpop.f32.mrf.mxu0
        %v1765 = vadd.f32 %v878, %v1764
        %1766 = vmatprep.mubr.bf16.mxu0 %v582
        %1767 = vmatmul.mubr.bf16.gmra.mxu0 %v581
        %v1768 = vpop.f32.mrf.mxu0
        %v1769 = vadd.f32 %v874, %v1768
        %v1770 = vpop.f32.mrf.mxu0
        %v1771 = vadd.f32 %v878, %v1770
        %v1772 = vpop.f32.mrf.mxu0
        %v1773 = vadd.f32 %v874, %v1772
        %v1774 = vpop.f32.mrf.mxu0
        %v1775 = vadd.f32 %v878, %v1774
        %1776 = vmatprep.mubr.bf16.mxu0 %v588
        %1777 = vmatmul.mubr.bf16.gmra.mxu0 %v587
        %v1778 = vpop.f32.mrf.mxu0
        %v1779 = vadd.f32 %v874, %v1778
        %v1780 = vpop.f32.mrf.mxu0
        %v1781 = vadd.f32 %v878, %v1780
        %v1782 = vpop.f32.mrf.mxu0
        %v1783 = vadd.f32 %v874, %v1782
        %v1784 = vpop.f32.mrf.mxu0
        %v1785 = vadd.f32 %v878, %v1784
        %1786 = vmatprep.mubr.bf16.mxu0 %v594
        %1787 = vmatmul.mubr.bf16.gmra.mxu0 %v593
        %v1788 = vpop.f32.mrf.mxu0
        %v1789 = vadd.f32 %v874, %v1788
        %v1790 = vpop.f32.mrf.mxu0
        %v1791 = vadd.f32 %v878, %v1790
        %v1792 = vpop.f32.mrf.mxu0
        %v1793 = vadd.f32 %v874, %v1792
        %v1794 = vpop.f32.mrf.mxu0
        %v1795 = vadd.f32 %v878, %v1794
        %1796 = vmatprep.mubr.bf16.mxu0 %v600
        %1797 = vmatmul.mubr.bf16.gmra.mxu0 %v599
        %v1798 = vpop.f32.mrf.mxu0
        %v1799 = vadd.f32 %v874, %v1798
        %v1800 = vpop.f32.mrf.mxu0
        %v1801 = vadd.f32 %v878, %v1800
        %v1802 = vpop.f32.mrf.mxu0
        %v1803 = vadd.f32 %v874, %v1802
        %v1804 = vpop.f32.mrf.mxu0
        %v1805 = vadd.f32 %v878, %v1804
        %1806 = vmatprep.mubr.bf16.mxu0 %v606
        %1807 = vmatmul.mubr.bf16.gmra.mxu0 %v605
        %v1808 = vpop.f32.mrf.mxu0
        %v1809 = vadd.f32 %v874, %v1808
        %v1810 = vpop.f32.mrf.mxu0
        %v1811 = vadd.f32 %v878, %v1810
        %v1812 = vpop.f32.mrf.mxu0
        %v1813 = vadd.f32 %v874, %v1812
        %v1814 = vpop.f32.mrf.mxu0
        %v1815 = vadd.f32 %v878, %v1814
        %1816 = vmatprep.mubr.bf16.mxu0 %v612
        %1817 = vmatmul.mubr.bf16.gmra.mxu0 %v611
        %v1818 = vpop.f32.mrf.mxu0
        %v1819 = vadd.f32 %v874, %v1818
        %v1820 = vpop.f32.mrf.mxu0
        %v1821 = vadd.f32 %v878, %v1820
        %v1822 = vpop.f32.mrf.mxu0
        %v1823 = vadd.f32 %v874, %v1822
        %v1824 = vpop.f32.mrf.mxu0
        %v1825 = vadd.f32 %v878, %v1824
        %1826 = vmatprep.mubr.bf16.mxu0 %v618
        %1827 = vmatmul.mubr.bf16.gmra.mxu0 %v617
        %v1828 = vpop.f32.mrf.mxu0
        %v1829 = vadd.f32 %v874, %v1828
        %v1830 = vpop.f32.mrf.mxu0
        %v1831 = vadd.f32 %v878, %v1830
        %v1832 = vpop.f32.mrf.mxu0
        %v1833 = vadd.f32 %v874, %v1832
        %v1834 = vpop.f32.mrf.mxu0
        %v1835 = vadd.f32 %v878, %v1834
        %1836 = vmatprep.mubr.bf16.mxu0 %v624
        %1837 = vmatmul.mubr.bf16.gmra.mxu0 %v623
        %v1838 = vpop.f32.mrf.mxu0
        %v1839 = vadd.f32 %v874, %v1838
        %v1840 = vpop.f32.mrf.mxu0
        %v1841 = vadd.f32 %v878, %v1840
        %v1842 = vpop.f32.mrf.mxu0
        %v1843 = vadd.f32 %v874, %v1842
        %v1844 = vpop.f32.mrf.mxu0
        %v1845 = vadd.f32 %v878, %v1844
        %1846 = vmatprep.mubr.bf16.mxu0 %v630
        %1847 = vmatmul.mubr.bf16.gmra.mxu0 %v629
        %v1848 = vpop.f32.mrf.mxu0
        %v1849 = vadd.f32 %v874, %v1848
        %v1850 = vpop.f32.mrf.mxu0
        %v1851 = vadd.f32 %v878, %v1850
        %v1852 = vpop.f32.mrf.mxu0
        %v1853 = vadd.f32 %v874, %v1852
        %v1854 = vpop.f32.mrf.mxu0
        %v1855 = vadd.f32 %v878, %v1854
        %1856 = vmatprep.mubr.bf16.mxu0 %v636
        %1857 = vmatmul.mubr.bf16.gmra.mxu0 %v635
        %v1858 = vpop.f32.mrf.mxu0
        %v1859 = vadd.f32 %v874, %v1858
        %v1860 = vpop.f32.mrf.mxu0
        %v1861 = vadd.f32 %v878, %v1860
        %v1862 = vpop.f32.mrf.mxu0
        %v1863 = vadd.f32 %v874, %v1862
        %v1864 = vpop.f32.mrf.mxu0
        %v1865 = vadd.f32 %v878, %v1864
        %1866 = vmatprep.mubr.bf16.mxu0 %v642
        %1867 = vmatmul.mubr.bf16.gmra.mxu0 %v641
        %v1868 = vpop.f32.mrf.mxu0
        %v1869 = vadd.f32 %v874, %v1868
        %v1870 = vpop.f32.mrf.mxu0
        %v1871 = vadd.f32 %v878, %v1870
        %v1872 = vpop.f32.mrf.mxu0
        %v1873 = vadd.f32 %v874, %v1872
        %v1874 = vpop.f32.mrf.mxu0
        %v1875 = vadd.f32 %v878, %v1874
        %1876 = vmatprep.mubr.bf16.mxu0 %v648
        %1877 = vmatmul.mubr.bf16.gmra.mxu0 %v647
        %v1878 = vpop.f32.mrf.mxu0
        %v1879 = vadd.f32 %v874, %v1878
        %v1880 = vpop.f32.mrf.mxu0
        %v1881 = vadd.f32 %v878, %v1880
        %v1882 = vpop.f32.mrf.mxu0
        %v1883 = vadd.f32 %v874, %v1882
        %v1884 = vpop.f32.mrf.mxu0
        %v1885 = vadd.f32 %v878, %v1884
        %1886 = vmatprep.mubr.bf16.mxu0 %v654
        %1887 = vmatmul.mubr.bf16.gmra.mxu0 %v653
        %v1888 = vpop.f32.mrf.mxu0
        %v1889 = vadd.f32 %v874, %v1888
        %v1890 = vpop.f32.mrf.mxu0
        %v1891 = vadd.f32 %v878, %v1890
        %v1892 = vpop.f32.mrf.mxu0
        %v1893 = vadd.f32 %v874, %v1892
        %v1894 = vpop.f32.mrf.mxu0
        %v1895 = vadd.f32 %v878, %v1894
        %1896 = vmatprep.mubr.bf16.mxu0 %v660
        %1897 = vmatmul.mubr.bf16.gmra.mxu0 %v659
        %v1898 = vpop.f32.mrf.mxu0
        %v1899 = vadd.f32 %v874, %v1898
        %v1900 = vpop.f32.mrf.mxu0
        %v1901 = vadd.f32 %v878, %v1900
        %v1902 = vpop.f32.mrf.mxu0
        %v1903 = vadd.f32 %v874, %v1902
        %v1904 = vpop.f32.mrf.mxu0
        %v1905 = vadd.f32 %v878, %v1904
        %1906 = vmatprep.mubr.bf16.mxu0 %v666
        %1907 = vmatmul.mubr.bf16.gmra.mxu0 %v665
        %v1908 = vpop.f32.mrf.mxu0
        %v1909 = vadd.f32 %v874, %v1908
        %v1910 = vpop.f32.mrf.mxu0
        %v1911 = vadd.f32 %v878, %v1910
        %v1912 = vpop.f32.mrf.mxu0
        %v1913 = vadd.f32 %v874, %v1912
        %v1914 = vpop.f32.mrf.mxu0
        %v1915 = vadd.f32 %v878, %v1914
        %1916 = vmatprep.mubr.bf16.mxu0 %v672
        %1917 = vmatmul.mubr.bf16.gmra.mxu0 %v671
        %v1918 = vpop.f32.mrf.mxu0
        %v1919 = vadd.f32 %v874, %v1918
        %v1920 = vpop.f32.mrf.mxu0
        %v1921 = vadd.f32 %v878, %v1920
        %v1922 = vpop.f32.mrf.mxu0
        %v1923 = vadd.f32 %v874, %v1922
        %v1924 = vpop.f32.mrf.mxu0
        %v1925 = vadd.f32 %v878, %v1924
        %1926 = vdwg.mxu0
        %1927 = vmatprep.subr.bf16.mxu0 %v1436
        %1928 = vmatpush1.bf16.msra.mxu0 %v1435
        %1929 = vmatprep.subr.bf16.mxu0 %v1433
        %1930 = vmatpush1.bf16.msra.mxu0 %v1432
        %1931 = vmatprep.subr.bf16.mxu0 %v1430
        %1932 = vmatpush1.bf16.msra.mxu0 %v1429
        %1933 = vmatprep.subr.bf16.mxu0 %v1427
        %1934 = vmatpush1.bf16.msra.mxu0 %v1426
        %1935 = vmatprep.subr.bf16.mxu0 %v1424
        %1936 = vmatpush1.bf16.msra.mxu0 %v1423
        %1937 = vmatprep.subr.bf16.mxu0 %v1421
        %1938 = vmatpush1.bf16.msra.mxu0 %v1420
        %1939 = vmatprep.subr.bf16.mxu0 %v1418
        %1940 = vmatpush1.bf16.msra.mxu0 %v1417
        %1941 = vmatprep.subr.bf16.mxu0 %v1415
        %1942 = vmatpush1.bf16.msra.mxu0 %v1414
        %1943 = vmatprep.subr.bf16.mxu0 %v1460
        %1944 = vmatpush2.bf16.msra.mxu0 %v1459
        %1945 = vmatprep.subr.bf16.mxu0 %v1457
        %1946 = vmatpush2.bf16.msra.mxu0 %v1456
        %1947 = vmatprep.subr.bf16.mxu0 %v1454
        %1948 = vmatpush2.bf16.msra.mxu0 %v1453
        %1949 = vmatprep.subr.bf16.mxu0 %v1451
        %1950 = vmatpush2.bf16.msra.mxu0 %v1450
        %1951 = vmatprep.subr.bf16.mxu0 %v1448
        %1952 = vmatpush2.bf16.msra.mxu0 %v1447
        %1953 = vmatprep.subr.bf16.mxu0 %v1445
        %1954 = vmatpush2.bf16.msra.mxu0 %v1444
        %1955 = vmatprep.subr.bf16.mxu0 %v1442
        %1956 = vmatpush2.bf16.msra.mxu0 %v1441
        %1957 = vmatprep.subr.bf16.mxu0 %v1439
        %1958 = vmatpush2.bf16.msra.mxu0 %v1438
        %1959 = vmatprep.mubr.bf16.mxu0 %v536
        %1960 = vmatmul.mubr.bf16.gmra.mxu0 %v535
        %v1961 = vpop.f32.mrf.mxu0
        %v1962 = vadd.f32 %v1689, %v1961
        %v1963 = vpop.f32.mrf.mxu0
        %v1964 = vadd.f32 %v1691, %v1963
        %v1965 = vpop.f32.mrf.mxu0
        %v1966 = vadd.f32 %v1693, %v1965
        %v1967 = vpop.f32.mrf.mxu0
        %v1968 = vadd.f32 %v1695, %v1967
        %1969 = vmatprep.mubr.bf16.mxu0 %v542
        %1970 = vmatmul.mubr.bf16.gmra.mxu0 %v541
        %v1971 = vpop.f32.mrf.mxu0
        %v1972 = vadd.f32 %v1699, %v1971
        %v1973 = vpop.f32.mrf.mxu0
        %v1974 = vadd.f32 %v1701, %v1973
        %v1975 = vpop.f32.mrf.mxu0
        %v1976 = vadd.f32 %v1703, %v1975
        %v1977 = vpop.f32.mrf.mxu0
        %v1978 = vadd.f32 %v1705, %v1977
        %1979 = vmatprep.mubr.bf16.mxu0 %v548
        %1980 = vmatmul.mubr.bf16.gmra.mxu0 %v547
        %v1981 = vpop.f32.mrf.mxu0
        %v1982 = vadd.f32 %v1709, %v1981
        %v1983 = vpop.f32.mrf.mxu0
        %v1984 = vadd.f32 %v1711, %v1983
        %v1985 = vpop.f32.mrf.mxu0
        %v1986 = vadd.f32 %v1713, %v1985
        %v1987 = vpop.f32.mrf.mxu0
        %v1988 = vadd.f32 %v1715, %v1987
        %1989 = vmatprep.mubr.bf16.mxu0 %v554
        %1990 = vmatmul.mubr.bf16.gmra.mxu0 %v553
        %v1991 = vpop.f32.mrf.mxu0
        %v1992 = vadd.f32 %v1719, %v1991
        %v1993 = vpop.f32.mrf.mxu0
        %v1994 = vadd.f32 %v1721, %v1993
        %v1995 = vpop.f32.mrf.mxu0
        %v1996 = vadd.f32 %v1723, %v1995
        %v1997 = vpop.f32.mrf.mxu0
        %v1998 = vadd.f32 %v1725, %v1997
        %1999 = vmatprep.mubr.bf16.mxu0 %v560
        %2000 = vmatmul.mubr.bf16.gmra.mxu0 %v559
        %v2001 = vpop.f32.mrf.mxu0
        %v2002 = vadd.f32 %v1729, %v2001
        %v2003 = vpop.f32.mrf.mxu0
        %v2004 = vadd.f32 %v1731, %v2003
        %v2005 = vpop.f32.mrf.mxu0
        %v2006 = vadd.f32 %v1733, %v2005
        %v2007 = vpop.f32.mrf.mxu0
        %v2008 = vadd.f32 %v1735, %v2007
        %2009 = vmatprep.mubr.bf16.mxu0 %v566
        %2010 = vmatmul.mubr.bf16.gmra.mxu0 %v565
        %v2011 = vpop.f32.mrf.mxu0
        %v2012 = vadd.f32 %v1739, %v2011
        %v2013 = vpop.f32.mrf.mxu0
        %v2014 = vadd.f32 %v1741, %v2013
        %v2015 = vpop.f32.mrf.mxu0
        %v2016 = vadd.f32 %v1743, %v2015
        %v2017 = vpop.f32.mrf.mxu0
        %v2018 = vadd.f32 %v1745, %v2017
        %2019 = vmatprep.mubr.bf16.mxu0 %v572
        %2020 = vmatmul.mubr.bf16.gmra.mxu0 %v571
        %v2021 = vpop.f32.mrf.mxu0
        %v2022 = vadd.f32 %v1749, %v2021
        %v2023 = vpop.f32.mrf.mxu0
        %v2024 = vadd.f32 %v1751, %v2023
        %v2025 = vpop.f32.mrf.mxu0
        %v2026 = vadd.f32 %v1753, %v2025
        %v2027 = vpop.f32.mrf.mxu0
        %v2028 = vadd.f32 %v1755, %v2027
        %2029 = vmatprep.mubr.bf16.mxu0 %v578
        %2030 = vmatmul.mubr.bf16.gmra.mxu0 %v577
        %v2031 = vpop.f32.mrf.mxu0
        %v2032 = vadd.f32 %v1759, %v2031
        %v2033 = vpop.f32.mrf.mxu0
        %v2034 = vadd.f32 %v1761, %v2033
        %v2035 = vpop.f32.mrf.mxu0
        %v2036 = vadd.f32 %v1763, %v2035
        %v2037 = vpop.f32.mrf.mxu0
        %v2038 = vadd.f32 %v1765, %v2037
        %2039 = vmatprep.mubr.bf16.mxu0 %v584
        %2040 = vmatmul.mubr.bf16.gmra.mxu0 %v583
        %v2041 = vpop.f32.mrf.mxu0
        %v2042 = vadd.f32 %v1769, %v2041
        %v2043 = vpop.f32.mrf.mxu0
        %v2044 = vadd.f32 %v1771, %v2043
        %v2045 = vpop.f32.mrf.mxu0
        %v2046 = vadd.f32 %v1773, %v2045
        %v2047 = vpop.f32.mrf.mxu0
        %v2048 = vadd.f32 %v1775, %v2047
        %2049 = vmatprep.mubr.bf16.mxu0 %v590
        %2050 = vmatmul.mubr.bf16.gmra.mxu0 %v589
        %v2051 = vpop.f32.mrf.mxu0
        %v2052 = vadd.f32 %v1779, %v2051
        %v2053 = vpop.f32.mrf.mxu0
        %v2054 = vadd.f32 %v1781, %v2053
        %v2055 = vpop.f32.mrf.mxu0
        %v2056 = vadd.f32 %v1783, %v2055
        %v2057 = vpop.f32.mrf.mxu0
        %v2058 = vadd.f32 %v1785, %v2057
        %2059 = vmatprep.mubr.bf16.mxu0 %v596
        %2060 = vmatmul.mubr.bf16.gmra.mxu0 %v595
        %v2061 = vpop.f32.mrf.mxu0
        %v2062 = vadd.f32 %v1789, %v2061
        %v2063 = vpop.f32.mrf.mxu0
        %v2064 = vadd.f32 %v1791, %v2063
        %v2065 = vpop.f32.mrf.mxu0
        %v2066 = vadd.f32 %v1793, %v2065
        %v2067 = vpop.f32.mrf.mxu0
        %v2068 = vadd.f32 %v1795, %v2067
        %2069 = vmatprep.mubr.bf16.mxu0 %v602
        %2070 = vmatmul.mubr.bf16.gmra.mxu0 %v601
        %v2071 = vpop.f32.mrf.mxu0
        %v2072 = vadd.f32 %v1799, %v2071
        %v2073 = vpop.f32.mrf.mxu0
        %v2074 = vadd.f32 %v1801, %v2073
        %v2075 = vpop.f32.mrf.mxu0
        %v2076 = vadd.f32 %v1803, %v2075
        %v2077 = vpop.f32.mrf.mxu0
        %v2078 = vadd.f32 %v1805, %v2077
        %2079 = vmatprep.mubr.bf16.mxu0 %v608
        %2080 = vmatmul.mubr.bf16.gmra.mxu0 %v607
        %v2081 = vpop.f32.mrf.mxu0
        %v2082 = vadd.f32 %v1809, %v2081
        %v2083 = vpop.f32.mrf.mxu0
        %v2084 = vadd.f32 %v1811, %v2083
        %v2085 = vpop.f32.mrf.mxu0
        %v2086 = vadd.f32 %v1813, %v2085
        %v2087 = vpop.f32.mrf.mxu0
        %v2088 = vadd.f32 %v1815, %v2087
        %2089 = vmatprep.mubr.bf16.mxu0 %v614
        %2090 = vmatmul.mubr.bf16.gmra.mxu0 %v613
        %v2091 = vpop.f32.mrf.mxu0
        %v2092 = vadd.f32 %v1819, %v2091
        %v2093 = vpop.f32.mrf.mxu0
        %v2094 = vadd.f32 %v1821, %v2093
        %v2095 = vpop.f32.mrf.mxu0
        %v2096 = vadd.f32 %v1823, %v2095
        %v2097 = vpop.f32.mrf.mxu0
        %v2098 = vadd.f32 %v1825, %v2097
        %2099 = vmatprep.mubr.bf16.mxu0 %v620
        %2100 = vmatmul.mubr.bf16.gmra.mxu0 %v619
        %v2101 = vpop.f32.mrf.mxu0
        %v2102 = vadd.f32 %v1829, %v2101
        %v2103 = vpop.f32.mrf.mxu0
        %v2104 = vadd.f32 %v1831, %v2103
        %v2105 = vpop.f32.mrf.mxu0
        %v2106 = vadd.f32 %v1833, %v2105
        %v2107 = vpop.f32.mrf.mxu0
        %v2108 = vadd.f32 %v1835, %v2107
        %2109 = vmatprep.mubr.bf16.mxu0 %v626
        %2110 = vmatmul.mubr.bf16.gmra.mxu0 %v625
        %v2111 = vpop.f32.mrf.mxu0
        %v2112 = vadd.f32 %v1839, %v2111
        %v2113 = vpop.f32.mrf.mxu0
        %v2114 = vadd.f32 %v1841, %v2113
        %v2115 = vpop.f32.mrf.mxu0
        %v2116 = vadd.f32 %v1843, %v2115
        %v2117 = vpop.f32.mrf.mxu0
        %v2118 = vadd.f32 %v1845, %v2117
        %2119 = vmatprep.mubr.bf16.mxu0 %v632
        %2120 = vmatmul.mubr.bf16.gmra.mxu0 %v631
        %v2121 = vpop.f32.mrf.mxu0
        %v2122 = vadd.f32 %v1849, %v2121
        %v2123 = vpop.f32.mrf.mxu0
        %v2124 = vadd.f32 %v1851, %v2123
        %v2125 = vpop.f32.mrf.mxu0
        %v2126 = vadd.f32 %v1853, %v2125
        %v2127 = vpop.f32.mrf.mxu0
        %v2128 = vadd.f32 %v1855, %v2127
        %2129 = vmatprep.mubr.bf16.mxu0 %v638
        %2130 = vmatmul.mubr.bf16.gmra.mxu0 %v637
        %v2131 = vpop.f32.mrf.mxu0
        %v2132 = vadd.f32 %v1859, %v2131
        %v2133 = vpop.f32.mrf.mxu0
        %v2134 = vadd.f32 %v1861, %v2133
        %v2135 = vpop.f32.mrf.mxu0
        %v2136 = vadd.f32 %v1863, %v2135
        %v2137 = vpop.f32.mrf.mxu0
        %v2138 = vadd.f32 %v1865, %v2137
        %2139 = vmatprep.mubr.bf16.mxu0 %v644
        %2140 = vmatmul.mubr.bf16.gmra.mxu0 %v643
        %v2141 = vpop.f32.mrf.mxu0
        %v2142 = vadd.f32 %v1869, %v2141
        %v2143 = vpop.f32.mrf.mxu0
        %v2144 = vadd.f32 %v1871, %v2143
        %v2145 = vpop.f32.mrf.mxu0
        %v2146 = vadd.f32 %v1873, %v2145
        %v2147 = vpop.f32.mrf.mxu0
        %v2148 = vadd.f32 %v1875, %v2147
        %2149 = vmatprep.mubr.bf16.mxu0 %v650
        %2150 = vmatmul.mubr.bf16.gmra.mxu0 %v649
        %v2151 = vpop.f32.mrf.mxu0
        %v2152 = vadd.f32 %v1879, %v2151
        %v2153 = vpop.f32.mrf.mxu0
        %v2154 = vadd.f32 %v1881, %v2153
        %v2155 = vpop.f32.mrf.mxu0
        %v2156 = vadd.f32 %v1883, %v2155
        %v2157 = vpop.f32.mrf.mxu0
        %v2158 = vadd.f32 %v1885, %v2157
        %2159 = vmatprep.mubr.bf16.mxu0 %v656
        %2160 = vmatmul.mubr.bf16.gmra.mxu0 %v655
        %v2161 = vpop.f32.mrf.mxu0
        %v2162 = vadd.f32 %v1889, %v2161
        %v2163 = vpop.f32.mrf.mxu0
        %v2164 = vadd.f32 %v1891, %v2163
        %v2165 = vpop.f32.mrf.mxu0
        %v2166 = vadd.f32 %v1893, %v2165
        %v2167 = vpop.f32.mrf.mxu0
        %v2168 = vadd.f32 %v1895, %v2167
        %2169 = vmatprep.mubr.bf16.mxu0 %v662
        %2170 = vmatmul.mubr.bf16.gmra.mxu0 %v661
        %v2171 = vpop.f32.mrf.mxu0
        %v2172 = vadd.f32 %v1899, %v2171
        %v2173 = vpop.f32.mrf.mxu0
        %v2174 = vadd.f32 %v1901, %v2173
        %v2175 = vpop.f32.mrf.mxu0
        %v2176 = vadd.f32 %v1903, %v2175
        %v2177 = vpop.f32.mrf.mxu0
        %v2178 = vadd.f32 %v1905, %v2177
        %2179 = vmatprep.mubr.bf16.mxu0 %v668
        %2180 = vmatmul.mubr.bf16.gmra.mxu0 %v667
        %v2181 = vpop.f32.mrf.mxu0
        %v2182 = vadd.f32 %v1909, %v2181
        %v2183 = vpop.f32.mrf.mxu0
        %v2184 = vadd.f32 %v1911, %v2183
        %v2185 = vpop.f32.mrf.mxu0
        %v2186 = vadd.f32 %v1913, %v2185
        %v2187 = vpop.f32.mrf.mxu0
        %v2188 = vadd.f32 %v1915, %v2187
        %2189 = vmatprep.mubr.bf16.mxu0 %v674
        %2190 = vmatmul.mubr.bf16.gmra.mxu0 %v673
        %v2191 = vpop.f32.mrf.mxu0
        %v2192 = vadd.f32 %v1919, %v2191
        %v2193 = vpop.f32.mrf.mxu0
        %v2194 = vadd.f32 %v1921, %v2193
        %v2195 = vpop.f32.mrf.mxu0
        %v2196 = vadd.f32 %v1923, %v2195
        %v2197 = vpop.f32.mrf.mxu0
        %v2198 = vadd.f32 %v1925, %v2197
        %2199 = vdwg.mxu0
        %2200 = vmatprep.subr.bf16.mxu0 %v1484
        %2201 = vmatpush1.bf16.msra.mxu0 %v1483
        %2202 = vmatprep.subr.bf16.mxu0 %v1481
        %2203 = vmatpush1.bf16.msra.mxu0 %v1480
        %2204 = vmatprep.subr.bf16.mxu0 %v1478
        %2205 = vmatpush1.bf16.msra.mxu0 %v1477
        %2206 = vmatprep.subr.bf16.mxu0 %v1475
        %2207 = vmatpush1.bf16.msra.mxu0 %v1474
        %2208 = vmatprep.subr.bf16.mxu0 %v1472
        %2209 = vmatpush1.bf16.msra.mxu0 %v1471
        %2210 = vmatprep.subr.bf16.mxu0 %v1469
        %2211 = vmatpush1.bf16.msra.mxu0 %v1468
        %2212 = vmatprep.subr.bf16.mxu0 %v1466
        %2213 = vmatpush1.bf16.msra.mxu0 %v1465
        %2214 = vmatprep.subr.bf16.mxu0 %v1463
        %2215 = vmatpush1.bf16.msra.mxu0 %v1462
        %2216 = vmatprep.subr.bf16.mxu0 %v1508
        %2217 = vmatpush2.bf16.msra.mxu0 %v1507
        %2218 = vmatprep.subr.bf16.mxu0 %v1505
        %2219 = vmatpush2.bf16.msra.mxu0 %v1504
        %2220 = vmatprep.subr.bf16.mxu0 %v1502
        %2221 = vmatpush2.bf16.msra.mxu0 %v1501
        %2222 = vmatprep.subr.bf16.mxu0 %v1499
        %2223 = vmatpush2.bf16.msra.mxu0 %v1498
        %2224 = vmatprep.subr.bf16.mxu0 %v1496
        %2225 = vmatpush2.bf16.msra.mxu0 %v1495
        %2226 = vmatprep.subr.bf16.mxu0 %v1493
        %2227 = vmatpush2.bf16.msra.mxu0 %v1492
        %2228 = vmatprep.subr.bf16.mxu0 %v1490
        %2229 = vmatpush2.bf16.msra.mxu0 %v1489
        %2230 = vmatprep.subr.bf16.mxu0 %v1487
        %2231 = vmatpush2.bf16.msra.mxu0 %v1486
        %2232 = vmatprep.mubr.bf16.mxu0 %v538
        %2233 = vmatmul.mubr.bf16.gmra.mxu0 %v537
        %v2234 = vpop.f32.mrf.mxu0
        %v2235 = vadd.f32 %v1962, %v2234
        %v2236 = vpop.f32.mrf.mxu0
        %v2237 = vadd.f32 %v1964, %v2236
        %v2238 = vpop.f32.mrf.mxu0
        %v2239 = vadd.f32 %v1966, %v2238
        %v2240 = vpop.f32.mrf.mxu0
        %v2241 = vadd.f32 %v1968, %v2240
        %2242 = vmatprep.mubr.bf16.mxu0 %v544
        %2243 = vmatmul.mubr.bf16.gmra.mxu0 %v543
        %v2244 = vpop.f32.mrf.mxu0
        %v2245 = vadd.f32 %v1972, %v2244
        %v2246 = vpop.f32.mrf.mxu0
        %v2247 = vadd.f32 %v1974, %v2246
        %v2248 = vpop.f32.mrf.mxu0
        %v2249 = vadd.f32 %v1976, %v2248
        %v2250 = vpop.f32.mrf.mxu0
        %v2251 = vadd.f32 %v1978, %v2250
        %2252 = vmatprep.mubr.bf16.mxu0 %v550
        %2253 = vmatmul.mubr.bf16.gmra.mxu0 %v549
        %v2254 = vpop.f32.mrf.mxu0
        %v2255 = vadd.f32 %v1982, %v2254
        %v2256 = vpop.f32.mrf.mxu0
        %v2257 = vadd.f32 %v1984, %v2256
        %v2258 = vpop.f32.mrf.mxu0
        %v2259 = vadd.f32 %v1986, %v2258
        %v2260 = vpop.f32.mrf.mxu0
        %v2261 = vadd.f32 %v1988, %v2260
        %2262 = vmatprep.mubr.bf16.mxu0 %v556
        %2263 = vmatmul.mubr.bf16.gmra.mxu0 %v555
        %v2264 = vpop.f32.mrf.mxu0
        %v2265 = vadd.f32 %v1992, %v2264
        %v2266 = vpop.f32.mrf.mxu0
        %v2267 = vadd.f32 %v1994, %v2266
        %v2268 = vpop.f32.mrf.mxu0
        %v2269 = vadd.f32 %v1996, %v2268
        %v2270 = vpop.f32.mrf.mxu0
        %v2271 = vadd.f32 %v1998, %v2270
        %2272 = vmatprep.mubr.bf16.mxu0 %v562
        %2273 = vmatmul.mubr.bf16.gmra.mxu0 %v561
        %v2274 = vpop.f32.mrf.mxu0
        %v2275 = vadd.f32 %v2002, %v2274
        %v2276 = vpop.f32.mrf.mxu0
        %v2277 = vadd.f32 %v2004, %v2276
        %v2278 = vpop.f32.mrf.mxu0
        %v2279 = vadd.f32 %v2006, %v2278
        %v2280 = vpop.f32.mrf.mxu0
        %v2281 = vadd.f32 %v2008, %v2280
        %2282 = vmatprep.mubr.bf16.mxu0 %v568
        %2283 = vmatmul.mubr.bf16.gmra.mxu0 %v567
        %v2284 = vpop.f32.mrf.mxu0
        %v2285 = vadd.f32 %v2012, %v2284
        %v2286 = vpop.f32.mrf.mxu0
        %v2287 = vadd.f32 %v2014, %v2286
        %v2288 = vpop.f32.mrf.mxu0
        %v2289 = vadd.f32 %v2016, %v2288
        %v2290 = vpop.f32.mrf.mxu0
        %v2291 = vadd.f32 %v2018, %v2290
        %2292 = vmatprep.mubr.bf16.mxu0 %v574
        %2293 = vmatmul.mubr.bf16.gmra.mxu0 %v573
        %v2294 = vpop.f32.mrf.mxu0
        %v2295 = vadd.f32 %v2022, %v2294
        %v2296 = vpop.f32.mrf.mxu0
        %v2297 = vadd.f32 %v2024, %v2296
        %v2298 = vpop.f32.mrf.mxu0
        %v2299 = vadd.f32 %v2026, %v2298
        %v2300 = vpop.f32.mrf.mxu0
        %v2301 = vadd.f32 %v2028, %v2300
        %2302 = vmatprep.mubr.bf16.mxu0 %v580
        %2303 = vmatmul.mubr.bf16.gmra.mxu0 %v579
        %v2304 = vpop.f32.mrf.mxu0
        %v2305 = vadd.f32 %v2032, %v2304
        %v2306 = vpop.f32.mrf.mxu0
        %v2307 = vadd.f32 %v2034, %v2306
        %v2308 = vpop.f32.mrf.mxu0
        %v2309 = vadd.f32 %v2036, %v2308
        %v2310 = vpop.f32.mrf.mxu0
        %v2311 = vadd.f32 %v2038, %v2310
        %2312 = vmatprep.mubr.bf16.mxu0 %v586
        %2313 = vmatmul.mubr.bf16.gmra.mxu0 %v585
        %v2314 = vpop.f32.mrf.mxu0
        %v2315 = vadd.f32 %v2042, %v2314
        %v2316 = vpop.f32.mrf.mxu0
        %v2317 = vadd.f32 %v2044, %v2316
        %v2318 = vpop.f32.mrf.mxu0
        %v2319 = vadd.f32 %v2046, %v2318
        %v2320 = vpop.f32.mrf.mxu0
        %v2321 = vadd.f32 %v2048, %v2320
        %2322 = vmatprep.mubr.bf16.mxu0 %v592
        %2323 = vmatmul.mubr.bf16.gmra.mxu0 %v591
        %v2324 = vpop.f32.mrf.mxu0
        %v2325 = vadd.f32 %v2052, %v2324
        %v2326 = vpop.f32.mrf.mxu0
        %v2327 = vadd.f32 %v2054, %v2326
        %v2328 = vpop.f32.mrf.mxu0
        %v2329 = vadd.f32 %v2056, %v2328
        %v2330 = vpop.f32.mrf.mxu0
        %v2331 = vadd.f32 %v2058, %v2330
        %2332 = vmatprep.mubr.bf16.mxu0 %v598
        %2333 = vmatmul.mubr.bf16.gmra.mxu0 %v597
        %v2334 = vpop.f32.mrf.mxu0
        %v2335 = vadd.f32 %v2062, %v2334
        %v2336 = vpop.f32.mrf.mxu0
        %v2337 = vadd.f32 %v2064, %v2336
        %v2338 = vpop.f32.mrf.mxu0
        %v2339 = vadd.f32 %v2066, %v2338
        %v2340 = vpop.f32.mrf.mxu0
        %v2341 = vadd.f32 %v2068, %v2340
        %2342 = vmatprep.mubr.bf16.mxu0 %v604
        %2343 = vmatmul.mubr.bf16.gmra.mxu0 %v603
        %v2344 = vpop.f32.mrf.mxu0
        %v2345 = vadd.f32 %v2072, %v2344
        %v2346 = vpop.f32.mrf.mxu0
        %v2347 = vadd.f32 %v2074, %v2346
        %v2348 = vpop.f32.mrf.mxu0
        %v2349 = vadd.f32 %v2076, %v2348
        %v2350 = vpop.f32.mrf.mxu0
        %v2351 = vadd.f32 %v2078, %v2350
        %2352 = vmatprep.mubr.bf16.mxu0 %v610
        %2353 = vmatmul.mubr.bf16.gmra.mxu0 %v609
        %v2354 = vpop.f32.mrf.mxu0
        %v2355 = vadd.f32 %v2082, %v2354
        %v2356 = vpop.f32.mrf.mxu0
        %v2357 = vadd.f32 %v2084, %v2356
        %v2358 = vpop.f32.mrf.mxu0
        %v2359 = vadd.f32 %v2086, %v2358
        %v2360 = vpop.f32.mrf.mxu0
        %v2361 = vadd.f32 %v2088, %v2360
        %2362 = vmatprep.mubr.bf16.mxu0 %v616
        %2363 = vmatmul.mubr.bf16.gmra.mxu0 %v615
        %v2364 = vpop.f32.mrf.mxu0
        %v2365 = vadd.f32 %v2092, %v2364
        %v2366 = vpop.f32.mrf.mxu0
        %v2367 = vadd.f32 %v2094, %v2366
        %v2368 = vpop.f32.mrf.mxu0
        %v2369 = vadd.f32 %v2096, %v2368
        %v2370 = vpop.f32.mrf.mxu0
        %v2371 = vadd.f32 %v2098, %v2370
        %2372 = vmatprep.mubr.bf16.mxu0 %v622
        %2373 = vmatmul.mubr.bf16.gmra.mxu0 %v621
        %v2374 = vpop.f32.mrf.mxu0
        %v2375 = vadd.f32 %v2102, %v2374
        %v2376 = vpop.f32.mrf.mxu0
        %v2377 = vadd.f32 %v2104, %v2376
        %v2378 = vpop.f32.mrf.mxu0
        %v2379 = vadd.f32 %v2106, %v2378
        %v2380 = vpop.f32.mrf.mxu0
        %v2381 = vadd.f32 %v2108, %v2380
        %2382 = vmatprep.mubr.bf16.mxu0 %v628
        %2383 = vmatmul.mubr.bf16.gmra.mxu0 %v627
        %v2384 = vpop.f32.mrf.mxu0
        %v2385 = vadd.f32 %v2112, %v2384
        %v2386 = vpop.f32.mrf.mxu0
        %v2387 = vadd.f32 %v2114, %v2386
        %v2388 = vpop.f32.mrf.mxu0
        %v2389 = vadd.f32 %v2116, %v2388
        %v2390 = vpop.f32.mrf.mxu0
        %v2391 = vadd.f32 %v2118, %v2390
        %2392 = vmatprep.mubr.bf16.mxu0 %v634
        %2393 = vmatmul.mubr.bf16.gmra.mxu0 %v633
        %v2394 = vpop.f32.mrf.mxu0
        %v2395 = vadd.f32 %v2122, %v2394
        %v2396 = vpop.f32.mrf.mxu0
        %v2397 = vadd.f32 %v2124, %v2396
        %v2398 = vpop.f32.mrf.mxu0
        %v2399 = vadd.f32 %v2126, %v2398
        %v2400 = vpop.f32.mrf.mxu0
        %v2401 = vadd.f32 %v2128, %v2400
        %2402 = vmatprep.mubr.bf16.mxu0 %v640
        %2403 = vmatmul.mubr.bf16.gmra.mxu0 %v639
        %v2404 = vpop.f32.mrf.mxu0
        %v2405 = vadd.f32 %v2132, %v2404
        %v2406 = vpop.f32.mrf.mxu0
        %v2407 = vadd.f32 %v2134, %v2406
        %v2408 = vpop.f32.mrf.mxu0
        %v2409 = vadd.f32 %v2136, %v2408
        %v2410 = vpop.f32.mrf.mxu0
        %v2411 = vadd.f32 %v2138, %v2410
        %2412 = vmatprep.mubr.bf16.mxu0 %v646
        %2413 = vmatmul.mubr.bf16.gmra.mxu0 %v645
        %v2414 = vpop.f32.mrf.mxu0
        %v2415 = vadd.f32 %v2142, %v2414
        %v2416 = vpop.f32.mrf.mxu0
        %v2417 = vadd.f32 %v2144, %v2416
        %v2418 = vpop.f32.mrf.mxu0
        %v2419 = vadd.f32 %v2146, %v2418
        %v2420 = vpop.f32.mrf.mxu0
        %v2421 = vadd.f32 %v2148, %v2420
        %2422 = vmatprep.mubr.bf16.mxu0 %v652
        %2423 = vmatmul.mubr.bf16.gmra.mxu0 %v651
        %v2424 = vpop.f32.mrf.mxu0
        %v2425 = vadd.f32 %v2152, %v2424
        %v2426 = vpop.f32.mrf.mxu0
        %v2427 = vadd.f32 %v2154, %v2426
        %v2428 = vpop.f32.mrf.mxu0
        %v2429 = vadd.f32 %v2156, %v2428
        %v2430 = vpop.f32.mrf.mxu0
        %v2431 = vadd.f32 %v2158, %v2430
        %2432 = vmatprep.mubr.bf16.mxu0 %v658
        %2433 = vmatmul.mubr.bf16.gmra.mxu0 %v657
        %v2434 = vpop.f32.mrf.mxu0
        %v2435 = vadd.f32 %v2162, %v2434
        %v2436 = vpop.f32.mrf.mxu0
        %v2437 = vadd.f32 %v2164, %v2436
        %v2438 = vpop.f32.mrf.mxu0
        %v2439 = vadd.f32 %v2166, %v2438
        %v2440 = vpop.f32.mrf.mxu0
        %v2441 = vadd.f32 %v2168, %v2440
        %2442 = vmatprep.mubr.bf16.mxu0 %v664
        %2443 = vmatmul.mubr.bf16.gmra.mxu0 %v663
        %v2444 = vpop.f32.mrf.mxu0
        %v2445 = vadd.f32 %v2172, %v2444
        %v2446 = vpop.f32.mrf.mxu0
        %v2447 = vadd.f32 %v2174, %v2446
        %v2448 = vpop.f32.mrf.mxu0
        %v2449 = vadd.f32 %v2176, %v2448
        %v2450 = vpop.f32.mrf.mxu0
        %v2451 = vadd.f32 %v2178, %v2450
        %2452 = vmatprep.mubr.bf16.mxu0 %v670
        %2453 = vmatmul.mubr.bf16.gmra.mxu0 %v669
        %v2454 = vpop.f32.mrf.mxu0
        %v2455 = vadd.f32 %v2182, %v2454
        %v2456 = vpop.f32.mrf.mxu0
        %v2457 = vadd.f32 %v2184, %v2456
        %v2458 = vpop.f32.mrf.mxu0
        %v2459 = vadd.f32 %v2186, %v2458
        %v2460 = vpop.f32.mrf.mxu0
        %v2461 = vadd.f32 %v2188, %v2460
        %2462 = vmatprep.mubr.bf16.mxu0 %v676
        %2463 = vmatmul.mubr.bf16.gmra.mxu0 %v675
        %v2464 = vpop.f32.mrf.mxu0
        %v2465 = vadd.f32 %v2192, %v2464
        %v2466 = vpop.f32.mrf.mxu0
        %v2467 = vadd.f32 %v2194, %v2466
        %v2468 = vpop.f32.mrf.mxu0
        %v2469 = vadd.f32 %v2196, %v2468
        %v2470 = vpop.f32.mrf.mxu0
        %v2471 = vadd.f32 %v2198, %v2470
        %2472 = vdwg.mxu0
        %2473 = vmatprep.subr.bf16.mxu0 0
        %2474 = vmatpush1.bf16.msra.mxu0 %v1389
        %2475 = vmatprep.subr.bf16.mxu0 0
        %2476 = vmatpush1.bf16.msra.mxu0 %v1386
        %2477 = vmatprep.subr.bf16.mxu0 0
        %2478 = vmatpush1.bf16.msra.mxu0 %v1383
        %2479 = vmatprep.subr.bf16.mxu0 0
        %2480 = vmatpush1.bf16.msra.mxu0 %v1380
        %2481 = vmatprep.subr.bf16.mxu0 0
        %2482 = vmatpush1.bf16.msra.mxu0 %v1377
        %2483 = vmatprep.subr.bf16.mxu0 0
        %2484 = vmatpush1.bf16.msra.mxu0 %v1374
        %2485 = vmatprep.subr.bf16.mxu0 0
        %2486 = vmatpush1.bf16.msra.mxu0 %v1371
        %2487 = vmatprep.subr.bf16.mxu0 0
        %2488 = vmatpush1.bf16.msra.mxu0 %v1368
        %2489 = vmatprep.subr.bf16.mxu0 0
        %2490 = vmatpush2.bf16.msra.mxu0 %v1413
        %2491 = vmatprep.subr.bf16.mxu0 0
        %2492 = vmatpush2.bf16.msra.mxu0 %v1410
        %2493 = vmatprep.subr.bf16.mxu0 0
        %2494 = vmatpush2.bf16.msra.mxu0 %v1407
        %2495 = vmatprep.subr.bf16.mxu0 0
        %2496 = vmatpush2.bf16.msra.mxu0 %v1404
        %2497 = vmatprep.subr.bf16.mxu0 0
        %2498 = vmatpush2.bf16.msra.mxu0 %v1401
        %2499 = vmatprep.subr.bf16.mxu0 0
        %2500 = vmatpush2.bf16.msra.mxu0 %v1398
        %2501 = vmatprep.subr.bf16.mxu0 0
        %2502 = vmatpush2.bf16.msra.mxu0 %v1395
        %2503 = vmatprep.subr.bf16.mxu0 0
        %2504 = vmatpush2.bf16.msra.mxu0 %v1392
        %2505 = vmatprep.mubr.bf16.mxu0 %v534
        %2506 = vmatmul.mubr.bf16.gmra.mxu0 %v533
        %v2507 = vpop.f32.mrf.mxu0
        %v2508 = vadd.f32 %v882, %v2507
        %v2509 = vpop.f32.mrf.mxu0
        %v2510 = vpop.f32.mrf.mxu0
        %v2511 = vadd.f32 %v882, %v2510
        %v2512 = vpop.f32.mrf.mxu0
        %2513 = vmatprep.mubr.bf16.mxu0 %v540
        %2514 = vmatmul.mubr.bf16.gmra.mxu0 %v539
        %v2515 = vpop.f32.mrf.mxu0
        %v2516 = vadd.f32 %v882, %v2515
        %v2517 = vpop.f32.mrf.mxu0
        %v2518 = vpop.f32.mrf.mxu0
        %v2519 = vadd.f32 %v882, %v2518
        %v2520 = vpop.f32.mrf.mxu0
        %2521 = vmatprep.mubr.bf16.mxu0 %v546
        %2522 = vmatmul.mubr.bf16.gmra.mxu0 %v545
        %v2523 = vpop.f32.mrf.mxu0
        %v2524 = vadd.f32 %v882, %v2523
        %v2525 = vpop.f32.mrf.mxu0
        %v2526 = vpop.f32.mrf.mxu0
        %v2527 = vadd.f32 %v882, %v2526
        %v2528 = vpop.f32.mrf.mxu0
        %2529 = vmatprep.mubr.bf16.mxu0 %v552
        %2530 = vmatmul.mubr.bf16.gmra.mxu0 %v551
        %v2531 = vpop.f32.mrf.mxu0
        %v2532 = vadd.f32 %v882, %v2531
        %v2533 = vpop.f32.mrf.mxu0
        %v2534 = vpop.f32.mrf.mxu0
        %v2535 = vadd.f32 %v882, %v2534
        %v2536 = vpop.f32.mrf.mxu0
        %2537 = vmatprep.mubr.bf16.mxu0 %v558
        %2538 = vmatmul.mubr.bf16.gmra.mxu0 %v557
        %v2539 = vpop.f32.mrf.mxu0
        %v2540 = vadd.f32 %v882, %v2539
        %v2541 = vpop.f32.mrf.mxu0
        %v2542 = vpop.f32.mrf.mxu0
        %v2543 = vadd.f32 %v882, %v2542
        %v2544 = vpop.f32.mrf.mxu0
        %2545 = vmatprep.mubr.bf16.mxu0 %v564
        %2546 = vmatmul.mubr.bf16.gmra.mxu0 %v563
        %v2547 = vpop.f32.mrf.mxu0
        %v2548 = vadd.f32 %v882, %v2547
        %v2549 = vpop.f32.mrf.mxu0
        %v2550 = vpop.f32.mrf.mxu0
        %v2551 = vadd.f32 %v882, %v2550
        %v2552 = vpop.f32.mrf.mxu0
        %2553 = vmatprep.mubr.bf16.mxu0 %v570
        %2554 = vmatmul.mubr.bf16.gmra.mxu0 %v569
        %v2555 = vpop.f32.mrf.mxu0
        %v2556 = vadd.f32 %v882, %v2555
        %v2557 = vpop.f32.mrf.mxu0
        %v2558 = vpop.f32.mrf.mxu0
        %v2559 = vadd.f32 %v882, %v2558
        %v2560 = vpop.f32.mrf.mxu0
        %2561 = vmatprep.mubr.bf16.mxu0 %v576
        %2562 = vmatmul.mubr.bf16.gmra.mxu0 %v575
        %v2563 = vpop.f32.mrf.mxu0
        %v2564 = vadd.f32 %v882, %v2563
        %v2565 = vpop.f32.mrf.mxu0
        %v2566 = vpop.f32.mrf.mxu0
        %v2567 = vadd.f32 %v882, %v2566
        %v2568 = vpop.f32.mrf.mxu0
        %2569 = vmatprep.mubr.bf16.mxu0 %v582
        %2570 = vmatmul.mubr.bf16.gmra.mxu0 %v581
        %v2571 = vpop.f32.mrf.mxu0
        %v2572 = vadd.f32 %v882, %v2571
        %v2573 = vpop.f32.mrf.mxu0
        %v2574 = vpop.f32.mrf.mxu0
        %v2575 = vadd.f32 %v882, %v2574
        %v2576 = vpop.f32.mrf.mxu0
        %2577 = vmatprep.mubr.bf16.mxu0 %v588
        %2578 = vmatmul.mubr.bf16.gmra.mxu0 %v587
        %v2579 = vpop.f32.mrf.mxu0
        %v2580 = vadd.f32 %v882, %v2579
        %v2581 = vpop.f32.mrf.mxu0
        %v2582 = vpop.f32.mrf.mxu0
        %v2583 = vadd.f32 %v882, %v2582
        %v2584 = vpop.f32.mrf.mxu0
        %2585 = vmatprep.mubr.bf16.mxu0 %v594
        %2586 = vmatmul.mubr.bf16.gmra.mxu0 %v593
        %v2587 = vpop.f32.mrf.mxu0
        %v2588 = vadd.f32 %v882, %v2587
        %v2589 = vpop.f32.mrf.mxu0
        %v2590 = vpop.f32.mrf.mxu0
        %v2591 = vadd.f32 %v882, %v2590
        %v2592 = vpop.f32.mrf.mxu0
        %2593 = vmatprep.mubr.bf16.mxu0 %v600
        %2594 = vmatmul.mubr.bf16.gmra.mxu0 %v599
        %v2595 = vpop.f32.mrf.mxu0
        %v2596 = vadd.f32 %v882, %v2595
        %v2597 = vpop.f32.mrf.mxu0
        %v2598 = vpop.f32.mrf.mxu0
        %v2599 = vadd.f32 %v882, %v2598
        %v2600 = vpop.f32.mrf.mxu0
        %2601 = vmatprep.mubr.bf16.mxu0 %v606
        %2602 = vmatmul.mubr.bf16.gmra.mxu0 %v605
        %v2603 = vpop.f32.mrf.mxu0
        %v2604 = vadd.f32 %v882, %v2603
        %v2605 = vpop.f32.mrf.mxu0
        %v2606 = vpop.f32.mrf.mxu0
        %v2607 = vadd.f32 %v882, %v2606
        %v2608 = vpop.f32.mrf.mxu0
        %2609 = vmatprep.mubr.bf16.mxu0 %v612
        %2610 = vmatmul.mubr.bf16.gmra.mxu0 %v611
        %v2611 = vpop.f32.mrf.mxu0
        %v2612 = vadd.f32 %v882, %v2611
        %v2613 = vpop.f32.mrf.mxu0
        %v2614 = vpop.f32.mrf.mxu0
        %v2615 = vadd.f32 %v882, %v2614
        %v2616 = vpop.f32.mrf.mxu0
        %2617 = vmatprep.mubr.bf16.mxu0 %v618
        %2618 = vmatmul.mubr.bf16.gmra.mxu0 %v617
        %v2619 = vpop.f32.mrf.mxu0
        %v2620 = vadd.f32 %v882, %v2619
        %v2621 = vpop.f32.mrf.mxu0
        %v2622 = vpop.f32.mrf.mxu0
        %v2623 = vadd.f32 %v882, %v2622
        %v2624 = vpop.f32.mrf.mxu0
        %2625 = vmatprep.mubr.bf16.mxu0 %v624
        %2626 = vmatmul.mubr.bf16.gmra.mxu0 %v623
        %v2627 = vpop.f32.mrf.mxu0
        %v2628 = vadd.f32 %v882, %v2627
        %v2629 = vpop.f32.mrf.mxu0
        %v2630 = vpop.f32.mrf.mxu0
        %v2631 = vadd.f32 %v882, %v2630
        %v2632 = vpop.f32.mrf.mxu0
        %2633 = vmatprep.mubr.bf16.mxu0 %v630
        %2634 = vmatmul.mubr.bf16.gmra.mxu0 %v629
        %v2635 = vpop.f32.mrf.mxu0
        %v2636 = vadd.f32 %v882, %v2635
        %v2637 = vpop.f32.mrf.mxu0
        %v2638 = vpop.f32.mrf.mxu0
        %v2639 = vadd.f32 %v882, %v2638
        %v2640 = vpop.f32.mrf.mxu0
        %2641 = vmatprep.mubr.bf16.mxu0 %v636
        %2642 = vmatmul.mubr.bf16.gmra.mxu0 %v635
        %v2643 = vpop.f32.mrf.mxu0
        %v2644 = vadd.f32 %v882, %v2643
        %v2645 = vpop.f32.mrf.mxu0
        %v2646 = vpop.f32.mrf.mxu0
        %v2647 = vadd.f32 %v882, %v2646
        %v2648 = vpop.f32.mrf.mxu0
        %2649 = vmatprep.mubr.bf16.mxu0 %v642
        %2650 = vmatmul.mubr.bf16.gmra.mxu0 %v641
        %v2651 = vpop.f32.mrf.mxu0
        %v2652 = vadd.f32 %v882, %v2651
        %v2653 = vpop.f32.mrf.mxu0
        %v2654 = vpop.f32.mrf.mxu0
        %v2655 = vadd.f32 %v882, %v2654
        %v2656 = vpop.f32.mrf.mxu0
        %2657 = vmatprep.mubr.bf16.mxu0 %v648
        %2658 = vmatmul.mubr.bf16.gmra.mxu0 %v647
        %v2659 = vpop.f32.mrf.mxu0
        %v2660 = vadd.f32 %v882, %v2659
        %v2661 = vpop.f32.mrf.mxu0
        %v2662 = vpop.f32.mrf.mxu0
        %v2663 = vadd.f32 %v882, %v2662
        %v2664 = vpop.f32.mrf.mxu0
        %2665 = vmatprep.mubr.bf16.mxu0 %v654
        %2666 = vmatmul.mubr.bf16.gmra.mxu0 %v653
        %v2667 = vpop.f32.mrf.mxu0
        %v2668 = vadd.f32 %v882, %v2667
        %v2669 = vpop.f32.mrf.mxu0
        %v2670 = vpop.f32.mrf.mxu0
        %v2671 = vadd.f32 %v882, %v2670
        %v2672 = vpop.f32.mrf.mxu0
        %2673 = vmatprep.mubr.bf16.mxu0 %v660
        %2674 = vmatmul.mubr.bf16.gmra.mxu0 %v659
        %v2675 = vpop.f32.mrf.mxu0
        %v2676 = vadd.f32 %v882, %v2675
        %v2677 = vpop.f32.mrf.mxu0
        %v2678 = vpop.f32.mrf.mxu0
        %v2679 = vadd.f32 %v882, %v2678
        %v2680 = vpop.f32.mrf.mxu0
        %2681 = vmatprep.mubr.bf16.mxu0 %v666
        %2682 = vmatmul.mubr.bf16.gmra.mxu0 %v665
        %v2683 = vpop.f32.mrf.mxu0
        %v2684 = vadd.f32 %v882, %v2683
        %v2685 = vpop.f32.mrf.mxu0
        %v2686 = vpop.f32.mrf.mxu0
        %v2687 = vadd.f32 %v882, %v2686
        %v2688 = vpop.f32.mrf.mxu0
        %2689 = vmatprep.mubr.bf16.mxu0 %v672
        %2690 = vmatmul.mubr.bf16.gmra.mxu0 %v671
        %v2691 = vpop.f32.mrf.mxu0
        %v2692 = vadd.f32 %v882, %v2691
        %v2693 = vpop.f32.mrf.mxu0
        %v2694 = vpop.f32.mrf.mxu0
        %v2695 = vadd.f32 %v882, %v2694
        %v2696 = vpop.f32.mrf.mxu0
        %2697 = vdwg.mxu0
        %2698 = vmatprep.subr.bf16.mxu0 0
        %2699 = vmatpush1.bf16.msra.mxu0 %v1437
        %2700 = vmatprep.subr.bf16.mxu0 0
        %2701 = vmatpush1.bf16.msra.mxu0 %v1434
        %2702 = vmatprep.subr.bf16.mxu0 0
        %2703 = vmatpush1.bf16.msra.mxu0 %v1431
        %2704 = vmatprep.subr.bf16.mxu0 0
        %2705 = vmatpush1.bf16.msra.mxu0 %v1428
        %2706 = vmatprep.subr.bf16.mxu0 0
        %2707 = vmatpush1.bf16.msra.mxu0 %v1425
        %2708 = vmatprep.subr.bf16.mxu0 0
        %2709 = vmatpush1.bf16.msra.mxu0 %v1422
        %2710 = vmatprep.subr.bf16.mxu0 0
        %2711 = vmatpush1.bf16.msra.mxu0 %v1419
        %2712 = vmatprep.subr.bf16.mxu0 0
        %2713 = vmatpush1.bf16.msra.mxu0 %v1416
        %2714 = vmatprep.subr.bf16.mxu0 0
        %2715 = vmatpush2.bf16.msra.mxu0 %v1461
        %2716 = vmatprep.subr.bf16.mxu0 0
        %2717 = vmatpush2.bf16.msra.mxu0 %v1458
        %2718 = vmatprep.subr.bf16.mxu0 0
        %2719 = vmatpush2.bf16.msra.mxu0 %v1455
        %2720 = vmatprep.subr.bf16.mxu0 0
        %2721 = vmatpush2.bf16.msra.mxu0 %v1452
        %2722 = vmatprep.subr.bf16.mxu0 0
        %2723 = vmatpush2.bf16.msra.mxu0 %v1449
        %2724 = vmatprep.subr.bf16.mxu0 0
        %2725 = vmatpush2.bf16.msra.mxu0 %v1446
        %2726 = vmatprep.subr.bf16.mxu0 0
        %2727 = vmatpush2.bf16.msra.mxu0 %v1443
        %2728 = vmatprep.subr.bf16.mxu0 0
        %2729 = vmatpush2.bf16.msra.mxu0 %v1440
        %2730 = vmatprep.mubr.bf16.mxu0 %v536
        %2731 = vmatmul.mubr.bf16.gmra.mxu0 %v535
        %v2732 = vpop.f32.mrf.mxu0
        %v2733 = vadd.f32 %v2508, %v2732
        %v2734 = vpop.f32.mrf.mxu0
        %v2735 = vpop.f32.mrf.mxu0
        %v2736 = vadd.f32 %v2511, %v2735
        %v2737 = vpop.f32.mrf.mxu0
        %2738 = vmatprep.mubr.bf16.mxu0 %v542
        %2739 = vmatmul.mubr.bf16.gmra.mxu0 %v541
        %v2740 = vpop.f32.mrf.mxu0
        %v2741 = vadd.f32 %v2516, %v2740
        %v2742 = vpop.f32.mrf.mxu0
        %v2743 = vpop.f32.mrf.mxu0
        %v2744 = vadd.f32 %v2519, %v2743
        %v2745 = vpop.f32.mrf.mxu0
        %2746 = vmatprep.mubr.bf16.mxu0 %v548
        %2747 = vmatmul.mubr.bf16.gmra.mxu0 %v547
        %v2748 = vpop.f32.mrf.mxu0
        %v2749 = vadd.f32 %v2524, %v2748
        %v2750 = vpop.f32.mrf.mxu0
        %v2751 = vpop.f32.mrf.mxu0
        %v2752 = vadd.f32 %v2527, %v2751
        %v2753 = vpop.f32.mrf.mxu0
        %2754 = vmatprep.mubr.bf16.mxu0 %v554
        %2755 = vmatmul.mubr.bf16.gmra.mxu0 %v553
        %v2756 = vpop.f32.mrf.mxu0
        %v2757 = vadd.f32 %v2532, %v2756
        %v2758 = vpop.f32.mrf.mxu0
        %v2759 = vpop.f32.mrf.mxu0
        %v2760 = vadd.f32 %v2535, %v2759
        %v2761 = vpop.f32.mrf.mxu0
        %2762 = vmatprep.mubr.bf16.mxu0 %v560
        %2763 = vmatmul.mubr.bf16.gmra.mxu0 %v559
        %v2764 = vpop.f32.mrf.mxu0
        %v2765 = vadd.f32 %v2540, %v2764
        %v2766 = vpop.f32.mrf.mxu0
        %v2767 = vpop.f32.mrf.mxu0
        %v2768 = vadd.f32 %v2543, %v2767
        %v2769 = vpop.f32.mrf.mxu0
        %2770 = vmatprep.mubr.bf16.mxu0 %v566
        %2771 = vmatmul.mubr.bf16.gmra.mxu0 %v565
        %v2772 = vpop.f32.mrf.mxu0
        %v2773 = vadd.f32 %v2548, %v2772
        %v2774 = vpop.f32.mrf.mxu0
        %v2775 = vpop.f32.mrf.mxu0
        %v2776 = vadd.f32 %v2551, %v2775
        %v2777 = vpop.f32.mrf.mxu0
        %2778 = vmatprep.mubr.bf16.mxu0 %v572
        %2779 = vmatmul.mubr.bf16.gmra.mxu0 %v571
        %v2780 = vpop.f32.mrf.mxu0
        %v2781 = vadd.f32 %v2556, %v2780
        %v2782 = vpop.f32.mrf.mxu0
        %v2783 = vpop.f32.mrf.mxu0
        %v2784 = vadd.f32 %v2559, %v2783
        %v2785 = vpop.f32.mrf.mxu0
        %2786 = vmatprep.mubr.bf16.mxu0 %v578
        %2787 = vmatmul.mubr.bf16.gmra.mxu0 %v577
        %v2788 = vpop.f32.mrf.mxu0
        %v2789 = vadd.f32 %v2564, %v2788
        %v2790 = vpop.f32.mrf.mxu0
        %v2791 = vpop.f32.mrf.mxu0
        %v2792 = vadd.f32 %v2567, %v2791
        %v2793 = vpop.f32.mrf.mxu0
        %2794 = vmatprep.mubr.bf16.mxu0 %v584
        %2795 = vmatmul.mubr.bf16.gmra.mxu0 %v583
        %v2796 = vpop.f32.mrf.mxu0
        %v2797 = vadd.f32 %v2572, %v2796
        %v2798 = vpop.f32.mrf.mxu0
        %v2799 = vpop.f32.mrf.mxu0
        %v2800 = vadd.f32 %v2575, %v2799
        %v2801 = vpop.f32.mrf.mxu0
        %2802 = vmatprep.mubr.bf16.mxu0 %v590
        %2803 = vmatmul.mubr.bf16.gmra.mxu0 %v589
        %v2804 = vpop.f32.mrf.mxu0
        %v2805 = vadd.f32 %v2580, %v2804
        %v2806 = vpop.f32.mrf.mxu0
        %v2807 = vpop.f32.mrf.mxu0
        %v2808 = vadd.f32 %v2583, %v2807
        %v2809 = vpop.f32.mrf.mxu0
        %2810 = vmatprep.mubr.bf16.mxu0 %v596
        %2811 = vmatmul.mubr.bf16.gmra.mxu0 %v595
        %v2812 = vpop.f32.mrf.mxu0
        %v2813 = vadd.f32 %v2588, %v2812
        %v2814 = vpop.f32.mrf.mxu0
        %v2815 = vpop.f32.mrf.mxu0
        %v2816 = vadd.f32 %v2591, %v2815
        %v2817 = vpop.f32.mrf.mxu0
        %2818 = vmatprep.mubr.bf16.mxu0 %v602
        %2819 = vmatmul.mubr.bf16.gmra.mxu0 %v601
        %v2820 = vpop.f32.mrf.mxu0
        %v2821 = vadd.f32 %v2596, %v2820
        %v2822 = vpop.f32.mrf.mxu0
        %v2823 = vpop.f32.mrf.mxu0
        %v2824 = vadd.f32 %v2599, %v2823
        %v2825 = vpop.f32.mrf.mxu0
        %2826 = vmatprep.mubr.bf16.mxu0 %v608
        %2827 = vmatmul.mubr.bf16.gmra.mxu0 %v607
        %v2828 = vpop.f32.mrf.mxu0
        %v2829 = vadd.f32 %v2604, %v2828
        %v2830 = vpop.f32.mrf.mxu0
        %v2831 = vpop.f32.mrf.mxu0
        %v2832 = vadd.f32 %v2607, %v2831
        %v2833 = vpop.f32.mrf.mxu0
        %2834 = vmatprep.mubr.bf16.mxu0 %v614
        %2835 = vmatmul.mubr.bf16.gmra.mxu0 %v613
        %v2836 = vpop.f32.mrf.mxu0
        %v2837 = vadd.f32 %v2612, %v2836
        %v2838 = vpop.f32.mrf.mxu0
        %v2839 = vpop.f32.mrf.mxu0
        %v2840 = vadd.f32 %v2615, %v2839
        %v2841 = vpop.f32.mrf.mxu0
        %2842 = vmatprep.mubr.bf16.mxu0 %v620
        %2843 = vmatmul.mubr.bf16.gmra.mxu0 %v619
        %v2844 = vpop.f32.mrf.mxu0
        %v2845 = vadd.f32 %v2620, %v2844
        %v2846 = vpop.f32.mrf.mxu0
        %v2847 = vpop.f32.mrf.mxu0
        %v2848 = vadd.f32 %v2623, %v2847
        %v2849 = vpop.f32.mrf.mxu0
        %2850 = vmatprep.mubr.bf16.mxu0 %v626
        %2851 = vmatmul.mubr.bf16.gmra.mxu0 %v625
        %v2852 = vpop.f32.mrf.mxu0
        %v2853 = vadd.f32 %v2628, %v2852
        %v2854 = vpop.f32.mrf.mxu0
        %v2855 = vpop.f32.mrf.mxu0
        %v2856 = vadd.f32 %v2631, %v2855
        %v2857 = vpop.f32.mrf.mxu0
        %2858 = vmatprep.mubr.bf16.mxu0 %v632
        %2859 = vmatmul.mubr.bf16.gmra.mxu0 %v631
        %v2860 = vpop.f32.mrf.mxu0
        %v2861 = vadd.f32 %v2636, %v2860
        %v2862 = vpop.f32.mrf.mxu0
        %v2863 = vpop.f32.mrf.mxu0
        %v2864 = vadd.f32 %v2639, %v2863
        %v2865 = vpop.f32.mrf.mxu0
        %2866 = vmatprep.mubr.bf16.mxu0 %v638
        %2867 = vmatmul.mubr.bf16.gmra.mxu0 %v637
        %v2868 = vpop.f32.mrf.mxu0
        %v2869 = vadd.f32 %v2644, %v2868
        %v2870 = vpop.f32.mrf.mxu0
        %v2871 = vpop.f32.mrf.mxu0
        %v2872 = vadd.f32 %v2647, %v2871
        %v2873 = vpop.f32.mrf.mxu0
        %2874 = vmatprep.mubr.bf16.mxu0 %v644
        %2875 = vmatmul.mubr.bf16.gmra.mxu0 %v643
        %v2876 = vpop.f32.mrf.mxu0
        %v2877 = vadd.f32 %v2652, %v2876
        %v2878 = vpop.f32.mrf.mxu0
        %v2879 = vpop.f32.mrf.mxu0
        %v2880 = vadd.f32 %v2655, %v2879
        %v2881 = vpop.f32.mrf.mxu0
        %2882 = vmatprep.mubr.bf16.mxu0 %v650
        %2883 = vmatmul.mubr.bf16.gmra.mxu0 %v649
        %v2884 = vpop.f32.mrf.mxu0
        %v2885 = vadd.f32 %v2660, %v2884
        %v2886 = vpop.f32.mrf.mxu0
        %v2887 = vpop.f32.mrf.mxu0
        %v2888 = vadd.f32 %v2663, %v2887
        %v2889 = vpop.f32.mrf.mxu0
        %2890 = vmatprep.mubr.bf16.mxu0 %v656
        %2891 = vmatmul.mubr.bf16.gmra.mxu0 %v655
        %v2892 = vpop.f32.mrf.mxu0
        %v2893 = vadd.f32 %v2668, %v2892
        %v2894 = vpop.f32.mrf.mxu0
        %v2895 = vpop.f32.mrf.mxu0
        %v2896 = vadd.f32 %v2671, %v2895
        %v2897 = vpop.f32.mrf.mxu0
        %2898 = vmatprep.mubr.bf16.mxu0 %v662
        %2899 = vmatmul.mubr.bf16.gmra.mxu0 %v661
        %v2900 = vpop.f32.mrf.mxu0
        %v2901 = vadd.f32 %v2676, %v2900
        %v2902 = vpop.f32.mrf.mxu0
        %v2903 = vpop.f32.mrf.mxu0
        %v2904 = vadd.f32 %v2679, %v2903
        %v2905 = vpop.f32.mrf.mxu0
        %2906 = vmatprep.mubr.bf16.mxu0 %v668
        %2907 = vmatmul.mubr.bf16.gmra.mxu0 %v667
        %v2908 = vpop.f32.mrf.mxu0
        %v2909 = vadd.f32 %v2684, %v2908
        %v2910 = vpop.f32.mrf.mxu0
        %v2911 = vpop.f32.mrf.mxu0
        %v2912 = vadd.f32 %v2687, %v2911
        %v2913 = vpop.f32.mrf.mxu0
        %2914 = vmatprep.mubr.bf16.mxu0 %v674
        %2915 = vmatmul.mubr.bf16.gmra.mxu0 %v673
        %v2916 = vpop.f32.mrf.mxu0
        %v2917 = vadd.f32 %v2692, %v2916
        %v2918 = vpop.f32.mrf.mxu0
        %v2919 = vpop.f32.mrf.mxu0
        %v2920 = vadd.f32 %v2695, %v2919
        %v2921 = vpop.f32.mrf.mxu0
        %2922 = vdwg.mxu0
        %2923 = vmatprep.subr.bf16.mxu0 0
        %2924 = vmatpush1.bf16.msra.mxu0 %v1485
        %2925 = vmatprep.subr.bf16.mxu0 0
        %2926 = vmatpush1.bf16.msra.mxu0 %v1482
        %2927 = vmatprep.subr.bf16.mxu0 0
        %2928 = vmatpush1.bf16.msra.mxu0 %v1479
        %2929 = vmatprep.subr.bf16.mxu0 0
        %2930 = vmatpush1.bf16.msra.mxu0 %v1476
        %2931 = vmatprep.subr.bf16.mxu0 0
        %2932 = vmatpush1.bf16.msra.mxu0 %v1473
        %2933 = vmatprep.subr.bf16.mxu0 0
        %2934 = vmatpush1.bf16.msra.mxu0 %v1470
        %2935 = vmatprep.subr.bf16.mxu0 0
        %2936 = vmatpush1.bf16.msra.mxu0 %v1467
        %2937 = vmatprep.subr.bf16.mxu0 0
        %2938 = vmatpush1.bf16.msra.mxu0 %v1464
        %2939 = vmatprep.subr.bf16.mxu0 0
        %2940 = vmatpush2.bf16.msra.mxu0 %v1509
        %2941 = vmatprep.subr.bf16.mxu0 0
        %2942 = vmatpush2.bf16.msra.mxu0 %v1506
        %2943 = vmatprep.subr.bf16.mxu0 0
        %2944 = vmatpush2.bf16.msra.mxu0 %v1503
        %2945 = vmatprep.subr.bf16.mxu0 0
        %2946 = vmatpush2.bf16.msra.mxu0 %v1500
        %2947 = vmatprep.subr.bf16.mxu0 0
        %2948 = vmatpush2.bf16.msra.mxu0 %v1497
        %2949 = vmatprep.subr.bf16.mxu0 0
        %2950 = vmatpush2.bf16.msra.mxu0 %v1494
        %2951 = vmatprep.subr.bf16.mxu0 0
        %2952 = vmatpush2.bf16.msra.mxu0 %v1491
        %2953 = vmatprep.subr.bf16.mxu0 0
        %2954 = vmatpush2.bf16.msra.mxu0 %v1488
        %2955 = vmatprep.mubr.bf16.mxu0 %v538
        %2956 = vmatmul.mubr.bf16.gmra.mxu0 %v537
        %v2957 = vpop.f32.mrf.mxu0
        %v2958 = vadd.f32 %v2733, %v2957
        %v2959 = vpop.f32.mrf.mxu0
        %v2960 = vpop.f32.mrf.mxu0
        %v2961 = vadd.f32 %v2736, %v2960
        %v2962 = vpop.f32.mrf.mxu0
        %2963 = vmatprep.mubr.bf16.mxu0 %v544
        %2964 = vmatmul.mubr.bf16.gmra.mxu0 %v543
        %v2965 = vpop.f32.mrf.mxu0
        %v2966 = vadd.f32 %v2741, %v2965
        %v2967 = vpop.f32.mrf.mxu0
        %v2968 = vpop.f32.mrf.mxu0
        %v2969 = vadd.f32 %v2744, %v2968
        %v2970 = vpop.f32.mrf.mxu0
        %2971 = vmatprep.mubr.bf16.mxu0 %v550
        %2972 = vmatmul.mubr.bf16.gmra.mxu0 %v549
        %v2973 = vpop.f32.mrf.mxu0
        %v2974 = vadd.f32 %v2749, %v2973
        %v2975 = vpop.f32.mrf.mxu0
        %v2976 = vpop.f32.mrf.mxu0
        %v2977 = vadd.f32 %v2752, %v2976
        %v2978 = vpop.f32.mrf.mxu0
        %2979 = vmatprep.mubr.bf16.mxu0 %v556
        %2980 = vmatmul.mubr.bf16.gmra.mxu0 %v555
        %v2981 = vpop.f32.mrf.mxu0
        %v2982 = vadd.f32 %v2757, %v2981
        %v2983 = vpop.f32.mrf.mxu0
        %v2984 = vpop.f32.mrf.mxu0
        %v2985 = vadd.f32 %v2760, %v2984
        %v2986 = vpop.f32.mrf.mxu0
        %2987 = vmatprep.mubr.bf16.mxu0 %v562
        %2988 = vmatmul.mubr.bf16.gmra.mxu0 %v561
        %v2989 = vpop.f32.mrf.mxu0
        %v2990 = vadd.f32 %v2765, %v2989
        %v2991 = vpop.f32.mrf.mxu0
        %v2992 = vpop.f32.mrf.mxu0
        %v2993 = vadd.f32 %v2768, %v2992
        %v2994 = vpop.f32.mrf.mxu0
        %2995 = vmatprep.mubr.bf16.mxu0 %v568
        %2996 = vmatmul.mubr.bf16.gmra.mxu0 %v567
        %v2997 = vpop.f32.mrf.mxu0
        %v2998 = vadd.f32 %v2773, %v2997
        %v2999 = vpop.f32.mrf.mxu0
        %v3000 = vpop.f32.mrf.mxu0
        %v3001 = vadd.f32 %v2776, %v3000
        %v3002 = vpop.f32.mrf.mxu0
        %3003 = vmatprep.mubr.bf16.mxu0 %v574
        %3004 = vmatmul.mubr.bf16.gmra.mxu0 %v573
        %v3005 = vpop.f32.mrf.mxu0
        %v3006 = vadd.f32 %v2781, %v3005
        %v3007 = vpop.f32.mrf.mxu0
        %v3008 = vpop.f32.mrf.mxu0
        %v3009 = vadd.f32 %v2784, %v3008
        %v3010 = vpop.f32.mrf.mxu0
        %3011 = vmatprep.mubr.bf16.mxu0 %v580
        %3012 = vmatmul.mubr.bf16.gmra.mxu0 %v579
        %v3013 = vpop.f32.mrf.mxu0
        %v3014 = vadd.f32 %v2789, %v3013
        %v3015 = vpop.f32.mrf.mxu0
        %v3016 = vpop.f32.mrf.mxu0
        %v3017 = vadd.f32 %v2792, %v3016
        %v3018 = vpop.f32.mrf.mxu0
        %3019 = vmatprep.mubr.bf16.mxu0 %v586
        %3020 = vmatmul.mubr.bf16.gmra.mxu0 %v585
        %v3021 = vpop.f32.mrf.mxu0
        %v3022 = vadd.f32 %v2797, %v3021
        %v3023 = vpop.f32.mrf.mxu0
        %v3024 = vpop.f32.mrf.mxu0
        %v3025 = vadd.f32 %v2800, %v3024
        %v3026 = vpop.f32.mrf.mxu0
        %3027 = vmatprep.mubr.bf16.mxu0 %v592
        %3028 = vmatmul.mubr.bf16.gmra.mxu0 %v591
        %v3029 = vpop.f32.mrf.mxu0
        %v3030 = vadd.f32 %v2805, %v3029
        %v3031 = vpop.f32.mrf.mxu0
        %v3032 = vpop.f32.mrf.mxu0
        %v3033 = vadd.f32 %v2808, %v3032
        %v3034 = vpop.f32.mrf.mxu0
        %3035 = vmatprep.mubr.bf16.mxu0 %v598
        %3036 = vmatmul.mubr.bf16.gmra.mxu0 %v597
        %v3037 = vpop.f32.mrf.mxu0
        %v3038 = vadd.f32 %v2813, %v3037
        %v3039 = vpop.f32.mrf.mxu0
        %v3040 = vpop.f32.mrf.mxu0
        %v3041 = vadd.f32 %v2816, %v3040
        %v3042 = vpop.f32.mrf.mxu0
        %3043 = vmatprep.mubr.bf16.mxu0 %v604
        %3044 = vmatmul.mubr.bf16.gmra.mxu0 %v603
        %v3045 = vpop.f32.mrf.mxu0
        %v3046 = vadd.f32 %v2821, %v3045
        %v3047 = vpop.f32.mrf.mxu0
        %v3048 = vpop.f32.mrf.mxu0
        %v3049 = vadd.f32 %v2824, %v3048
        %v3050 = vpop.f32.mrf.mxu0
        %3051 = vmatprep.mubr.bf16.mxu0 %v610
        %3052 = vmatmul.mubr.bf16.gmra.mxu0 %v609
        %v3053 = vpop.f32.mrf.mxu0
        %v3054 = vadd.f32 %v2829, %v3053
        %v3055 = vpop.f32.mrf.mxu0
        %v3056 = vpop.f32.mrf.mxu0
        %v3057 = vadd.f32 %v2832, %v3056
        %v3058 = vpop.f32.mrf.mxu0
        %3059 = vmatprep.mubr.bf16.mxu0 %v616
        %3060 = vmatmul.mubr.bf16.gmra.mxu0 %v615
        %v3061 = vpop.f32.mrf.mxu0
        %v3062 = vadd.f32 %v2837, %v3061
        %v3063 = vpop.f32.mrf.mxu0
        %v3064 = vpop.f32.mrf.mxu0
        %v3065 = vadd.f32 %v2840, %v3064
        %v3066 = vpop.f32.mrf.mxu0
        %3067 = vmatprep.mubr.bf16.mxu0 %v622
        %3068 = vmatmul.mubr.bf16.gmra.mxu0 %v621
        %v3069 = vpop.f32.mrf.mxu0
        %v3070 = vadd.f32 %v2845, %v3069
        %v3071 = vpop.f32.mrf.mxu0
        %v3072 = vpop.f32.mrf.mxu0
        %v3073 = vadd.f32 %v2848, %v3072
        %v3074 = vpop.f32.mrf.mxu0
        %3075 = vmatprep.mubr.bf16.mxu0 %v628
        %3076 = vmatmul.mubr.bf16.gmra.mxu0 %v627
        %v3077 = vpop.f32.mrf.mxu0
        %v3078 = vadd.f32 %v2853, %v3077
        %v3079 = vpop.f32.mrf.mxu0
        %v3080 = vpop.f32.mrf.mxu0
        %v3081 = vadd.f32 %v2856, %v3080
        %v3082 = vpop.f32.mrf.mxu0
        %3083 = vmatprep.mubr.bf16.mxu0 %v634
        %3084 = vmatmul.mubr.bf16.gmra.mxu0 %v633
        %v3085 = vpop.f32.mrf.mxu0
        %v3086 = vadd.f32 %v2861, %v3085
        %v3087 = vpop.f32.mrf.mxu0
        %v3088 = vpop.f32.mrf.mxu0
        %v3089 = vadd.f32 %v2864, %v3088
        %v3090 = vpop.f32.mrf.mxu0
        %3091 = vmatprep.mubr.bf16.mxu0 %v640
        %3092 = vmatmul.mubr.bf16.gmra.mxu0 %v639
        %v3093 = vpop.f32.mrf.mxu0
        %v3094 = vadd.f32 %v2869, %v3093
        %v3095 = vpop.f32.mrf.mxu0
        %v3096 = vpop.f32.mrf.mxu0
        %v3097 = vadd.f32 %v2872, %v3096
        %v3098 = vpop.f32.mrf.mxu0
        %3099 = vmatprep.mubr.bf16.mxu0 %v646
        %3100 = vmatmul.mubr.bf16.gmra.mxu0 %v645
        %v3101 = vpop.f32.mrf.mxu0
        %v3102 = vadd.f32 %v2877, %v3101
        %v3103 = vpop.f32.mrf.mxu0
        %v3104 = vpop.f32.mrf.mxu0
        %v3105 = vadd.f32 %v2880, %v3104
        %v3106 = vpop.f32.mrf.mxu0
        %3107 = vmatprep.mubr.bf16.mxu0 %v652
        %3108 = vmatmul.mubr.bf16.gmra.mxu0 %v651
        %v3109 = vpop.f32.mrf.mxu0
        %v3110 = vadd.f32 %v2885, %v3109
        %v3111 = vpop.f32.mrf.mxu0
        %v3112 = vpop.f32.mrf.mxu0
        %v3113 = vadd.f32 %v2888, %v3112
        %v3114 = vpop.f32.mrf.mxu0
        %3115 = vmatprep.mubr.bf16.mxu0 %v658
        %3116 = vmatmul.mubr.bf16.gmra.mxu0 %v657
        %v3117 = vpop.f32.mrf.mxu0
        %v3118 = vadd.f32 %v2893, %v3117
        %v3119 = vpop.f32.mrf.mxu0
        %v3120 = vpop.f32.mrf.mxu0
        %v3121 = vadd.f32 %v2896, %v3120
        %v3122 = vpop.f32.mrf.mxu0
        %3123 = vmatprep.mubr.bf16.mxu0 %v664
        %3124 = vmatmul.mubr.bf16.gmra.mxu0 %v663
        %v3125 = vpop.f32.mrf.mxu0
        %v3126 = vadd.f32 %v2901, %v3125
        %v3127 = vpop.f32.mrf.mxu0
        %v3128 = vpop.f32.mrf.mxu0
        %v3129 = vadd.f32 %v2904, %v3128
        %v3130 = vpop.f32.mrf.mxu0
        %3131 = vmatprep.mubr.bf16.mxu0 %v670
        %3132 = vmatmul.mubr.bf16.gmra.mxu0 %v669
        %v3133 = vpop.f32.mrf.mxu0
        %v3134 = vadd.f32 %v2909, %v3133
        %v3135 = vpop.f32.mrf.mxu0
        %v3136 = vpop.f32.mrf.mxu0
        %v3137 = vadd.f32 %v2912, %v3136
        %v3138 = vpop.f32.mrf.mxu0
        %3139 = vmatprep.mubr.bf16.mxu0 %v676
        %3140 = vmatmul.mubr.bf16.gmra.mxu0 %v675
        %v3141 = vpop.f32.mrf.mxu0
        %v3142 = vadd.f32 %v2917, %v3141
        %v3143 = vpop.f32.mrf.mxu0
        %v3144 = vpop.f32.mrf.mxu0
        %v3145 = vadd.f32 %v2920, %v3144
        %v3146 = vpop.f32.mrf.mxu0
        %3147 = vdwg.mxu0
        %v3148 = vlaneseq
        %v3149 = vshrl.u32 %v3148, 7
        %v3150 = vadd.s32 %v3149, 8
        %v3151 = vadd.s32 %v3149, 16
        %v3152 = vadd.s32 %v3149, 24
        %v3153 = vadd.s32 %v3149, 32
        %v3154 = vadd.s32 %v3149, 40
        %v3155 = vadd.s32 %v3149, 48
        %v3156 = vadd.s32 %v3149, 56
        %v3157 = vadd.s32 %v3149, 64
        %v3158 = vadd.s32 %v3149, 72
        %v3159 = vadd.s32 %v3149, 80
        %v3160 = vadd.s32 %v3149, 88
        %v3161 = vadd.s32 %v3149, 96
        %v3162 = vadd.s32 %v3149, 104
        %v3163 = vadd.s32 %v3149, 112
        %v3164 = vadd.s32 %v3149, 120
        %v3165 = vadd.s32 %v3149, 128
        %v3166 = vadd.s32 %v3149, 136
        %v3167 = vadd.s32 %v3149, 144
        %v3168 = vadd.s32 %v3149, 152
        %v3169 = vadd.s32 %v3149, 160
        %v3170 = vadd.s32 %v3149, 168
        %v3171 = vadd.s32 %v3149, 176
        %v3172 = vadd.s32 %v3149, 184
        %v3173 = vadd.s32 %v3149, 192
        %v3174 = vadd.s32 %v3149, 200
        %v3175 = vadd.s32 %v3149, 208
        %v3176 = vadd.s32 %v3149, 216
        %v3177 = vadd.s32 %v3149, 224
        %v3178 = vadd.s32 %v3149, 232
        %v3179 = vadd.s32 %v3149, 240
        %v3180 = vadd.s32 %v3149, 248
        %v3181 = vadd.s32 %v3149, 256
        %v3182 = vadd.s32 %v3149, 264
        %v3183 = vadd.s32 %v3149, 272
        %v3184 = vadd.s32 %v3149, 280
        %v3185 = vadd.s32 %v3149, 288
        %v3186 = vadd.s32 %v3149, 296
        %v3187 = vadd.s32 %v3149, 304
        %v3188 = vadd.s32 %v3149, 312
        %v3189 = vadd.s32 %v3149, 320
        %v3190 = vadd.s32 %v3149, 328
        %v3191 = vadd.s32 %v3149, 336
        %v3192 = vadd.s32 %v3149, 344
        %v3193 = vadd.s32 %v3149, 352
        %v3194 = vadd.s32 %v3149, 360
        %v3195 = vadd.s32 %v3149, 368
        %v3196 = vadd.s32 %v3149, 376
        %v3197 = vlaneseq
        %v3198 = vand.u32 %v3197, 127
        %v3199 = vadd.s32 %v3198, 128
        %v3200 = vadd.s32 %v3198, 256
        %s3201 = smul.u32 %s23, 384
        %v3202 = vshll.u32 %v3149, 9
        %v3203 = vshll.u32 %v3150, 9
        %v3204 = vshll.u32 %v3151, 9
        %v3205 = vshll.u32 %v3152, 9
        %v3206 = vshll.u32 %v3153, 9
        %v3207 = vshll.u32 %v3154, 9
        %v3208 = vshll.u32 %v3155, 9
        %v3209 = vshll.u32 %v3156, 9
        %v3210 = vshll.u32 %v3157, 9
        %v3211 = vshll.u32 %v3158, 9
        %v3212 = vshll.u32 %v3159, 9
        %v3213 = vshll.u32 %v3160, 9
        %v3214 = vshll.u32 %v3161, 9
        %v3215 = vshll.u32 %v3162, 9
        %v3216 = vshll.u32 %v3163, 9
        %v3217 = vshll.u32 %v3164, 9
        %v3218 = vshll.u32 %v3165, 9
        %v3219 = vshll.u32 %v3166, 9
        %v3220 = vshll.u32 %v3167, 9
        %v3221 = vshll.u32 %v3168, 9
        %v3222 = vshll.u32 %v3169, 9
        %v3223 = vshll.u32 %v3170, 9
        %v3224 = vshll.u32 %v3171, 9
        %v3225 = vshll.u32 %v3172, 9
        %v3226 = vshll.u32 %v3173, 9
        %v3227 = vshll.u32 %v3174, 9
        %v3228 = vshll.u32 %v3175, 9
        %v3229 = vshll.u32 %v3176, 9
        %v3230 = vshll.u32 %v3177, 9
        %v3231 = vshll.u32 %v3178, 9
        %v3232 = vshll.u32 %v3179, 9
        %v3233 = vshll.u32 %v3180, 9
        %v3234 = vshll.u32 %v3181, 9
        %v3235 = vshll.u32 %v3182, 9
        %v3236 = vshll.u32 %v3183, 9
        %v3237 = vshll.u32 %v3184, 9
        %v3238 = vshll.u32 %v3185, 9
        %v3239 = vshll.u32 %v3186, 9
        %v3240 = vshll.u32 %v3187, 9
        %v3241 = vshll.u32 %v3188, 9
        %v3242 = vshll.u32 %v3189, 9
        %v3243 = vshll.u32 %v3190, 9
        %v3244 = vshll.u32 %v3191, 9
        %v3245 = vshll.u32 %v3192, 9
        %v3246 = vshll.u32 %v3193, 9
        %v3247 = vshll.u32 %v3194, 9
        %v3248 = vshll.u32 %v3195, 9
        %v3249 = vshll.u32 %v3196, 9
        %v3250 = vshll.u32 %v3149, 8
        %v3251 = vshll.u32 %v3150, 8
        %v3252 = vshll.u32 %v3151, 8
        %v3253 = vshll.u32 %v3152, 8
        %v3254 = vshll.u32 %v3153, 8
        %v3255 = vshll.u32 %v3154, 8
        %v3256 = vshll.u32 %v3155, 8
        %v3257 = vshll.u32 %v3156, 8
        %v3258 = vshll.u32 %v3157, 8
        %v3259 = vshll.u32 %v3158, 8
        %v3260 = vshll.u32 %v3159, 8
        %v3261 = vshll.u32 %v3160, 8
        %v3262 = vshll.u32 %v3161, 8
        %v3263 = vshll.u32 %v3162, 8
        %v3264 = vshll.u32 %v3163, 8
        %v3265 = vshll.u32 %v3164, 8
        %v3266 = vshll.u32 %v3165, 8
        %v3267 = vshll.u32 %v3166, 8
        %v3268 = vshll.u32 %v3167, 8
        %v3269 = vshll.u32 %v3168, 8
        %v3270 = vshll.u32 %v3169, 8
        %v3271 = vshll.u32 %v3170, 8
        %v3272 = vshll.u32 %v3171, 8
        %v3273 = vshll.u32 %v3172, 8
        %v3274 = vshll.u32 %v3173, 8
        %v3275 = vshll.u32 %v3174, 8
        %v3276 = vshll.u32 %v3175, 8
        %v3277 = vshll.u32 %v3176, 8
        %v3278 = vshll.u32 %v3177, 8
        %v3279 = vshll.u32 %v3178, 8
        %v3280 = vshll.u32 %v3179, 8
        %v3281 = vshll.u32 %v3180, 8
        %v3282 = vshll.u32 %v3181, 8
        %v3283 = vshll.u32 %v3182, 8
        %v3284 = vshll.u32 %v3183, 8
        %v3285 = vshll.u32 %v3184, 8
        %v3286 = vshll.u32 %v3185, 8
        %v3287 = vshll.u32 %v3186, 8
        %v3288 = vshll.u32 %v3187, 8
        %v3289 = vshll.u32 %v3188, 8
        %v3290 = vshll.u32 %v3189, 8
        %v3291 = vshll.u32 %v3190, 8
        %v3292 = vshll.u32 %v3191, 8
        %v3293 = vshll.u32 %v3192, 8
        %v3294 = vshll.u32 %v3193, 8
        %v3295 = vshll.u32 %v3194, 8
        %v3296 = vshll.u32 %v3195, 8
        %v3297 = vshll.u32 %v3196, 8
        %v3298 = vadd.s32 %v3202, %v3250
        %v3299 = vadd.s32 %v3203, %v3251
        %v3300 = vadd.s32 %v3204, %v3252
        %v3301 = vadd.s32 %v3205, %v3253
        %v3302 = vadd.s32 %v3206, %v3254
        %v3303 = vadd.s32 %v3207, %v3255
        %v3304 = vadd.s32 %v3208, %v3256
        %v3305 = vadd.s32 %v3209, %v3257
        %v3306 = vadd.s32 %v3210, %v3258
        %v3307 = vadd.s32 %v3211, %v3259
        %v3308 = vadd.s32 %v3212, %v3260
        %v3309 = vadd.s32 %v3213, %v3261
        %v3310 = vadd.s32 %v3214, %v3262
        %v3311 = vadd.s32 %v3215, %v3263
        %v3312 = vadd.s32 %v3216, %v3264
        %v3313 = vadd.s32 %v3217, %v3265
        %v3314 = vadd.s32 %v3218, %v3266
        %v3315 = vadd.s32 %v3219, %v3267
        %v3316 = vadd.s32 %v3220, %v3268
        %v3317 = vadd.s32 %v3221, %v3269
        %v3318 = vadd.s32 %v3222, %v3270
        %v3319 = vadd.s32 %v3223, %v3271
        %v3320 = vadd.s32 %v3224, %v3272
        %v3321 = vadd.s32 %v3225, %v3273
        %v3322 = vadd.s32 %v3226, %v3274
        %v3323 = vadd.s32 %v3227, %v3275
        %v3324 = vadd.s32 %v3228, %v3276
        %v3325 = vadd.s32 %v3229, %v3277
        %v3326 = vadd.s32 %v3230, %v3278
        %v3327 = vadd.s32 %v3231, %v3279
        %v3328 = vadd.s32 %v3232, %v3280
        %v3329 = vadd.s32 %v3233, %v3281
        %v3330 = vadd.s32 %v3234, %v3282
        %v3331 = vadd.s32 %v3235, %v3283
        %v3332 = vadd.s32 %v3236, %v3284
        %v3333 = vadd.s32 %v3237, %v3285
        %v3334 = vadd.s32 %v3238, %v3286
        %v3335 = vadd.s32 %v3239, %v3287
        %v3336 = vadd.s32 %v3240, %v3288
        %v3337 = vadd.s32 %v3241, %v3289
        %v3338 = vadd.s32 %v3242, %v3290
        %v3339 = vadd.s32 %v3243, %v3291
        %v3340 = vadd.s32 %v3244, %v3292
        %v3341 = vadd.s32 %v3245, %v3293
        %v3342 = vadd.s32 %v3246, %v3294
        %v3343 = vadd.s32 %v3247, %v3295
        %v3344 = vadd.s32 %v3248, %v3296
        %v3345 = vadd.s32 %v3249, %v3297
        %v3346 = vstv %s3201
        %v3347 = vadd.s32 %v3198, %v3346
        %v3348 = vadd.s32 %v3199, %v3346
        %v3349 = vadd.s32 %v3200, %v3346
        %v3350 = vadd.s32 %v3298, %v3347
        %v3351 = vadd.s32 %v3298, %v3348
        %v3352 = vadd.s32 %v3298, %v3349
        %v3353 = vadd.s32 %v3299, %v3347
        %v3354 = vadd.s32 %v3299, %v3348
        %v3355 = vadd.s32 %v3299, %v3349
        %v3356 = vadd.s32 %v3300, %v3347
        %v3357 = vadd.s32 %v3300, %v3348
        %v3358 = vadd.s32 %v3300, %v3349
        %v3359 = vadd.s32 %v3301, %v3347
        %v3360 = vadd.s32 %v3301, %v3348
        %v3361 = vadd.s32 %v3301, %v3349
        %v3362 = vadd.s32 %v3302, %v3347
        %v3363 = vadd.s32 %v3302, %v3348
        %v3364 = vadd.s32 %v3302, %v3349
        %v3365 = vadd.s32 %v3303, %v3347
        %v3366 = vadd.s32 %v3303, %v3348
        %v3367 = vadd.s32 %v3303, %v3349
        %v3368 = vadd.s32 %v3304, %v3347
        %v3369 = vadd.s32 %v3304, %v3348
        %v3370 = vadd.s32 %v3304, %v3349
        %v3371 = vadd.s32 %v3305, %v3347
        %v3372 = vadd.s32 %v3305, %v3348
        %v3373 = vadd.s32 %v3305, %v3349
        %v3374 = vadd.s32 %v3306, %v3347
        %v3375 = vadd.s32 %v3306, %v3348
        %v3376 = vadd.s32 %v3306, %v3349
        %v3377 = vadd.s32 %v3307, %v3347
        %v3378 = vadd.s32 %v3307, %v3348
        %v3379 = vadd.s32 %v3307, %v3349
        %v3380 = vadd.s32 %v3308, %v3347
        %v3381 = vadd.s32 %v3308, %v3348
        %v3382 = vadd.s32 %v3308, %v3349
        %v3383 = vadd.s32 %v3309, %v3347
        %v3384 = vadd.s32 %v3309, %v3348
        %v3385 = vadd.s32 %v3309, %v3349
        %v3386 = vadd.s32 %v3310, %v3347
        %v3387 = vadd.s32 %v3310, %v3348
        %v3388 = vadd.s32 %v3310, %v3349
        %v3389 = vadd.s32 %v3311, %v3347
        %v3390 = vadd.s32 %v3311, %v3348
        %v3391 = vadd.s32 %v3311, %v3349
        %v3392 = vadd.s32 %v3312, %v3347
        %v3393 = vadd.s32 %v3312, %v3348
        %v3394 = vadd.s32 %v3312, %v3349
        %v3395 = vadd.s32 %v3313, %v3347
        %v3396 = vadd.s32 %v3313, %v3348
        %v3397 = vadd.s32 %v3313, %v3349
        %v3398 = vadd.s32 %v3314, %v3347
        %v3399 = vadd.s32 %v3314, %v3348
        %v3400 = vadd.s32 %v3314, %v3349
        %v3401 = vadd.s32 %v3315, %v3347
        %v3402 = vadd.s32 %v3315, %v3348
        %v3403 = vadd.s32 %v3315, %v3349
        %v3404 = vadd.s32 %v3316, %v3347
        %v3405 = vadd.s32 %v3316, %v3348
        %v3406 = vadd.s32 %v3316, %v3349
        %v3407 = vadd.s32 %v3317, %v3347
        %v3408 = vadd.s32 %v3317, %v3348
        %v3409 = vadd.s32 %v3317, %v3349
        %v3410 = vadd.s32 %v3318, %v3347
        %v3411 = vadd.s32 %v3318, %v3348
        %v3412 = vadd.s32 %v3318, %v3349
        %v3413 = vadd.s32 %v3319, %v3347
        %v3414 = vadd.s32 %v3319, %v3348
        %v3415 = vadd.s32 %v3319, %v3349
        %v3416 = vadd.s32 %v3320, %v3347
        %v3417 = vadd.s32 %v3320, %v3348
        %v3418 = vadd.s32 %v3320, %v3349
        %v3419 = vadd.s32 %v3321, %v3347
        %v3420 = vadd.s32 %v3321, %v3348
        %v3421 = vadd.s32 %v3321, %v3349
        %v3422 = vadd.s32 %v3322, %v3347
        %v3423 = vadd.s32 %v3322, %v3348
        %v3424 = vadd.s32 %v3322, %v3349
        %v3425 = vadd.s32 %v3323, %v3347
        %v3426 = vadd.s32 %v3323, %v3348
        %v3427 = vadd.s32 %v3323, %v3349
        %v3428 = vadd.s32 %v3324, %v3347
        %v3429 = vadd.s32 %v3324, %v3348
        %v3430 = vadd.s32 %v3324, %v3349
        %v3431 = vadd.s32 %v3325, %v3347
        %v3432 = vadd.s32 %v3325, %v3348
        %v3433 = vadd.s32 %v3325, %v3349
        %v3434 = vadd.s32 %v3326, %v3347
        %v3435 = vadd.s32 %v3326, %v3348
        %v3436 = vadd.s32 %v3326, %v3349
        %v3437 = vadd.s32 %v3327, %v3347
        %v3438 = vadd.s32 %v3327, %v3348
        %v3439 = vadd.s32 %v3327, %v3349
        %v3440 = vadd.s32 %v3328, %v3347
        %v3441 = vadd.s32 %v3328, %v3348
        %v3442 = vadd.s32 %v3328, %v3349
        %v3443 = vadd.s32 %v3329, %v3347
        %v3444 = vadd.s32 %v3329, %v3348
        %v3445 = vadd.s32 %v3329, %v3349
        %v3446 = vadd.s32 %v3330, %v3347
        %v3447 = vadd.s32 %v3330, %v3348
        %v3448 = vadd.s32 %v3330, %v3349
        %v3449 = vadd.s32 %v3331, %v3347
        %v3450 = vadd.s32 %v3331, %v3348
        %v3451 = vadd.s32 %v3331, %v3349
        %v3452 = vadd.s32 %v3332, %v3347
        %v3453 = vadd.s32 %v3332, %v3348
        %v3454 = vadd.s32 %v3332, %v3349
        %v3455 = vadd.s32 %v3333, %v3347
        %v3456 = vadd.s32 %v3333, %v3348
        %v3457 = vadd.s32 %v3333, %v3349
        %v3458 = vadd.s32 %v3334, %v3347
        %v3459 = vadd.s32 %v3334, %v3348
        %v3460 = vadd.s32 %v3334, %v3349
        %v3461 = vadd.s32 %v3335, %v3347
        %v3462 = vadd.s32 %v3335, %v3348
        %v3463 = vadd.s32 %v3335, %v3349
        %v3464 = vadd.s32 %v3336, %v3347
        %v3465 = vadd.s32 %v3336, %v3348
        %v3466 = vadd.s32 %v3336, %v3349
        %v3467 = vadd.s32 %v3337, %v3347
        %v3468 = vadd.s32 %v3337, %v3348
        %v3469 = vadd.s32 %v3337, %v3349
        %v3470 = vadd.s32 %v3338, %v3347
        %v3471 = vadd.s32 %v3338, %v3348
        %v3472 = vadd.s32 %v3338, %v3349
        %v3473 = vadd.s32 %v3339, %v3347
        %v3474 = vadd.s32 %v3339, %v3348
        %v3475 = vadd.s32 %v3339, %v3349
        %v3476 = vadd.s32 %v3340, %v3347
        %v3477 = vadd.s32 %v3340, %v3348
        %v3478 = vadd.s32 %v3340, %v3349
        %v3479 = vadd.s32 %v3341, %v3347
        %v3480 = vadd.s32 %v3341, %v3348
        %v3481 = vadd.s32 %v3341, %v3349
        %v3482 = vadd.s32 %v3342, %v3347
        %v3483 = vadd.s32 %v3342, %v3348
        %v3484 = vadd.s32 %v3342, %v3349
        %v3485 = vadd.s32 %v3343, %v3347
        %v3486 = vadd.s32 %v3343, %v3348
        %v3487 = vadd.s32 %v3343, %v3349
        %v3488 = vadd.s32 %v3344, %v3347
        %v3489 = vadd.s32 %v3344, %v3348
        %v3490 = vadd.s32 %v3344, %v3349
        %v3491 = vadd.s32 %v3345, %v3347
        %v3492 = vadd.s32 %v3345, %v3348
        %v3493 = vadd.s32 %v3345, %v3349
        %s3494 = sld [smem:[#allocation3]]
        %s3495 = smul.u32 %s3494, 2654435769
        %v3496 = vstv %s3495
        %v3497 = vxor.u32 %v3350, %v3496
        %v3498 = vxor.u32 %v3351, %v3496
        %v3499 = vxor.u32 %v3352, %v3496
        %v3500 = vxor.u32 %v3353, %v3496
        %v3501 = vxor.u32 %v3354, %v3496
        %v3502 = vxor.u32 %v3355, %v3496
        %v3503 = vxor.u32 %v3356, %v3496
        %v3504 = vxor.u32 %v3357, %v3496
        %v3505 = vxor.u32 %v3358, %v3496
        %v3506 = vxor.u32 %v3359, %v3496
        %v3507 = vxor.u32 %v3360, %v3496
        %v3508 = vxor.u32 %v3361, %v3496
        %v3509 = vxor.u32 %v3362, %v3496
        %v3510 = vxor.u32 %v3363, %v3496
        %v3511 = vxor.u32 %v3364, %v3496
        %v3512 = vxor.u32 %v3365, %v3496
        %v3513 = vxor.u32 %v3366, %v3496
        %v3514 = vxor.u32 %v3367, %v3496
        %v3515 = vxor.u32 %v3368, %v3496
        %v3516 = vxor.u32 %v3369, %v3496
        %v3517 = vxor.u32 %v3370, %v3496
        %v3518 = vxor.u32 %v3371, %v3496
        %v3519 = vxor.u32 %v3372, %v3496
        %v3520 = vxor.u32 %v3373, %v3496
        %v3521 = vxor.u32 %v3374, %v3496
        %v3522 = vxor.u32 %v3375, %v3496
        %v3523 = vxor.u32 %v3376, %v3496
        %v3524 = vxor.u32 %v3377, %v3496
        %v3525 = vxor.u32 %v3378, %v3496
        %v3526 = vxor.u32 %v3379, %v3496
        %v3527 = vxor.u32 %v3380, %v3496
        %v3528 = vxor.u32 %v3381, %v3496
        %v3529 = vxor.u32 %v3382, %v3496
        %v3530 = vxor.u32 %v3383, %v3496
        %v3531 = vxor.u32 %v3384, %v3496
        %v3532 = vxor.u32 %v3385, %v3496
        %v3533 = vxor.u32 %v3386, %v3496
        %v3534 = vxor.u32 %v3387, %v3496
        %v3535 = vxor.u32 %v3388, %v3496
        %v3536 = vxor.u32 %v3389, %v3496
        %v3537 = vxor.u32 %v3390, %v3496
        %v3538 = vxor.u32 %v3391, %v3496
        %v3539 = vxor.u32 %v3392, %v3496
        %v3540 = vxor.u32 %v3393, %v3496
        %v3541 = vxor.u32 %v3394, %v3496
        %v3542 = vxor.u32 %v3395, %v3496
        %v3543 = vxor.u32 %v3396, %v3496
        %v3544 = vxor.u32 %v3397, %v3496
        %v3545 = vxor.u32 %v3398, %v3496
        %v3546 = vxor.u32 %v3399, %v3496
        %v3547 = vxor.u32 %v3400, %v3496
        %v3548 = vxor.u32 %v3401, %v3496
        %v3549 = vxor.u32 %v3402, %v3496
        %v3550 = vxor.u32 %v3403, %v3496
        %v3551 = vxor.u32 %v3404, %v3496
        %v3552 = vxor.u32 %v3405, %v3496
        %v3553 = vxor.u32 %v3406, %v3496
        %v3554 = vxor.u32 %v3407, %v3496
        %v3555 = vxor.u32 %v3408, %v3496
        %v3556 = vxor.u32 %v3409, %v3496
        %v3557 = vxor.u32 %v3410, %v3496
        %v3558 = vxor.u32 %v3411, %v3496
        %v3559 = vxor.u32 %v3412, %v3496
        %v3560 = vxor.u32 %v3413, %v3496
        %v3561 = vxor.u32 %v3414, %v3496
        %v3562 = vxor.u32 %v3415, %v3496
        %v3563 = vxor.u32 %v3416, %v3496
        %v3564 = vxor.u32 %v3417, %v3496
        %v3565 = vxor.u32 %v3418, %v3496
        %v3566 = vxor.u32 %v3419, %v3496
        %v3567 = vxor.u32 %v3420, %v3496
        %v3568 = vxor.u32 %v3421, %v3496
        %v3569 = vxor.u32 %v3422, %v3496
        %v3570 = vxor.u32 %v3423, %v3496
        %v3571 = vxor.u32 %v3424, %v3496
        %v3572 = vxor.u32 %v3425, %v3496
        %v3573 = vxor.u32 %v3426, %v3496
        %v3574 = vxor.u32 %v3427, %v3496
        %v3575 = vxor.u32 %v3428, %v3496
        %v3576 = vxor.u32 %v3429, %v3496
        %v3577 = vxor.u32 %v3430, %v3496
        %v3578 = vxor.u32 %v3431, %v3496
        %v3579 = vxor.u32 %v3432, %v3496
        %v3580 = vxor.u32 %v3433, %v3496
        %v3581 = vxor.u32 %v3434, %v3496
        %v3582 = vxor.u32 %v3435, %v3496
        %v3583 = vxor.u32 %v3436, %v3496
        %v3584 = vxor.u32 %v3437, %v3496
        %v3585 = vxor.u32 %v3438, %v3496
        %v3586 = vxor.u32 %v3439, %v3496
        %v3587 = vxor.u32 %v3440, %v3496
        %v3588 = vxor.u32 %v3441, %v3496
        %v3589 = vxor.u32 %v3442, %v3496
        %v3590 = vxor.u32 %v3443, %v3496
        %v3591 = vxor.u32 %v3444, %v3496
        %v3592 = vxor.u32 %v3445, %v3496
        %v3593 = vxor.u32 %v3446, %v3496
        %v3594 = vxor.u32 %v3447, %v3496
        %v3595 = vxor.u32 %v3448, %v3496
        %v3596 = vxor.u32 %v3449, %v3496
        %v3597 = vxor.u32 %v3450, %v3496
        %v3598 = vxor.u32 %v3451, %v3496
        %v3599 = vxor.u32 %v3452, %v3496
        %v3600 = vxor.u32 %v3453, %v3496
        %v3601 = vxor.u32 %v3454, %v3496
        %v3602 = vxor.u32 %v3455, %v3496
        %v3603 = vxor.u32 %v3456, %v3496
        %v3604 = vxor.u32 %v3457, %v3496
        %v3605 = vxor.u32 %v3458, %v3496
        %v3606 = vxor.u32 %v3459, %v3496
        %v3607 = vxor.u32 %v3460, %v3496
        %v3608 = vxor.u32 %v3461, %v3496
        %v3609 = vxor.u32 %v3462, %v3496
        %v3610 = vxor.u32 %v3463, %v3496
        %v3611 = vxor.u32 %v3464, %v3496
        %v3612 = vxor.u32 %v3465, %v3496
        %v3613 = vxor.u32 %v3466, %v3496
        %v3614 = vxor.u32 %v3467, %v3496
        %v3615 = vxor.u32 %v3468, %v3496
        %v3616 = vxor.u32 %v3469, %v3496
        %v3617 = vxor.u32 %v3470, %v3496
        %v3618 = vxor.u32 %v3471, %v3496
        %v3619 = vxor.u32 %v3472, %v3496
        %v3620 = vxor.u32 %v3473, %v3496
        %v3621 = vxor.u32 %v3474, %v3496
        %v3622 = vxor.u32 %v3475, %v3496
        %v3623 = vxor.u32 %v3476, %v3496
        %v3624 = vxor.u32 %v3477, %v3496
        %v3625 = vxor.u32 %v3478, %v3496
        %v3626 = vxor.u32 %v3479, %v3496
        %v3627 = vxor.u32 %v3480, %v3496
        %v3628 = vxor.u32 %v3481, %v3496
        %v3629 = vxor.u32 %v3482, %v3496
        %v3630 = vxor.u32 %v3483, %v3496
        %v3631 = vxor.u32 %v3484, %v3496
        %v3632 = vxor.u32 %v3485, %v3496
        %v3633 = vxor.u32 %v3486, %v3496
        %v3634 = vxor.u32 %v3487, %v3496
        %v3635 = vxor.u32 %v3488, %v3496
        %v3636 = vxor.u32 %v3489, %v3496
        %v3637 = vxor.u32 %v3490, %v3496
        %v3638 = vxor.u32 %v3491, %v3496
        %v3639 = vxor.u32 %v3492, %v3496
        %v3640 = vxor.u32 %v3493, %v3496
        %v3641 = vshrl.u32 %v3497, 16
        %v3642 = vshrl.u32 %v3498, 16
        %v3643 = vshrl.u32 %v3499, 16
        %v3644 = vshrl.u32 %v3500, 16
        %v3645 = vshrl.u32 %v3501, 16
        %v3646 = vshrl.u32 %v3502, 16
        %v3647 = vshrl.u32 %v3503, 16
        %v3648 = vshrl.u32 %v3504, 16
        %v3649 = vshrl.u32 %v3505, 16
        %v3650 = vshrl.u32 %v3506, 16
        %v3651 = vshrl.u32 %v3507, 16
        %v3652 = vshrl.u32 %v3508, 16
        %v3653 = vshrl.u32 %v3509, 16
        %v3654 = vshrl.u32 %v3510, 16
        %v3655 = vshrl.u32 %v3511, 16
        %v3656 = vshrl.u32 %v3512, 16
        %v3657 = vshrl.u32 %v3513, 16
        %v3658 = vshrl.u32 %v3514, 16
        %v3659 = vshrl.u32 %v3515, 16
        %v3660 = vshrl.u32 %v3516, 16
        %v3661 = vshrl.u32 %v3517, 16
        %v3662 = vshrl.u32 %v3518, 16
        %v3663 = vshrl.u32 %v3519, 16
        %v3664 = vshrl.u32 %v3520, 16
        %v3665 = vshrl.u32 %v3521, 16
        %v3666 = vshrl.u32 %v3522, 16
        %v3667 = vshrl.u32 %v3523, 16
        %v3668 = vshrl.u32 %v3524, 16
        %v3669 = vshrl.u32 %v3525, 16
        %v3670 = vshrl.u32 %v3526, 16
        %v3671 = vshrl.u32 %v3527, 16
        %v3672 = vshrl.u32 %v3528, 16
        %v3673 = vshrl.u32 %v3529, 16
        %v3674 = vshrl.u32 %v3530, 16
        %v3675 = vshrl.u32 %v3531, 16
        %v3676 = vshrl.u32 %v3532, 16
        %v3677 = vshrl.u32 %v3533, 16
        %v3678 = vshrl.u32 %v3534, 16
        %v3679 = vshrl.u32 %v3535, 16
        %v3680 = vshrl.u32 %v3536, 16
        %v3681 = vshrl.u32 %v3537, 16
        %v3682 = vshrl.u32 %v3538, 16
        %v3683 = vshrl.u32 %v3539, 16
        %v3684 = vshrl.u32 %v3540, 16
        %v3685 = vshrl.u32 %v3541, 16
        %v3686 = vshrl.u32 %v3542, 16
        %v3687 = vshrl.u32 %v3543, 16
        %v3688 = vshrl.u32 %v3544, 16
        %v3689 = vshrl.u32 %v3545, 16
        %v3690 = vshrl.u32 %v3546, 16
        %v3691 = vshrl.u32 %v3547, 16
        %v3692 = vshrl.u32 %v3548, 16
        %v3693 = vshrl.u32 %v3549, 16
        %v3694 = vshrl.u32 %v3550, 16
        %v3695 = vshrl.u32 %v3551, 16
        %v3696 = vshrl.u32 %v3552, 16
        %v3697 = vshrl.u32 %v3553, 16
        %v3698 = vshrl.u32 %v3554, 16
        %v3699 = vshrl.u32 %v3555, 16
        %v3700 = vshrl.u32 %v3556, 16
        %v3701 = vshrl.u32 %v3557, 16
        %v3702 = vshrl.u32 %v3558, 16
        %v3703 = vshrl.u32 %v3559, 16
        %v3704 = vshrl.u32 %v3560, 16
        %v3705 = vshrl.u32 %v3561, 16
        %v3706 = vshrl.u32 %v3562, 16
        %v3707 = vshrl.u32 %v3563, 16
        %v3708 = vshrl.u32 %v3564, 16
        %v3709 = vshrl.u32 %v3565, 16
        %v3710 = vshrl.u32 %v3566, 16
        %v3711 = vshrl.u32 %v3567, 16
        %v3712 = vshrl.u32 %v3568, 16
        %v3713 = vshrl.u32 %v3569, 16
        %v3714 = vshrl.u32 %v3570, 16
        %v3715 = vshrl.u32 %v3571, 16
        %v3716 = vshrl.u32 %v3572, 16
        %v3717 = vshrl.u32 %v3573, 16
        %v3718 = vshrl.u32 %v3574, 16
        %v3719 = vshrl.u32 %v3575, 16
        %v3720 = vshrl.u32 %v3576, 16
        %v3721 = vshrl.u32 %v3577, 16
        %v3722 = vshrl.u32 %v3578, 16
        %v3723 = vshrl.u32 %v3579, 16
        %v3724 = vshrl.u32 %v3580, 16
        %v3725 = vshrl.u32 %v3581, 16
        %v3726 = vshrl.u32 %v3582, 16
        %v3727 = vshrl.u32 %v3583, 16
        %v3728 = vshrl.u32 %v3584, 16
        %v3729 = vshrl.u32 %v3585, 16
        %v3730 = vshrl.u32 %v3586, 16
        %v3731 = vshrl.u32 %v3587, 16
        %v3732 = vshrl.u32 %v3588, 16
        %v3733 = vshrl.u32 %v3589, 16
        %v3734 = vshrl.u32 %v3590, 16
        %v3735 = vshrl.u32 %v3591, 16
        %v3736 = vshrl.u32 %v3592, 16
        %v3737 = vshrl.u32 %v3593, 16
        %v3738 = vshrl.u32 %v3594, 16
        %v3739 = vshrl.u32 %v3595, 16
        %v3740 = vshrl.u32 %v3596, 16
        %v3741 = vshrl.u32 %v3597, 16
        %v3742 = vshrl.u32 %v3598, 16
        %v3743 = vshrl.u32 %v3599, 16
        %v3744 = vshrl.u32 %v3600, 16
        %v3745 = vshrl.u32 %v3601, 16
        %v3746 = vshrl.u32 %v3602, 16
        %v3747 = vshrl.u32 %v3603, 16
        %v3748 = vshrl.u32 %v3604, 16
        %v3749 = vshrl.u32 %v3605, 16
        %v3750 = vshrl.u32 %v3606, 16
        %v3751 = vshrl.u32 %v3607, 16
        %v3752 = vshrl.u32 %v3608, 16
        %v3753 = vshrl.u32 %v3609, 16
        %v3754 = vshrl.u32 %v3610, 16
        %v3755 = vshrl.u32 %v3611, 16
        %v3756 = vshrl.u32 %v3612, 16
        %v3757 = vshrl.u32 %v3613, 16
        %v3758 = vshrl.u32 %v3614, 16
        %v3759 = vshrl.u32 %v3615, 16
        %v3760 = vshrl.u32 %v3616, 16
        %v3761 = vshrl.u32 %v3617, 16
        %v3762 = vshrl.u32 %v3618, 16
        %v3763 = vshrl.u32 %v3619, 16
        %v3764 = vshrl.u32 %v3620, 16
        %v3765 = vshrl.u32 %v3621, 16
        %v3766 = vshrl.u32 %v3622, 16
        %v3767 = vshrl.u32 %v3623, 16
        %v3768 = vshrl.u32 %v3624, 16
        %v3769 = vshrl.u32 %v3625, 16
        %v3770 = vshrl.u32 %v3626, 16
        %v3771 = vshrl.u32 %v3627, 16
        %v3772 = vshrl.u32 %v3628, 16
        %v3773 = vshrl.u32 %v3629, 16
        %v3774 = vshrl.u32 %v3630, 16
        %v3775 = vshrl.u32 %v3631, 16
        %v3776 = vshrl.u32 %v3632, 16
        %v3777 = vshrl.u32 %v3633, 16
        %v3778 = vshrl.u32 %v3634, 16
        %v3779 = vshrl.u32 %v3635, 16
        %v3780 = vshrl.u32 %v3636, 16
        %v3781 = vshrl.u32 %v3637, 16
        %v3782 = vshrl.u32 %v3638, 16
        %v3783 = vshrl.u32 %v3639, 16
        %v3784 = vshrl.u32 %v3640, 16
        %v3785 = vxor.u32 %v3497, %v3641
        %v3786 = vxor.u32 %v3498, %v3642
        %v3787 = vxor.u32 %v3499, %v3643
        %v3788 = vxor.u32 %v3500, %v3644
        %v3789 = vxor.u32 %v3501, %v3645
        %v3790 = vxor.u32 %v3502, %v3646
        %v3791 = vxor.u32 %v3503, %v3647
        %v3792 = vxor.u32 %v3504, %v3648
        %v3793 = vxor.u32 %v3505, %v3649
        %v3794 = vxor.u32 %v3506, %v3650
        %v3795 = vxor.u32 %v3507, %v3651
        %v3796 = vxor.u32 %v3508, %v3652
        %v3797 = vxor.u32 %v3509, %v3653
        %v3798 = vxor.u32 %v3510, %v3654
        %v3799 = vxor.u32 %v3511, %v3655
        %v3800 = vxor.u32 %v3512, %v3656
        %v3801 = vxor.u32 %v3513, %v3657
        %v3802 = vxor.u32 %v3514, %v3658
        %v3803 = vxor.u32 %v3515, %v3659
        %v3804 = vxor.u32 %v3516, %v3660
        %v3805 = vxor.u32 %v3517, %v3661
        %v3806 = vxor.u32 %v3518, %v3662
        %v3807 = vxor.u32 %v3519, %v3663
        %v3808 = vxor.u32 %v3520, %v3664
        %v3809 = vxor.u32 %v3521, %v3665
        %v3810 = vxor.u32 %v3522, %v3666
        %v3811 = vxor.u32 %v3523, %v3667
        %v3812 = vxor.u32 %v3524, %v3668
        %v3813 = vxor.u32 %v3525, %v3669
        %v3814 = vxor.u32 %v3526, %v3670
        %v3815 = vxor.u32 %v3527, %v3671
        %v3816 = vxor.u32 %v3528, %v3672
        %v3817 = vxor.u32 %v3529, %v3673
        %v3818 = vxor.u32 %v3530, %v3674
        %v3819 = vxor.u32 %v3531, %v3675
        %v3820 = vxor.u32 %v3532, %v3676
        %v3821 = vxor.u32 %v3533, %v3677
        %v3822 = vxor.u32 %v3534, %v3678
        %v3823 = vxor.u32 %v3535, %v3679
        %v3824 = vxor.u32 %v3536, %v3680
        %v3825 = vxor.u32 %v3537, %v3681
        %v3826 = vxor.u32 %v3538, %v3682
        %v3827 = vxor.u32 %v3539, %v3683
        %v3828 = vxor.u32 %v3540, %v3684
        %v3829 = vxor.u32 %v3541, %v3685
        %v3830 = vxor.u32 %v3542, %v3686
        %v3831 = vxor.u32 %v3543, %v3687
        %v3832 = vxor.u32 %v3544, %v3688
        %v3833 = vxor.u32 %v3545, %v3689
        %v3834 = vxor.u32 %v3546, %v3690
        %v3835 = vxor.u32 %v3547, %v3691
        %v3836 = vxor.u32 %v3548, %v3692
        %v3837 = vxor.u32 %v3549, %v3693
        %v3838 = vxor.u32 %v3550, %v3694
        %v3839 = vxor.u32 %v3551, %v3695
        %v3840 = vxor.u32 %v3552, %v3696
        %v3841 = vxor.u32 %v3553, %v3697
        %v3842 = vxor.u32 %v3554, %v3698
        %v3843 = vxor.u32 %v3555, %v3699
        %v3844 = vxor.u32 %v3556, %v3700
        %v3845 = vxor.u32 %v3557, %v3701
        %v3846 = vxor.u32 %v3558, %v3702
        %v3847 = vxor.u32 %v3559, %v3703
        %v3848 = vxor.u32 %v3560, %v3704
        %v3849 = vxor.u32 %v3561, %v3705
        %v3850 = vxor.u32 %v3562, %v3706
        %v3851 = vxor.u32 %v3563, %v3707
        %v3852 = vxor.u32 %v3564, %v3708
        %v3853 = vxor.u32 %v3565, %v3709
        %v3854 = vxor.u32 %v3566, %v3710
        %v3855 = vxor.u32 %v3567, %v3711
        %v3856 = vxor.u32 %v3568, %v3712
        %v3857 = vxor.u32 %v3569, %v3713
        %v3858 = vxor.u32 %v3570, %v3714
        %v3859 = vxor.u32 %v3571, %v3715
        %v3860 = vxor.u32 %v3572, %v3716
        %v3861 = vxor.u32 %v3573, %v3717
        %v3862 = vxor.u32 %v3574, %v3718
        %v3863 = vxor.u32 %v3575, %v3719
        %v3864 = vxor.u32 %v3576, %v3720
        %v3865 = vxor.u32 %v3577, %v3721
        %v3866 = vxor.u32 %v3578, %v3722
        %v3867 = vxor.u32 %v3579, %v3723
        %v3868 = vxor.u32 %v3580, %v3724
        %v3869 = vxor.u32 %v3581, %v3725
        %v3870 = vxor.u32 %v3582, %v3726
        %v3871 = vxor.u32 %v3583, %v3727
        %v3872 = vxor.u32 %v3584, %v3728
        %v3873 = vxor.u32 %v3585, %v3729
        %v3874 = vxor.u32 %v3586, %v3730
        %v3875 = vxor.u32 %v3587, %v3731
        %v3876 = vxor.u32 %v3588, %v3732
        %v3877 = vxor.u32 %v3589, %v3733
        %v3878 = vxor.u32 %v3590, %v3734
        %v3879 = vxor.u32 %v3591, %v3735
        %v3880 = vxor.u32 %v3592, %v3736
        %v3881 = vxor.u32 %v3593, %v3737
        %v3882 = vxor.u32 %v3594, %v3738
        %v3883 = vxor.u32 %v3595, %v3739
        %v3884 = vxor.u32 %v3596, %v3740
        %v3885 = vxor.u32 %v3597, %v3741
        %v3886 = vxor.u32 %v3598, %v3742
        %v3887 = vxor.u32 %v3599, %v3743
        %v3888 = vxor.u32 %v3600, %v3744
        %v3889 = vxor.u32 %v3601, %v3745
        %v3890 = vxor.u32 %v3602, %v3746
        %v3891 = vxor.u32 %v3603, %v3747
        %v3892 = vxor.u32 %v3604, %v3748
        %v3893 = vxor.u32 %v3605, %v3749
        %v3894 = vxor.u32 %v3606, %v3750
        %v3895 = vxor.u32 %v3607, %v3751
        %v3896 = vxor.u32 %v3608, %v3752
        %v3897 = vxor.u32 %v3609, %v3753
        %v3898 = vxor.u32 %v3610, %v3754
        %v3899 = vxor.u32 %v3611, %v3755
        %v3900 = vxor.u32 %v3612, %v3756
        %v3901 = vxor.u32 %v3613, %v3757
        %v3902 = vxor.u32 %v3614, %v3758
        %v3903 = vxor.u32 %v3615, %v3759
        %v3904 = vxor.u32 %v3616, %v3760
        %v3905 = vxor.u32 %v3617, %v3761
        %v3906 = vxor.u32 %v3618, %v3762
        %v3907 = vxor.u32 %v3619, %v3763
        %v3908 = vxor.u32 %v3620, %v3764
        %v3909 = vxor.u32 %v3621, %v3765
        %v3910 = vxor.u32 %v3622, %v3766
        %v3911 = vxor.u32 %v3623, %v3767
        %v3912 = vxor.u32 %v3624, %v3768
        %v3913 = vxor.u32 %v3625, %v3769
        %v3914 = vxor.u32 %v3626, %v3770
        %v3915 = vxor.u32 %v3627, %v3771
        %v3916 = vxor.u32 %v3628, %v3772
        %v3917 = vxor.u32 %v3629, %v3773
        %v3918 = vxor.u32 %v3630, %v3774
        %v3919 = vxor.u32 %v3631, %v3775
        %v3920 = vxor.u32 %v3632, %v3776
        %v3921 = vxor.u32 %v3633, %v3777
        %v3922 = vxor.u32 %v3634, %v3778
        %v3923 = vxor.u32 %v3635, %v3779
        %v3924 = vxor.u32 %v3636, %v3780
        %v3925 = vxor.u32 %v3637, %v3781
        %v3926 = vxor.u32 %v3638, %v3782
        %v3927 = vxor.u32 %v3639, %v3783
        %v3928 = vxor.u32 %v3640, %v3784
        %v3929 = vmul.u32 %v3785, 2146121005
        %v3930 = vmul.u32 %v3786, 2146121005
        %v3931 = vmul.u32 %v3787, 2146121005
        %v3932 = vmul.u32 %v3788, 2146121005
        %v3933 = vmul.u32 %v3789, 2146121005
        %v3934 = vmul.u32 %v3790, 2146121005
        %v3935 = vmul.u32 %v3791, 2146121005
        %v3936 = vmul.u32 %v3792, 2146121005
        %v3937 = vmul.u32 %v3793, 2146121005
        %v3938 = vmul.u32 %v3794, 2146121005
        %v3939 = vmul.u32 %v3795, 2146121005
        %v3940 = vmul.u32 %v3796, 2146121005
        %v3941 = vmul.u32 %v3797, 2146121005
        %v3942 = vmul.u32 %v3798, 2146121005
        %v3943 = vmul.u32 %v3799, 2146121005
        %v3944 = vmul.u32 %v3800, 2146121005
        %v3945 = vmul.u32 %v3801, 2146121005
        %v3946 = vmul.u32 %v3802, 2146121005
        %v3947 = vmul.u32 %v3803, 2146121005
        %v3948 = vmul.u32 %v3804, 2146121005
        %v3949 = vmul.u32 %v3805, 2146121005
        %v3950 = vmul.u32 %v3806, 2146121005
        %v3951 = vmul.u32 %v3807, 2146121005
        %v3952 = vmul.u32 %v3808, 2146121005
        %v3953 = vmul.u32 %v3809, 2146121005
        %v3954 = vmul.u32 %v3810, 2146121005
        %v3955 = vmul.u32 %v3811, 2146121005
        %v3956 = vmul.u32 %v3812, 2146121005
        %v3957 = vmul.u32 %v3813, 2146121005
        %v3958 = vmul.u32 %v3814, 2146121005
        %v3959 = vmul.u32 %v3815, 2146121005
        %v3960 = vmul.u32 %v3816, 2146121005
        %v3961 = vmul.u32 %v3817, 2146121005
        %v3962 = vmul.u32 %v3818, 2146121005
        %v3963 = vmul.u32 %v3819, 2146121005
        %v3964 = vmul.u32 %v3820, 2146121005
        %v3965 = vmul.u32 %v3821, 2146121005
        %v3966 = vmul.u32 %v3822, 2146121005
        %v3967 = vmul.u32 %v3823, 2146121005
        %v3968 = vmul.u32 %v3824, 2146121005
        %v3969 = vmul.u32 %v3825, 2146121005
        %v3970 = vmul.u32 %v3826, 2146121005
        %v3971 = vmul.u32 %v3827, 2146121005
        %v3972 = vmul.u32 %v3828, 2146121005
        %v3973 = vmul.u32 %v3829, 2146121005
        %v3974 = vmul.u32 %v3830, 2146121005
        %v3975 = vmul.u32 %v3831, 2146121005
        %v3976 = vmul.u32 %v3832, 2146121005
        %v3977 = vmul.u32 %v3833, 2146121005
        %v3978 = vmul.u32 %v3834, 2146121005
        %v3979 = vmul.u32 %v3835, 2146121005
        %v3980 = vmul.u32 %v3836, 2146121005
        %v3981 = vmul.u32 %v3837, 2146121005
        %v3982 = vmul.u32 %v3838, 2146121005
        %v3983 = vmul.u32 %v3839, 2146121005
        %v3984 = vmul.u32 %v3840, 2146121005
        %v3985 = vmul.u32 %v3841, 2146121005
        %v3986 = vmul.u32 %v3842, 2146121005
        %v3987 = vmul.u32 %v3843, 2146121005
        %v3988 = vmul.u32 %v3844, 2146121005
        %v3989 = vmul.u32 %v3845, 2146121005
        %v3990 = vmul.u32 %v3846, 2146121005
        %v3991 = vmul.u32 %v3847, 2146121005
        %v3992 = vmul.u32 %v3848, 2146121005
        %v3993 = vmul.u32 %v3849, 2146121005
        %v3994 = vmul.u32 %v3850, 2146121005
        %v3995 = vmul.u32 %v3851, 2146121005
        %v3996 = vmul.u32 %v3852, 2146121005
        %v3997 = vmul.u32 %v3853, 2146121005
        %v3998 = vmul.u32 %v3854, 2146121005
        %v3999 = vmul.u32 %v3855, 2146121005
        %v4000 = vmul.u32 %v3856, 2146121005
        %v4001 = vmul.u32 %v3857, 2146121005
        %v4002 = vmul.u32 %v3858, 2146121005
        %v4003 = vmul.u32 %v3859, 2146121005
        %v4004 = vmul.u32 %v3860, 2146121005
        %v4005 = vmul.u32 %v3861, 2146121005
        %v4006 = vmul.u32 %v3862, 2146121005
        %v4007 = vmul.u32 %v3863, 2146121005
        %v4008 = vmul.u32 %v3864, 2146121005
        %v4009 = vmul.u32 %v3865, 2146121005
        %v4010 = vmul.u32 %v3866, 2146121005
        %v4011 = vmul.u32 %v3867, 2146121005
        %v4012 = vmul.u32 %v3868, 2146121005
        %v4013 = vmul.u32 %v3869, 2146121005
        %v4014 = vmul.u32 %v3870, 2146121005
        %v4015 = vmul.u32 %v3871, 2146121005
        %v4016 = vmul.u32 %v3872, 2146121005
        %v4017 = vmul.u32 %v3873, 2146121005
        %v4018 = vmul.u32 %v3874, 2146121005
        %v4019 = vmul.u32 %v3875, 2146121005
        %v4020 = vmul.u32 %v3876, 2146121005
        %v4021 = vmul.u32 %v3877, 2146121005
        %v4022 = vmul.u32 %v3878, 2146121005
        %v4023 = vmul.u32 %v3879, 2146121005
        %v4024 = vmul.u32 %v3880, 2146121005
        %v4025 = vmul.u32 %v3881, 2146121005
        %v4026 = vmul.u32 %v3882, 2146121005
        %v4027 = vmul.u32 %v3883, 2146121005
        %v4028 = vmul.u32 %v3884, 2146121005
        %v4029 = vmul.u32 %v3885, 2146121005
        %v4030 = vmul.u32 %v3886, 2146121005
        %v4031 = vmul.u32 %v3887, 2146121005
        %v4032 = vmul.u32 %v3888, 2146121005
        %v4033 = vmul.u32 %v3889, 2146121005
        %v4034 = vmul.u32 %v3890, 2146121005
        %v4035 = vmul.u32 %v3891, 2146121005
        %v4036 = vmul.u32 %v3892, 2146121005
        %v4037 = vmul.u32 %v3893, 2146121005
        %v4038 = vmul.u32 %v3894, 2146121005
        %v4039 = vmul.u32 %v3895, 2146121005
        %v4040 = vmul.u32 %v3896, 2146121005
        %v4041 = vmul.u32 %v3897, 2146121005
        %v4042 = vmul.u32 %v3898, 2146121005
        %v4043 = vmul.u32 %v3899, 2146121005
        %v4044 = vmul.u32 %v3900, 2146121005
        %v4045 = vmul.u32 %v3901, 2146121005
        %v4046 = vmul.u32 %v3902, 2146121005
        %v4047 = vmul.u32 %v3903, 2146121005
        %v4048 = vmul.u32 %v3904, 2146121005
        %v4049 = vmul.u32 %v3905, 2146121005
        %v4050 = vmul.u32 %v3906, 2146121005
        %v4051 = vmul.u32 %v3907, 2146121005
        %v4052 = vmul.u32 %v3908, 2146121005
        %v4053 = vmul.u32 %v3909, 2146121005
        %v4054 = vmul.u32 %v3910, 2146121005
        %v4055 = vmul.u32 %v3911, 2146121005
        %v4056 = vmul.u32 %v3912, 2146121005
        %v4057 = vmul.u32 %v3913, 2146121005
        %v4058 = vmul.u32 %v3914, 2146121005
        %v4059 = vmul.u32 %v3915, 2146121005
        %v4060 = vmul.u32 %v3916, 2146121005
        %v4061 = vmul.u32 %v3917, 2146121005
        %v4062 = vmul.u32 %v3918, 2146121005
        %v4063 = vmul.u32 %v3919, 2146121005
        %v4064 = vmul.u32 %v3920, 2146121005
        %v4065 = vmul.u32 %v3921, 2146121005
        %v4066 = vmul.u32 %v3922, 2146121005
        %v4067 = vmul.u32 %v3923, 2146121005
        %v4068 = vmul.u32 %v3924, 2146121005
        %v4069 = vmul.u32 %v3925, 2146121005
        %v4070 = vmul.u32 %v3926, 2146121005
        %v4071 = vmul.u32 %v3927, 2146121005
        %v4072 = vmul.u32 %v3928, 2146121005
        %v4073 = vshrl.u32 %v3929, 15
        %v4074 = vshrl.u32 %v3930, 15
        %v4075 = vshrl.u32 %v3931, 15
        %v4076 = vshrl.u32 %v3932, 15
        %v4077 = vshrl.u32 %v3933, 15
        %v4078 = vshrl.u32 %v3934, 15
        %v4079 = vshrl.u32 %v3935, 15
        %v4080 = vshrl.u32 %v3936, 15
        %v4081 = vshrl.u32 %v3937, 15
        %v4082 = vshrl.u32 %v3938, 15
        %v4083 = vshrl.u32 %v3939, 15
        %v4084 = vshrl.u32 %v3940, 15
        %v4085 = vshrl.u32 %v3941, 15
        %v4086 = vshrl.u32 %v3942, 15
        %v4087 = vshrl.u32 %v3943, 15
        %v4088 = vshrl.u32 %v3944, 15
        %v4089 = vshrl.u32 %v3945, 15
        %v4090 = vshrl.u32 %v3946, 15
        %v4091 = vshrl.u32 %v3947, 15
        %v4092 = vshrl.u32 %v3948, 15
        %v4093 = vshrl.u32 %v3949, 15
        %v4094 = vshrl.u32 %v3950, 15
        %v4095 = vshrl.u32 %v3951, 15
        %v4096 = vshrl.u32 %v3952, 15
        %v4097 = vshrl.u32 %v3953, 15
        %v4098 = vshrl.u32 %v3954, 15
        %v4099 = vshrl.u32 %v3955, 15
        %v4100 = vshrl.u32 %v3956, 15
        %v4101 = vshrl.u32 %v3957, 15
        %v4102 = vshrl.u32 %v3958, 15
        %v4103 = vshrl.u32 %v3959, 15
        %v4104 = vshrl.u32 %v3960, 15
        %v4105 = vshrl.u32 %v3961, 15
        %v4106 = vshrl.u32 %v3962, 15
        %v4107 = vshrl.u32 %v3963, 15
        %v4108 = vshrl.u32 %v3964, 15
        %v4109 = vshrl.u32 %v3965, 15
        %v4110 = vshrl.u32 %v3966, 15
        %v4111 = vshrl.u32 %v3967, 15
        %v4112 = vshrl.u32 %v3968, 15
        %v4113 = vshrl.u32 %v3969, 15
        %v4114 = vshrl.u32 %v3970, 15
        %v4115 = vshrl.u32 %v3971, 15
        %v4116 = vshrl.u32 %v3972, 15
        %v4117 = vshrl.u32 %v3973, 15
        %v4118 = vshrl.u32 %v3974, 15
        %v4119 = vshrl.u32 %v3975, 15
        %v4120 = vshrl.u32 %v3976, 15
        %v4121 = vshrl.u32 %v3977, 15
        %v4122 = vshrl.u32 %v3978, 15
        %v4123 = vshrl.u32 %v3979, 15
        %v4124 = vshrl.u32 %v3980, 15
        %v4125 = vshrl.u32 %v3981, 15
        %v4126 = vshrl.u32 %v3982, 15
        %v4127 = vshrl.u32 %v3983, 15
        %v4128 = vshrl.u32 %v3984, 15
        %v4129 = vshrl.u32 %v3985, 15
        %v4130 = vshrl.u32 %v3986, 15
        %v4131 = vshrl.u32 %v3987, 15
        %v4132 = vshrl.u32 %v3988, 15
        %v4133 = vshrl.u32 %v3989, 15
        %v4134 = vshrl.u32 %v3990, 15
        %v4135 = vshrl.u32 %v3991, 15
        %v4136 = vshrl.u32 %v3992, 15
        %v4137 = vshrl.u32 %v3993, 15
        %v4138 = vshrl.u32 %v3994, 15
        %v4139 = vshrl.u32 %v3995, 15
        %v4140 = vshrl.u32 %v3996, 15
        %v4141 = vshrl.u32 %v3997, 15
        %v4142 = vshrl.u32 %v3998, 15
        %v4143 = vshrl.u32 %v3999, 15
        %v4144 = vshrl.u32 %v4000, 15
        %v4145 = vshrl.u32 %v4001, 15
        %v4146 = vshrl.u32 %v4002, 15
        %v4147 = vshrl.u32 %v4003, 15
        %v4148 = vshrl.u32 %v4004, 15
        %v4149 = vshrl.u32 %v4005, 15
        %v4150 = vshrl.u32 %v4006, 15
        %v4151 = vshrl.u32 %v4007, 15
        %v4152 = vshrl.u32 %v4008, 15
        %v4153 = vshrl.u32 %v4009, 15
        %v4154 = vshrl.u32 %v4010, 15
        %v4155 = vshrl.u32 %v4011, 15
        %v4156 = vshrl.u32 %v4012, 15
        %v4157 = vshrl.u32 %v4013, 15
        %v4158 = vshrl.u32 %v4014, 15
        %v4159 = vshrl.u32 %v4015, 15
        %v4160 = vshrl.u32 %v4016, 15
        %v4161 = vshrl.u32 %v4017, 15
        %v4162 = vshrl.u32 %v4018, 15
        %v4163 = vshrl.u32 %v4019, 15
        %v4164 = vshrl.u32 %v4020, 15
        %v4165 = vshrl.u32 %v4021, 15
        %v4166 = vshrl.u32 %v4022, 15
        %v4167 = vshrl.u32 %v4023, 15
        %v4168 = vshrl.u32 %v4024, 15
        %v4169 = vshrl.u32 %v4025, 15
        %v4170 = vshrl.u32 %v4026, 15
        %v4171 = vshrl.u32 %v4027, 15
        %v4172 = vshrl.u32 %v4028, 15
        %v4173 = vshrl.u32 %v4029, 15
        %v4174 = vshrl.u32 %v4030, 15
        %v4175 = vshrl.u32 %v4031, 15
        %v4176 = vshrl.u32 %v4032, 15
        %v4177 = vshrl.u32 %v4033, 15
        %v4178 = vshrl.u32 %v4034, 15
        %v4179 = vshrl.u32 %v4035, 15
        %v4180 = vshrl.u32 %v4036, 15
        %v4181 = vshrl.u32 %v4037, 15
        %v4182 = vshrl.u32 %v4038, 15
        %v4183 = vshrl.u32 %v4039, 15
        %v4184 = vshrl.u32 %v4040, 15
        %v4185 = vshrl.u32 %v4041, 15
        %v4186 = vshrl.u32 %v4042, 15
        %v4187 = vshrl.u32 %v4043, 15
        %v4188 = vshrl.u32 %v4044, 15
        %v4189 = vshrl.u32 %v4045, 15
        %v4190 = vshrl.u32 %v4046, 15
        %v4191 = vshrl.u32 %v4047, 15
        %v4192 = vshrl.u32 %v4048, 15
        %v4193 = vshrl.u32 %v4049, 15
        %v4194 = vshrl.u32 %v4050, 15
        %v4195 = vshrl.u32 %v4051, 15
        %v4196 = vshrl.u32 %v4052, 15
        %v4197 = vshrl.u32 %v4053, 15
        %v4198 = vshrl.u32 %v4054, 15
        %v4199 = vshrl.u32 %v4055, 15
        %v4200 = vshrl.u32 %v4056, 15
        %v4201 = vshrl.u32 %v4057, 15
        %v4202 = vshrl.u32 %v4058, 15
        %v4203 = vshrl.u32 %v4059, 15
        %v4204 = vshrl.u32 %v4060, 15
        %v4205 = vshrl.u32 %v4061, 15
        %v4206 = vshrl.u32 %v4062, 15
        %v4207 = vshrl.u32 %v4063, 15
        %v4208 = vshrl.u32 %v4064, 15
        %v4209 = vshrl.u32 %v4065, 15
        %v4210 = vshrl.u32 %v4066, 15
        %v4211 = vshrl.u32 %v4067, 15
        %v4212 = vshrl.u32 %v4068, 15
        %v4213 = vshrl.u32 %v4069, 15
        %v4214 = vshrl.u32 %v4070, 15
        %v4215 = vshrl.u32 %v4071, 15
        %v4216 = vshrl.u32 %v4072, 15
        %v4217 = vxor.u32 %v3929, %v4073
        %v4218 = vxor.u32 %v3930, %v4074
        %v4219 = vxor.u32 %v3931, %v4075
        %v4220 = vxor.u32 %v3932, %v4076
        %v4221 = vxor.u32 %v3933, %v4077
        %v4222 = vxor.u32 %v3934, %v4078
        %v4223 = vxor.u32 %v3935, %v4079
        %v4224 = vxor.u32 %v3936, %v4080
        %v4225 = vxor.u32 %v3937, %v4081
        %v4226 = vxor.u32 %v3938, %v4082
        %v4227 = vxor.u32 %v3939, %v4083
        %v4228 = vxor.u32 %v3940, %v4084
        %v4229 = vxor.u32 %v3941, %v4085
        %v4230 = vxor.u32 %v3942, %v4086
        %v4231 = vxor.u32 %v3943, %v4087
        %v4232 = vxor.u32 %v3944, %v4088
        %v4233 = vxor.u32 %v3945, %v4089
        %v4234 = vxor.u32 %v3946, %v4090
        %v4235 = vxor.u32 %v3947, %v4091
        %v4236 = vxor.u32 %v3948, %v4092
        %v4237 = vxor.u32 %v3949, %v4093
        %v4238 = vxor.u32 %v3950, %v4094
        %v4239 = vxor.u32 %v3951, %v4095
        %v4240 = vxor.u32 %v3952, %v4096
        %v4241 = vxor.u32 %v3953, %v4097
        %v4242 = vxor.u32 %v3954, %v4098
        %v4243 = vxor.u32 %v3955, %v4099
        %v4244 = vxor.u32 %v3956, %v4100
        %v4245 = vxor.u32 %v3957, %v4101
        %v4246 = vxor.u32 %v3958, %v4102
        %v4247 = vxor.u32 %v3959, %v4103
        %v4248 = vxor.u32 %v3960, %v4104
        %v4249 = vxor.u32 %v3961, %v4105
        %v4250 = vxor.u32 %v3962, %v4106
        %v4251 = vxor.u32 %v3963, %v4107
        %v4252 = vxor.u32 %v3964, %v4108
        %v4253 = vxor.u32 %v3965, %v4109
        %v4254 = vxor.u32 %v3966, %v4110
        %v4255 = vxor.u32 %v3967, %v4111
        %v4256 = vxor.u32 %v3968, %v4112
        %v4257 = vxor.u32 %v3969, %v4113
        %v4258 = vxor.u32 %v3970, %v4114
        %v4259 = vxor.u32 %v3971, %v4115
        %v4260 = vxor.u32 %v3972, %v4116
        %v4261 = vxor.u32 %v3973, %v4117
        %v4262 = vxor.u32 %v3974, %v4118
        %v4263 = vxor.u32 %v3975, %v4119
        %v4264 = vxor.u32 %v3976, %v4120
        %v4265 = vxor.u32 %v3977, %v4121
        %v4266 = vxor.u32 %v3978, %v4122
        %v4267 = vxor.u32 %v3979, %v4123
        %v4268 = vxor.u32 %v3980, %v4124
        %v4269 = vxor.u32 %v3981, %v4125
        %v4270 = vxor.u32 %v3982, %v4126
        %v4271 = vxor.u32 %v3983, %v4127
        %v4272 = vxor.u32 %v3984, %v4128
        %v4273 = vxor.u32 %v3985, %v4129
        %v4274 = vxor.u32 %v3986, %v4130
        %v4275 = vxor.u32 %v3987, %v4131
        %v4276 = vxor.u32 %v3988, %v4132
        %v4277 = vxor.u32 %v3989, %v4133
        %v4278 = vxor.u32 %v3990, %v4134
        %v4279 = vxor.u32 %v3991, %v4135
        %v4280 = vxor.u32 %v3992, %v4136
        %v4281 = vxor.u32 %v3993, %v4137
        %v4282 = vxor.u32 %v3994, %v4138
        %v4283 = vxor.u32 %v3995, %v4139
        %v4284 = vxor.u32 %v3996, %v4140
        %v4285 = vxor.u32 %v3997, %v4141
        %v4286 = vxor.u32 %v3998, %v4142
        %v4287 = vxor.u32 %v3999, %v4143
        %v4288 = vxor.u32 %v4000, %v4144
        %v4289 = vxor.u32 %v4001, %v4145
        %v4290 = vxor.u32 %v4002, %v4146
        %v4291 = vxor.u32 %v4003, %v4147
        %v4292 = vxor.u32 %v4004, %v4148
        %v4293 = vxor.u32 %v4005, %v4149
        %v4294 = vxor.u32 %v4006, %v4150
        %v4295 = vxor.u32 %v4007, %v4151
        %v4296 = vxor.u32 %v4008, %v4152
        %v4297 = vxor.u32 %v4009, %v4153
        %v4298 = vxor.u32 %v4010, %v4154
        %v4299 = vxor.u32 %v4011, %v4155
        %v4300 = vxor.u32 %v4012, %v4156
        %v4301 = vxor.u32 %v4013, %v4157
        %v4302 = vxor.u32 %v4014, %v4158
        %v4303 = vxor.u32 %v4015, %v4159
        %v4304 = vxor.u32 %v4016, %v4160
        %v4305 = vxor.u32 %v4017, %v4161
        %v4306 = vxor.u32 %v4018, %v4162
        %v4307 = vxor.u32 %v4019, %v4163
        %v4308 = vxor.u32 %v4020, %v4164
        %v4309 = vxor.u32 %v4021, %v4165
        %v4310 = vxor.u32 %v4022, %v4166
        %v4311 = vxor.u32 %v4023, %v4167
        %v4312 = vxor.u32 %v4024, %v4168
        %v4313 = vxor.u32 %v4025, %v4169
        %v4314 = vxor.u32 %v4026, %v4170
        %v4315 = vxor.u32 %v4027, %v4171
        %v4316 = vxor.u32 %v4028, %v4172
        %v4317 = vxor.u32 %v4029, %v4173
        %v4318 = vxor.u32 %v4030, %v4174
        %v4319 = vxor.u32 %v4031, %v4175
        %v4320 = vxor.u32 %v4032, %v4176
        %v4321 = vxor.u32 %v4033, %v4177
        %v4322 = vxor.u32 %v4034, %v4178
        %v4323 = vxor.u32 %v4035, %v4179
        %v4324 = vxor.u32 %v4036, %v4180
        %v4325 = vxor.u32 %v4037, %v4181
        %v4326 = vxor.u32 %v4038, %v4182
        %v4327 = vxor.u32 %v4039, %v4183
        %v4328 = vxor.u32 %v4040, %v4184
        %v4329 = vxor.u32 %v4041, %v4185
        %v4330 = vxor.u32 %v4042, %v4186
        %v4331 = vxor.u32 %v4043, %v4187
        %v4332 = vxor.u32 %v4044, %v4188
        %v4333 = vxor.u32 %v4045, %v4189
        %v4334 = vxor.u32 %v4046, %v4190
        %v4335 = vxor.u32 %v4047, %v4191
        %v4336 = vxor.u32 %v4048, %v4192
        %v4337 = vxor.u32 %v4049, %v4193
        %v4338 = vxor.u32 %v4050, %v4194
        %v4339 = vxor.u32 %v4051, %v4195
        %v4340 = vxor.u32 %v4052, %v4196
        %v4341 = vxor.u32 %v4053, %v4197
        %v4342 = vxor.u32 %v4054, %v4198
        %v4343 = vxor.u32 %v4055, %v4199
        %v4344 = vxor.u32 %v4056, %v4200
        %v4345 = vxor.u32 %v4057, %v4201
        %v4346 = vxor.u32 %v4058, %v4202
        %v4347 = vxor.u32 %v4059, %v4203
        %v4348 = vxor.u32 %v4060, %v4204
        %v4349 = vxor.u32 %v4061, %v4205
        %v4350 = vxor.u32 %v4062, %v4206
        %v4351 = vxor.u32 %v4063, %v4207
        %v4352 = vxor.u32 %v4064, %v4208
        %v4353 = vxor.u32 %v4065, %v4209
        %v4354 = vxor.u32 %v4066, %v4210
        %v4355 = vxor.u32 %v4067, %v4211
        %v4356 = vxor.u32 %v4068, %v4212
        %v4357 = vxor.u32 %v4069, %v4213
        %v4358 = vxor.u32 %v4070, %v4214
        %v4359 = vxor.u32 %v4071, %v4215
        %v4360 = vxor.u32 %v4072, %v4216
        %v4361 = vmul.u32 %v4217, 2221713035
        %v4362 = vmul.u32 %v4218, 2221713035
        %v4363 = vmul.u32 %v4219, 2221713035
        %v4364 = vmul.u32 %v4220, 2221713035
        %v4365 = vmul.u32 %v4221, 2221713035
        %v4366 = vmul.u32 %v4222, 2221713035
        %v4367 = vmul.u32 %v4223, 2221713035
        %v4368 = vmul.u32 %v4224, 2221713035
        %v4369 = vmul.u32 %v4225, 2221713035
        %v4370 = vmul.u32 %v4226, 2221713035
        %v4371 = vmul.u32 %v4227, 2221713035
        %v4372 = vmul.u32 %v4228, 2221713035
        %v4373 = vmul.u32 %v4229, 2221713035
        %v4374 = vmul.u32 %v4230, 2221713035
        %v4375 = vmul.u32 %v4231, 2221713035
        %v4376 = vmul.u32 %v4232, 2221713035
        %v4377 = vmul.u32 %v4233, 2221713035
        %v4378 = vmul.u32 %v4234, 2221713035
        %v4379 = vmul.u32 %v4235, 2221713035
        %v4380 = vmul.u32 %v4236, 2221713035
        %v4381 = vmul.u32 %v4237, 2221713035
        %v4382 = vmul.u32 %v4238, 2221713035
        %v4383 = vmul.u32 %v4239, 2221713035
        %v4384 = vmul.u32 %v4240, 2221713035
        %v4385 = vmul.u32 %v4241, 2221713035
        %v4386 = vmul.u32 %v4242, 2221713035
        %v4387 = vmul.u32 %v4243, 2221713035
        %v4388 = vmul.u32 %v4244, 2221713035
        %v4389 = vmul.u32 %v4245, 2221713035
        %v4390 = vmul.u32 %v4246, 2221713035
        %v4391 = vmul.u32 %v4247, 2221713035
        %v4392 = vmul.u32 %v4248, 2221713035
        %v4393 = vmul.u32 %v4249, 2221713035
        %v4394 = vmul.u32 %v4250, 2221713035
        %v4395 = vmul.u32 %v4251, 2221713035
        %v4396 = vmul.u32 %v4252, 2221713035
        %v4397 = vmul.u32 %v4253, 2221713035
        %v4398 = vmul.u32 %v4254, 2221713035
        %v4399 = vmul.u32 %v4255, 2221713035
        %v4400 = vmul.u32 %v4256, 2221713035
        %v4401 = vmul.u32 %v4257, 2221713035
        %v4402 = vmul.u32 %v4258, 2221713035
        %v4403 = vmul.u32 %v4259, 2221713035
        %v4404 = vmul.u32 %v4260, 2221713035
        %v4405 = vmul.u32 %v4261, 2221713035
        %v4406 = vmul.u32 %v4262, 2221713035
        %v4407 = vmul.u32 %v4263, 2221713035
        %v4408 = vmul.u32 %v4264, 2221713035
        %v4409 = vmul.u32 %v4265, 2221713035
        %v4410 = vmul.u32 %v4266, 2221713035
        %v4411 = vmul.u32 %v4267, 2221713035
        %v4412 = vmul.u32 %v4268, 2221713035
        %v4413 = vmul.u32 %v4269, 2221713035
        %v4414 = vmul.u32 %v4270, 2221713035
        %v4415 = vmul.u32 %v4271, 2221713035
        %v4416 = vmul.u32 %v4272, 2221713035
        %v4417 = vmul.u32 %v4273, 2221713035
        %v4418 = vmul.u32 %v4274, 2221713035
        %v4419 = vmul.u32 %v4275, 2221713035
        %v4420 = vmul.u32 %v4276, 2221713035
        %v4421 = vmul.u32 %v4277, 2221713035
        %v4422 = vmul.u32 %v4278, 2221713035
        %v4423 = vmul.u32 %v4279, 2221713035
        %v4424 = vmul.u32 %v4280, 2221713035
        %v4425 = vmul.u32 %v4281, 2221713035
        %v4426 = vmul.u32 %v4282, 2221713035
        %v4427 = vmul.u32 %v4283, 2221713035
        %v4428 = vmul.u32 %v4284, 2221713035
        %v4429 = vmul.u32 %v4285, 2221713035
        %v4430 = vmul.u32 %v4286, 2221713035
        %v4431 = vmul.u32 %v4287, 2221713035
        %v4432 = vmul.u32 %v4288, 2221713035
        %v4433 = vmul.u32 %v4289, 2221713035
        %v4434 = vmul.u32 %v4290, 2221713035
        %v4435 = vmul.u32 %v4291, 2221713035
        %v4436 = vmul.u32 %v4292, 2221713035
        %v4437 = vmul.u32 %v4293, 2221713035
        %v4438 = vmul.u32 %v4294, 2221713035
        %v4439 = vmul.u32 %v4295, 2221713035
        %v4440 = vmul.u32 %v4296, 2221713035
        %v4441 = vmul.u32 %v4297, 2221713035
        %v4442 = vmul.u32 %v4298, 2221713035
        %v4443 = vmul.u32 %v4299, 2221713035
        %v4444 = vmul.u32 %v4300, 2221713035
        %v4445 = vmul.u32 %v4301, 2221713035
        %v4446 = vmul.u32 %v4302, 2221713035
        %v4447 = vmul.u32 %v4303, 2221713035
        %v4448 = vmul.u32 %v4304, 2221713035
        %v4449 = vmul.u32 %v4305, 2221713035
        %v4450 = vmul.u32 %v4306, 2221713035
        %v4451 = vmul.u32 %v4307, 2221713035
        %v4452 = vmul.u32 %v4308, 2221713035
        %v4453 = vmul.u32 %v4309, 2221713035
        %v4454 = vmul.u32 %v4310, 2221713035
        %v4455 = vmul.u32 %v4311, 2221713035
        %v4456 = vmul.u32 %v4312, 2221713035
        %v4457 = vmul.u32 %v4313, 2221713035
        %v4458 = vmul.u32 %v4314, 2221713035
        %v4459 = vmul.u32 %v4315, 2221713035
        %v4460 = vmul.u32 %v4316, 2221713035
        %v4461 = vmul.u32 %v4317, 2221713035
        %v4462 = vmul.u32 %v4318, 2221713035
        %v4463 = vmul.u32 %v4319, 2221713035
        %v4464 = vmul.u32 %v4320, 2221713035
        %v4465 = vmul.u32 %v4321, 2221713035
        %v4466 = vmul.u32 %v4322, 2221713035
        %v4467 = vmul.u32 %v4323, 2221713035
        %v4468 = vmul.u32 %v4324, 2221713035
        %v4469 = vmul.u32 %v4325, 2221713035
        %v4470 = vmul.u32 %v4326, 2221713035
        %v4471 = vmul.u32 %v4327, 2221713035
        %v4472 = vmul.u32 %v4328, 2221713035
        %v4473 = vmul.u32 %v4329, 2221713035
        %v4474 = vmul.u32 %v4330, 2221713035
        %v4475 = vmul.u32 %v4331, 2221713035
        %v4476 = vmul.u32 %v4332, 2221713035
        %v4477 = vmul.u32 %v4333, 2221713035
        %v4478 = vmul.u32 %v4334, 2221713035
        %v4479 = vmul.u32 %v4335, 2221713035
        %v4480 = vmul.u32 %v4336, 2221713035
        %v4481 = vmul.u32 %v4337, 2221713035
        %v4482 = vmul.u32 %v4338, 2221713035
        %v4483 = vmul.u32 %v4339, 2221713035
        %v4484 = vmul.u32 %v4340, 2221713035
        %v4485 = vmul.u32 %v4341, 2221713035
        %v4486 = vmul.u32 %v4342, 2221713035
        %v4487 = vmul.u32 %v4343, 2221713035
        %v4488 = vmul.u32 %v4344, 2221713035
        %v4489 = vmul.u32 %v4345, 2221713035
        %v4490 = vmul.u32 %v4346, 2221713035
        %v4491 = vmul.u32 %v4347, 2221713035
        %v4492 = vmul.u32 %v4348, 2221713035
        %v4493 = vmul.u32 %v4349, 2221713035
        %v4494 = vmul.u32 %v4350, 2221713035
        %v4495 = vmul.u32 %v4351, 2221713035
        %v4496 = vmul.u32 %v4352, 2221713035
        %v4497 = vmul.u32 %v4353, 2221713035
        %v4498 = vmul.u32 %v4354, 2221713035
        %v4499 = vmul.u32 %v4355, 2221713035
        %v4500 = vmul.u32 %v4356, 2221713035
        %v4501 = vmul.u32 %v4357, 2221713035
        %v4502 = vmul.u32 %v4358, 2221713035
        %v4503 = vmul.u32 %v4359, 2221713035
        %v4504 = vmul.u32 %v4360, 2221713035
        %v4505 = vshrl.u32 %v4361, 16
        %v4506 = vshrl.u32 %v4362, 16
        %v4507 = vshrl.u32 %v4363, 16
        %v4508 = vshrl.u32 %v4364, 16
        %v4509 = vshrl.u32 %v4365, 16
        %v4510 = vshrl.u32 %v4366, 16
        %v4511 = vshrl.u32 %v4367, 16
        %v4512 = vshrl.u32 %v4368, 16
        %v4513 = vshrl.u32 %v4369, 16
        %v4514 = vshrl.u32 %v4370, 16
        %v4515 = vshrl.u32 %v4371, 16
        %v4516 = vshrl.u32 %v4372, 16
        %v4517 = vshrl.u32 %v4373, 16
        %v4518 = vshrl.u32 %v4374, 16
        %v4519 = vshrl.u32 %v4375, 16
        %v4520 = vshrl.u32 %v4376, 16
        %v4521 = vshrl.u32 %v4377, 16
        %v4522 = vshrl.u32 %v4378, 16
        %v4523 = vshrl.u32 %v4379, 16
        %v4524 = vshrl.u32 %v4380, 16
        %v4525 = vshrl.u32 %v4381, 16
        %v4526 = vshrl.u32 %v4382, 16
        %v4527 = vshrl.u32 %v4383, 16
        %v4528 = vshrl.u32 %v4384, 16
        %v4529 = vshrl.u32 %v4385, 16
        %v4530 = vshrl.u32 %v4386, 16
        %v4531 = vshrl.u32 %v4387, 16
        %v4532 = vshrl.u32 %v4388, 16
        %v4533 = vshrl.u32 %v4389, 16
        %v4534 = vshrl.u32 %v4390, 16
        %v4535 = vshrl.u32 %v4391, 16
        %v4536 = vshrl.u32 %v4392, 16
        %v4537 = vshrl.u32 %v4393, 16
        %v4538 = vshrl.u32 %v4394, 16
        %v4539 = vshrl.u32 %v4395, 16
        %v4540 = vshrl.u32 %v4396, 16
        %v4541 = vshrl.u32 %v4397, 16
        %v4542 = vshrl.u32 %v4398, 16
        %v4543 = vshrl.u32 %v4399, 16
        %v4544 = vshrl.u32 %v4400, 16
        %v4545 = vshrl.u32 %v4401, 16
        %v4546 = vshrl.u32 %v4402, 16
        %v4547 = vshrl.u32 %v4403, 16
        %v4548 = vshrl.u32 %v4404, 16
        %v4549 = vshrl.u32 %v4405, 16
        %v4550 = vshrl.u32 %v4406, 16
        %v4551 = vshrl.u32 %v4407, 16
        %v4552 = vshrl.u32 %v4408, 16
        %v4553 = vshrl.u32 %v4409, 16
        %v4554 = vshrl.u32 %v4410, 16
        %v4555 = vshrl.u32 %v4411, 16
        %v4556 = vshrl.u32 %v4412, 16
        %v4557 = vshrl.u32 %v4413, 16
        %v4558 = vshrl.u32 %v4414, 16
        %v4559 = vshrl.u32 %v4415, 16
        %v4560 = vshrl.u32 %v4416, 16
        %v4561 = vshrl.u32 %v4417, 16
        %v4562 = vshrl.u32 %v4418, 16
        %v4563 = vshrl.u32 %v4419, 16
        %v4564 = vshrl.u32 %v4420, 16
        %v4565 = vshrl.u32 %v4421, 16
        %v4566 = vshrl.u32 %v4422, 16
        %v4567 = vshrl.u32 %v4423, 16
        %v4568 = vshrl.u32 %v4424, 16
        %v4569 = vshrl.u32 %v4425, 16
        %v4570 = vshrl.u32 %v4426, 16
        %v4571 = vshrl.u32 %v4427, 16
        %v4572 = vshrl.u32 %v4428, 16
        %v4573 = vshrl.u32 %v4429, 16
        %v4574 = vshrl.u32 %v4430, 16
        %v4575 = vshrl.u32 %v4431, 16
        %v4576 = vshrl.u32 %v4432, 16
        %v4577 = vshrl.u32 %v4433, 16
        %v4578 = vshrl.u32 %v4434, 16
        %v4579 = vshrl.u32 %v4435, 16
        %v4580 = vshrl.u32 %v4436, 16
        %v4581 = vshrl.u32 %v4437, 16
        %v4582 = vshrl.u32 %v4438, 16
        %v4583 = vshrl.u32 %v4439, 16
        %v4584 = vshrl.u32 %v4440, 16
        %v4585 = vshrl.u32 %v4441, 16
        %v4586 = vshrl.u32 %v4442, 16
        %v4587 = vshrl.u32 %v4443, 16
        %v4588 = vshrl.u32 %v4444, 16
        %v4589 = vshrl.u32 %v4445, 16
        %v4590 = vshrl.u32 %v4446, 16
        %v4591 = vshrl.u32 %v4447, 16
        %v4592 = vshrl.u32 %v4448, 16
        %v4593 = vshrl.u32 %v4449, 16
        %v4594 = vshrl.u32 %v4450, 16
        %v4595 = vshrl.u32 %v4451, 16
        %v4596 = vshrl.u32 %v4452, 16
        %v4597 = vshrl.u32 %v4453, 16
        %v4598 = vshrl.u32 %v4454, 16
        %v4599 = vshrl.u32 %v4455, 16
        %v4600 = vshrl.u32 %v4456, 16
        %v4601 = vshrl.u32 %v4457, 16
        %v4602 = vshrl.u32 %v4458, 16
        %v4603 = vshrl.u32 %v4459, 16
        %v4604 = vshrl.u32 %v4460, 16
        %v4605 = vshrl.u32 %v4461, 16
        %v4606 = vshrl.u32 %v4462, 16
        %v4607 = vshrl.u32 %v4463, 16
        %v4608 = vshrl.u32 %v4464, 16
        %v4609 = vshrl.u32 %v4465, 16
        %v4610 = vshrl.u32 %v4466, 16
        %v4611 = vshrl.u32 %v4467, 16
        %v4612 = vshrl.u32 %v4468, 16
        %v4613 = vshrl.u32 %v4469, 16
        %v4614 = vshrl.u32 %v4470, 16
        %v4615 = vshrl.u32 %v4471, 16
        %v4616 = vshrl.u32 %v4472, 16
        %v4617 = vshrl.u32 %v4473, 16
        %v4618 = vshrl.u32 %v4474, 16
        %v4619 = vshrl.u32 %v4475, 16
        %v4620 = vshrl.u32 %v4476, 16
        %v4621 = vshrl.u32 %v4477, 16
        %v4622 = vshrl.u32 %v4478, 16
        %v4623 = vshrl.u32 %v4479, 16
        %v4624 = vshrl.u32 %v4480, 16
        %v4625 = vshrl.u32 %v4481, 16
        %v4626 = vshrl.u32 %v4482, 16
        %v4627 = vshrl.u32 %v4483, 16
        %v4628 = vshrl.u32 %v4484, 16
        %v4629 = vshrl.u32 %v4485, 16
        %v4630 = vshrl.u32 %v4486, 16
        %v4631 = vshrl.u32 %v4487, 16
        %v4632 = vshrl.u32 %v4488, 16
        %v4633 = vshrl.u32 %v4489, 16
        %v4634 = vshrl.u32 %v4490, 16
        %v4635 = vshrl.u32 %v4491, 16
        %v4636 = vshrl.u32 %v4492, 16
        %v4637 = vshrl.u32 %v4493, 16
        %v4638 = vshrl.u32 %v4494, 16
        %v4639 = vshrl.u32 %v4495, 16
        %v4640 = vshrl.u32 %v4496, 16
        %v4641 = vshrl.u32 %v4497, 16
        %v4642 = vshrl.u32 %v4498, 16
        %v4643 = vshrl.u32 %v4499, 16
        %v4644 = vshrl.u32 %v4500, 16
        %v4645 = vshrl.u32 %v4501, 16
        %v4646 = vshrl.u32 %v4502, 16
        %v4647 = vshrl.u32 %v4503, 16
        %v4648 = vshrl.u32 %v4504, 16
        %v4649 = vxor.u32 %v4361, %v4505
        %v4650 = vxor.u32 %v4362, %v4506
        %v4651 = vxor.u32 %v4363, %v4507
        %v4652 = vxor.u32 %v4364, %v4508
        %v4653 = vxor.u32 %v4365, %v4509
        %v4654 = vxor.u32 %v4366, %v4510
        %v4655 = vxor.u32 %v4367, %v4511
        %v4656 = vxor.u32 %v4368, %v4512
        %v4657 = vxor.u32 %v4369, %v4513
        %v4658 = vxor.u32 %v4370, %v4514
        %v4659 = vxor.u32 %v4371, %v4515
        %v4660 = vxor.u32 %v4372, %v4516
        %v4661 = vxor.u32 %v4373, %v4517
        %v4662 = vxor.u32 %v4374, %v4518
        %v4663 = vxor.u32 %v4375, %v4519
        %v4664 = vxor.u32 %v4376, %v4520
        %v4665 = vxor.u32 %v4377, %v4521
        %v4666 = vxor.u32 %v4378, %v4522
        %v4667 = vxor.u32 %v4379, %v4523
        %v4668 = vxor.u32 %v4380, %v4524
        %v4669 = vxor.u32 %v4381, %v4525
        %v4670 = vxor.u32 %v4382, %v4526
        %v4671 = vxor.u32 %v4383, %v4527
        %v4672 = vxor.u32 %v4384, %v4528
        %v4673 = vxor.u32 %v4385, %v4529
        %v4674 = vxor.u32 %v4386, %v4530
        %v4675 = vxor.u32 %v4387, %v4531
        %v4676 = vxor.u32 %v4388, %v4532
        %v4677 = vxor.u32 %v4389, %v4533
        %v4678 = vxor.u32 %v4390, %v4534
        %v4679 = vxor.u32 %v4391, %v4535
        %v4680 = vxor.u32 %v4392, %v4536
        %v4681 = vxor.u32 %v4393, %v4537
        %v4682 = vxor.u32 %v4394, %v4538
        %v4683 = vxor.u32 %v4395, %v4539
        %v4684 = vxor.u32 %v4396, %v4540
        %v4685 = vxor.u32 %v4397, %v4541
        %v4686 = vxor.u32 %v4398, %v4542
        %v4687 = vxor.u32 %v4399, %v4543
        %v4688 = vxor.u32 %v4400, %v4544
        %v4689 = vxor.u32 %v4401, %v4545
        %v4690 = vxor.u32 %v4402, %v4546
        %v4691 = vxor.u32 %v4403, %v4547
        %v4692 = vxor.u32 %v4404, %v4548
        %v4693 = vxor.u32 %v4405, %v4549
        %v4694 = vxor.u32 %v4406, %v4550
        %v4695 = vxor.u32 %v4407, %v4551
        %v4696 = vxor.u32 %v4408, %v4552
        %v4697 = vxor.u32 %v4409, %v4553
        %v4698 = vxor.u32 %v4410, %v4554
        %v4699 = vxor.u32 %v4411, %v4555
        %v4700 = vxor.u32 %v4412, %v4556
        %v4701 = vxor.u32 %v4413, %v4557
        %v4702 = vxor.u32 %v4414, %v4558
        %v4703 = vxor.u32 %v4415, %v4559
        %v4704 = vxor.u32 %v4416, %v4560
        %v4705 = vxor.u32 %v4417, %v4561
        %v4706 = vxor.u32 %v4418, %v4562
        %v4707 = vxor.u32 %v4419, %v4563
        %v4708 = vxor.u32 %v4420, %v4564
        %v4709 = vxor.u32 %v4421, %v4565
        %v4710 = vxor.u32 %v4422, %v4566
        %v4711 = vxor.u32 %v4423, %v4567
        %v4712 = vxor.u32 %v4424, %v4568
        %v4713 = vxor.u32 %v4425, %v4569
        %v4714 = vxor.u32 %v4426, %v4570
        %v4715 = vxor.u32 %v4427, %v4571
        %v4716 = vxor.u32 %v4428, %v4572
        %v4717 = vxor.u32 %v4429, %v4573
        %v4718 = vxor.u32 %v4430, %v4574
        %v4719 = vxor.u32 %v4431, %v4575
        %v4720 = vxor.u32 %v4432, %v4576
        %v4721 = vxor.u32 %v4433, %v4577
        %v4722 = vxor.u32 %v4434, %v4578
        %v4723 = vxor.u32 %v4435, %v4579
        %v4724 = vxor.u32 %v4436, %v4580
        %v4725 = vxor.u32 %v4437, %v4581
        %v4726 = vxor.u32 %v4438, %v4582
        %v4727 = vxor.u32 %v4439, %v4583
        %v4728 = vxor.u32 %v4440, %v4584
        %v4729 = vxor.u32 %v4441, %v4585
        %v4730 = vxor.u32 %v4442, %v4586
        %v4731 = vxor.u32 %v4443, %v4587
        %v4732 = vxor.u32 %v4444, %v4588
        %v4733 = vxor.u32 %v4445, %v4589
        %v4734 = vxor.u32 %v4446, %v4590
        %v4735 = vxor.u32 %v4447, %v4591
        %v4736 = vxor.u32 %v4448, %v4592
        %v4737 = vxor.u32 %v4449, %v4593
        %v4738 = vxor.u32 %v4450, %v4594
        %v4739 = vxor.u32 %v4451, %v4595
        %v4740 = vxor.u32 %v4452, %v4596
        %v4741 = vxor.u32 %v4453, %v4597
        %v4742 = vxor.u32 %v4454, %v4598
        %v4743 = vxor.u32 %v4455, %v4599
        %v4744 = vxor.u32 %v4456, %v4600
        %v4745 = vxor.u32 %v4457, %v4601
        %v4746 = vxor.u32 %v4458, %v4602
        %v4747 = vxor.u32 %v4459, %v4603
        %v4748 = vxor.u32 %v4460, %v4604
        %v4749 = vxor.u32 %v4461, %v4605
        %v4750 = vxor.u32 %v4462, %v4606
        %v4751 = vxor.u32 %v4463, %v4607
        %v4752 = vxor.u32 %v4464, %v4608
        %v4753 = vxor.u32 %v4465, %v4609
        %v4754 = vxor.u32 %v4466, %v4610
        %v4755 = vxor.u32 %v4467, %v4611
        %v4756 = vxor.u32 %v4468, %v4612
        %v4757 = vxor.u32 %v4469, %v4613
        %v4758 = vxor.u32 %v4470, %v4614
        %v4759 = vxor.u32 %v4471, %v4615
        %v4760 = vxor.u32 %v4472, %v4616
        %v4761 = vxor.u32 %v4473, %v4617
        %v4762 = vxor.u32 %v4474, %v4618
        %v4763 = vxor.u32 %v4475, %v4619
        %v4764 = vxor.u32 %v4476, %v4620
        %v4765 = vxor.u32 %v4477, %v4621
        %v4766 = vxor.u32 %v4478, %v4622
        %v4767 = vxor.u32 %v4479, %v4623
        %v4768 = vxor.u32 %v4480, %v4624
        %v4769 = vxor.u32 %v4481, %v4625
        %v4770 = vxor.u32 %v4482, %v4626
        %v4771 = vxor.u32 %v4483, %v4627
        %v4772 = vxor.u32 %v4484, %v4628
        %v4773 = vxor.u32 %v4485, %v4629
        %v4774 = vxor.u32 %v4486, %v4630
        %v4775 = vxor.u32 %v4487, %v4631
        %v4776 = vxor.u32 %v4488, %v4632
        %v4777 = vxor.u32 %v4489, %v4633
        %v4778 = vxor.u32 %v4490, %v4634
        %v4779 = vxor.u32 %v4491, %v4635
        %v4780 = vxor.u32 %v4492, %v4636
        %v4781 = vxor.u32 %v4493, %v4637
        %v4782 = vxor.u32 %v4494, %v4638
        %v4783 = vxor.u32 %v4495, %v4639
        %v4784 = vxor.u32 %v4496, %v4640
        %v4785 = vxor.u32 %v4497, %v4641
        %v4786 = vxor.u32 %v4498, %v4642
        %v4787 = vxor.u32 %v4499, %v4643
        %v4788 = vxor.u32 %v4500, %v4644
        %v4789 = vxor.u32 %v4501, %v4645
        %v4790 = vxor.u32 %v4502, %v4646
        %v4791 = vxor.u32 %v4503, %v4647
        %v4792 = vxor.u32 %v4504, %v4648
        %vm4793 = vcmp.ge.u32.totalorder %v4649, 429496730
        %vm4794 = vcmp.ge.u32.totalorder %v4650, 429496730
        %vm4795 = vcmp.ge.u32.totalorder %v4651, 429496730
        %vm4796 = vcmp.ge.u32.totalorder %v4652, 429496730
        %vm4797 = vcmp.ge.u32.totalorder %v4653, 429496730
        %vm4798 = vcmp.ge.u32.totalorder %v4654, 429496730
        %vm4799 = vcmp.ge.u32.totalorder %v4655, 429496730
        %vm4800 = vcmp.ge.u32.totalorder %v4656, 429496730
        %vm4801 = vcmp.ge.u32.totalorder %v4657, 429496730
        %vm4802 = vcmp.ge.u32.totalorder %v4658, 429496730
        %vm4803 = vcmp.ge.u32.totalorder %v4659, 429496730
        %vm4804 = vcmp.ge.u32.totalorder %v4660, 429496730
        %vm4805 = vcmp.ge.u32.totalorder %v4661, 429496730
        %vm4806 = vcmp.ge.u32.totalorder %v4662, 429496730
        %vm4807 = vcmp.ge.u32.totalorder %v4663, 429496730
        %vm4808 = vcmp.ge.u32.totalorder %v4664, 429496730
        %vm4809 = vcmp.ge.u32.totalorder %v4665, 429496730
        %vm4810 = vcmp.ge.u32.totalorder %v4666, 429496730
        %vm4811 = vcmp.ge.u32.totalorder %v4667, 429496730
        %vm4812 = vcmp.ge.u32.totalorder %v4668, 429496730
        %vm4813 = vcmp.ge.u32.totalorder %v4669, 429496730
        %vm4814 = vcmp.ge.u32.totalorder %v4670, 429496730
        %vm4815 = vcmp.ge.u32.totalorder %v4671, 429496730
        %vm4816 = vcmp.ge.u32.totalorder %v4672, 429496730
        %vm4817 = vcmp.ge.u32.totalorder %v4673, 429496730
        %vm4818 = vcmp.ge.u32.totalorder %v4674, 429496730
        %vm4819 = vcmp.ge.u32.totalorder %v4675, 429496730
        %vm4820 = vcmp.ge.u32.totalorder %v4676, 429496730
        %vm4821 = vcmp.ge.u32.totalorder %v4677, 429496730
        %vm4822 = vcmp.ge.u32.totalorder %v4678, 429496730
        %vm4823 = vcmp.ge.u32.totalorder %v4679, 429496730
        %vm4824 = vcmp.ge.u32.totalorder %v4680, 429496730
        %vm4825 = vcmp.ge.u32.totalorder %v4681, 429496730
        %vm4826 = vcmp.ge.u32.totalorder %v4682, 429496730
        %vm4827 = vcmp.ge.u32.totalorder %v4683, 429496730
        %vm4828 = vcmp.ge.u32.totalorder %v4684, 429496730
        %vm4829 = vcmp.ge.u32.totalorder %v4685, 429496730
        %vm4830 = vcmp.ge.u32.totalorder %v4686, 429496730
        %vm4831 = vcmp.ge.u32.totalorder %v4687, 429496730
        %vm4832 = vcmp.ge.u32.totalorder %v4688, 429496730
        %vm4833 = vcmp.ge.u32.totalorder %v4689, 429496730
        %vm4834 = vcmp.ge.u32.totalorder %v4690, 429496730
        %vm4835 = vcmp.ge.u32.totalorder %v4691, 429496730
        %vm4836 = vcmp.ge.u32.totalorder %v4692, 429496730
        %vm4837 = vcmp.ge.u32.totalorder %v4693, 429496730
        %vm4838 = vcmp.ge.u32.totalorder %v4694, 429496730
        %vm4839 = vcmp.ge.u32.totalorder %v4695, 429496730
        %vm4840 = vcmp.ge.u32.totalorder %v4696, 429496730
        %vm4841 = vcmp.ge.u32.totalorder %v4697, 429496730
        %vm4842 = vcmp.ge.u32.totalorder %v4698, 429496730
        %vm4843 = vcmp.ge.u32.totalorder %v4699, 429496730
        %vm4844 = vcmp.ge.u32.totalorder %v4700, 429496730
        %vm4845 = vcmp.ge.u32.totalorder %v4701, 429496730
        %vm4846 = vcmp.ge.u32.totalorder %v4702, 429496730
        %vm4847 = vcmp.ge.u32.totalorder %v4703, 429496730
        %vm4848 = vcmp.ge.u32.totalorder %v4704, 429496730
        %vm4849 = vcmp.ge.u32.totalorder %v4705, 429496730
        %vm4850 = vcmp.ge.u32.totalorder %v4706, 429496730
        %vm4851 = vcmp.ge.u32.totalorder %v4707, 429496730
        %vm4852 = vcmp.ge.u32.totalorder %v4708, 429496730
        %vm4853 = vcmp.ge.u32.totalorder %v4709, 429496730
        %vm4854 = vcmp.ge.u32.totalorder %v4710, 429496730
        %vm4855 = vcmp.ge.u32.totalorder %v4711, 429496730
        %vm4856 = vcmp.ge.u32.totalorder %v4712, 429496730
        %vm4857 = vcmp.ge.u32.totalorder %v4713, 429496730
        %vm4858 = vcmp.ge.u32.totalorder %v4714, 429496730
        %vm4859 = vcmp.ge.u32.totalorder %v4715, 429496730
        %vm4860 = vcmp.ge.u32.totalorder %v4716, 429496730
        %vm4861 = vcmp.ge.u32.totalorder %v4717, 429496730
        %vm4862 = vcmp.ge.u32.totalorder %v4718, 429496730
        %vm4863 = vcmp.ge.u32.totalorder %v4719, 429496730
        %vm4864 = vcmp.ge.u32.totalorder %v4720, 429496730
        %vm4865 = vcmp.ge.u32.totalorder %v4721, 429496730
        %vm4866 = vcmp.ge.u32.totalorder %v4722, 429496730
        %vm4867 = vcmp.ge.u32.totalorder %v4723, 429496730
        %vm4868 = vcmp.ge.u32.totalorder %v4724, 429496730
        %vm4869 = vcmp.ge.u32.totalorder %v4725, 429496730
        %vm4870 = vcmp.ge.u32.totalorder %v4726, 429496730
        %vm4871 = vcmp.ge.u32.totalorder %v4727, 429496730
        %vm4872 = vcmp.ge.u32.totalorder %v4728, 429496730
        %vm4873 = vcmp.ge.u32.totalorder %v4729, 429496730
        %vm4874 = vcmp.ge.u32.totalorder %v4730, 429496730
        %vm4875 = vcmp.ge.u32.totalorder %v4731, 429496730
        %vm4876 = vcmp.ge.u32.totalorder %v4732, 429496730
        %vm4877 = vcmp.ge.u32.totalorder %v4733, 429496730
        %vm4878 = vcmp.ge.u32.totalorder %v4734, 429496730
        %vm4879 = vcmp.ge.u32.totalorder %v4735, 429496730
        %vm4880 = vcmp.ge.u32.totalorder %v4736, 429496730
        %vm4881 = vcmp.ge.u32.totalorder %v4737, 429496730
        %vm4882 = vcmp.ge.u32.totalorder %v4738, 429496730
        %vm4883 = vcmp.ge.u32.totalorder %v4739, 429496730
        %vm4884 = vcmp.ge.u32.totalorder %v4740, 429496730
        %vm4885 = vcmp.ge.u32.totalorder %v4741, 429496730
        %vm4886 = vcmp.ge.u32.totalorder %v4742, 429496730
        %vm4887 = vcmp.ge.u32.totalorder %v4743, 429496730
        %vm4888 = vcmp.ge.u32.totalorder %v4744, 429496730
        %vm4889 = vcmp.ge.u32.totalorder %v4745, 429496730
        %vm4890 = vcmp.ge.u32.totalorder %v4746, 429496730
        %vm4891 = vcmp.ge.u32.totalorder %v4747, 429496730
        %vm4892 = vcmp.ge.u32.totalorder %v4748, 429496730
        %vm4893 = vcmp.ge.u32.totalorder %v4749, 429496730
        %vm4894 = vcmp.ge.u32.totalorder %v4750, 429496730
        %vm4895 = vcmp.ge.u32.totalorder %v4751, 429496730
        %vm4896 = vcmp.ge.u32.totalorder %v4752, 429496730
        %vm4897 = vcmp.ge.u32.totalorder %v4753, 429496730
        %vm4898 = vcmp.ge.u32.totalorder %v4754, 429496730
        %vm4899 = vcmp.ge.u32.totalorder %v4755, 429496730
        %vm4900 = vcmp.ge.u32.totalorder %v4756, 429496730
        %vm4901 = vcmp.ge.u32.totalorder %v4757, 429496730
        %vm4902 = vcmp.ge.u32.totalorder %v4758, 429496730
        %vm4903 = vcmp.ge.u32.totalorder %v4759, 429496730
        %vm4904 = vcmp.ge.u32.totalorder %v4760, 429496730
        %vm4905 = vcmp.ge.u32.totalorder %v4761, 429496730
        %vm4906 = vcmp.ge.u32.totalorder %v4762, 429496730
        %vm4907 = vcmp.ge.u32.totalorder %v4763, 429496730
        %vm4908 = vcmp.ge.u32.totalorder %v4764, 429496730
        %vm4909 = vcmp.ge.u32.totalorder %v4765, 429496730
        %vm4910 = vcmp.ge.u32.totalorder %v4766, 429496730
        %vm4911 = vcmp.ge.u32.totalorder %v4767, 429496730
        %vm4912 = vcmp.ge.u32.totalorder %v4768, 429496730
        %vm4913 = vcmp.ge.u32.totalorder %v4769, 429496730
        %vm4914 = vcmp.ge.u32.totalorder %v4770, 429496730
        %vm4915 = vcmp.ge.u32.totalorder %v4771, 429496730
        %vm4916 = vcmp.ge.u32.totalorder %v4772, 429496730
        %vm4917 = vcmp.ge.u32.totalorder %v4773, 429496730
        %vm4918 = vcmp.ge.u32.totalorder %v4774, 429496730
        %vm4919 = vcmp.ge.u32.totalorder %v4775, 429496730
        %vm4920 = vcmp.ge.u32.totalorder %v4776, 429496730
        %vm4921 = vcmp.ge.u32.totalorder %v4777, 429496730
        %vm4922 = vcmp.ge.u32.totalorder %v4778, 429496730
        %vm4923 = vcmp.ge.u32.totalorder %v4779, 429496730
        %vm4924 = vcmp.ge.u32.totalorder %v4780, 429496730
        %vm4925 = vcmp.ge.u32.totalorder %v4781, 429496730
        %vm4926 = vcmp.ge.u32.totalorder %v4782, 429496730
        %vm4927 = vcmp.ge.u32.totalorder %v4783, 429496730
        %vm4928 = vcmp.ge.u32.totalorder %v4784, 429496730
        %vm4929 = vcmp.ge.u32.totalorder %v4785, 429496730
        %vm4930 = vcmp.ge.u32.totalorder %v4786, 429496730
        %vm4931 = vcmp.ge.u32.totalorder %v4787, 429496730
        %vm4932 = vcmp.ge.u32.totalorder %v4788, 429496730
        %vm4933 = vcmp.ge.u32.totalorder %v4789, 429496730
        %vm4934 = vcmp.ge.u32.totalorder %v4790, 429496730
        %vm4935 = vcmp.ge.u32.totalorder %v4791, 429496730
        %vm4936 = vcmp.ge.u32.totalorder %v4792, 429496730
        %v4937 = vmul.f32 %v2235, 1.1111112
        %v4938 = vmul.f32 %v2237, 1.1111112
        %v4939 = vmul.f32 %v2958, 1.1111112
        %v4940 = vmul.f32 %v2239, 1.1111112
        %v4941 = vmul.f32 %v2241, 1.1111112
        %v4942 = vmul.f32 %v2961, 1.1111112
        %v4943 = vmul.f32 %v2245, 1.1111112
        %v4944 = vmul.f32 %v2247, 1.1111112
        %v4945 = vmul.f32 %v2966, 1.1111112
        %v4946 = vmul.f32 %v2249, 1.1111112
        %v4947 = vmul.f32 %v2251, 1.1111112
        %v4948 = vmul.f32 %v2969, 1.1111112
        %v4949 = vmul.f32 %v2255, 1.1111112
        %v4950 = vmul.f32 %v2257, 1.1111112
        %v4951 = vmul.f32 %v2974, 1.1111112
        %v4952 = vmul.f32 %v2259, 1.1111112
        %v4953 = vmul.f32 %v2261, 1.1111112
        %v4954 = vmul.f32 %v2977, 1.1111112
        %v4955 = vmul.f32 %v2265, 1.1111112
        %v4956 = vmul.f32 %v2267, 1.1111112
        %v4957 = vmul.f32 %v2982, 1.1111112
        %v4958 = vmul.f32 %v2269, 1.1111112
        %v4959 = vmul.f32 %v2271, 1.1111112
        %v4960 = vmul.f32 %v2985, 1.1111112
        %v4961 = vmul.f32 %v2275, 1.1111112
        %v4962 = vmul.f32 %v2277, 1.1111112
        %v4963 = vmul.f32 %v2990, 1.1111112
        %v4964 = vmul.f32 %v2279, 1.1111112
        %v4965 = vmul.f32 %v2281, 1.1111112
        %v4966 = vmul.f32 %v2993, 1.1111112
        %v4967 = vmul.f32 %v2285, 1.1111112
        %v4968 = vmul.f32 %v2287, 1.1111112
        %v4969 = vmul.f32 %v2998, 1.1111112
        %v4970 = vmul.f32 %v2289, 1.1111112
        %v4971 = vmul.f32 %v2291, 1.1111112
        %v4972 = vmul.f32 %v3001, 1.1111112
        %v4973 = vmul.f32 %v2295, 1.1111112
        %v4974 = vmul.f32 %v2297, 1.1111112
        %v4975 = vmul.f32 %v3006, 1.1111112
        %v4976 = vmul.f32 %v2299, 1.1111112
        %v4977 = vmul.f32 %v2301, 1.1111112
        %v4978 = vmul.f32 %v3009, 1.1111112
        %v4979 = vmul.f32 %v2305, 1.1111112
        %v4980 = vmul.f32 %v2307, 1.1111112
        %v4981 = vmul.f32 %v3014, 1.1111112
        %v4982 = vmul.f32 %v2309, 1.1111112
        %v4983 = vmul.f32 %v2311, 1.1111112
        %v4984 = vmul.f32 %v3017, 1.1111112
        %v4985 = vmul.f32 %v2315, 1.1111112
        %v4986 = vmul.f32 %v2317, 1.1111112
        %v4987 = vmul.f32 %v3022, 1.1111112
        %v4988 = vmul.f32 %v2319, 1.1111112
        %v4989 = vmul.f32 %v2321, 1.1111112
        %v4990 = vmul.f32 %v3025, 1.1111112
        %v4991 = vmul.f32 %v2325, 1.1111112
        %v4992 = vmul.f32 %v2327, 1.1111112
        %v4993 = vmul.f32 %v3030, 1.1111112
        %v4994 = vmul.f32 %v2329, 1.1111112
        %v4995 = vmul.f32 %v2331, 1.1111112
        %v4996 = vmul.f32 %v3033, 1.1111112
        %v4997 = vmul.f32 %v2335, 1.1111112
        %v4998 = vmul.f32 %v2337, 1.1111112
        %v4999 = vmul.f32 %v3038, 1.1111112
        %v5000 = vmul.f32 %v2339, 1.1111112
        %v5001 = vmul.f32 %v2341, 1.1111112
        %v5002 = vmul.f32 %v3041, 1.1111112
        %v5003 = vmul.f32 %v2345, 1.1111112
        %v5004 = vmul.f32 %v2347, 1.1111112
        %v5005 = vmul.f32 %v3046, 1.1111112
        %v5006 = vmul.f32 %v2349, 1.1111112
        %v5007 = vmul.f32 %v2351, 1.1111112
        %v5008 = vmul.f32 %v3049, 1.1111112
        %v5009 = vmul.f32 %v2355, 1.1111112
        %v5010 = vmul.f32 %v2357, 1.1111112
        %v5011 = vmul.f32 %v3054, 1.1111112
        %v5012 = vmul.f32 %v2359, 1.1111112
        %v5013 = vmul.f32 %v2361, 1.1111112
        %v5014 = vmul.f32 %v3057, 1.1111112
        %v5015 = vmul.f32 %v2365, 1.1111112
        %v5016 = vmul.f32 %v2367, 1.1111112
        %v5017 = vmul.f32 %v3062, 1.1111112
        %v5018 = vmul.f32 %v2369, 1.1111112
        %v5019 = vmul.f32 %v2371, 1.1111112
        %v5020 = vmul.f32 %v3065, 1.1111112
        %v5021 = vmul.f32 %v2375, 1.1111112
        %v5022 = vmul.f32 %v2377, 1.1111112
        %v5023 = vmul.f32 %v3070, 1.1111112
        %v5024 = vmul.f32 %v2379, 1.1111112
        %v5025 = vmul.f32 %v2381, 1.1111112
        %v5026 = vmul.f32 %v3073, 1.1111112
        %v5027 = vmul.f32 %v2385, 1.1111112
        %v5028 = vmul.f32 %v2387, 1.1111112
        %v5029 = vmul.f32 %v3078, 1.1111112
        %v5030 = vmul.f32 %v2389, 1.1111112
        %v5031 = vmul.f32 %v2391, 1.1111112
        %v5032 = vmul.f32 %v3081, 1.1111112
        %v5033 = vmul.f32 %v2395, 1.1111112
        %v5034 = vmul.f32 %v2397, 1.1111112
        %v5035 = vmul.f32 %v3086, 1.1111112
        %v5036 = vmul.f32 %v2399, 1.1111112
        %v5037 = vmul.f32 %v2401, 1.1111112
        %v5038 = vmul.f32 %v3089, 1.1111112
        %v5039 = vmul.f32 %v2405, 1.1111112
        %v5040 = vmul.f32 %v2407, 1.1111112
        %v5041 = vmul.f32 %v3094, 1.1111112
        %v5042 = vmul.f32 %v2409, 1.1111112
        %v5043 = vmul.f32 %v2411, 1.1111112
        %v5044 = vmul.f32 %v3097, 1.1111112
        %v5045 = vmul.f32 %v2415, 1.1111112
        %v5046 = vmul.f32 %v2417, 1.1111112
        %v5047 = vmul.f32 %v3102, 1.1111112
        %v5048 = vmul.f32 %v2419, 1.1111112
        %v5049 = vmul.f32 %v2421, 1.1111112
        %v5050 = vmul.f32 %v3105, 1.1111112
        %v5051 = vmul.f32 %v2425, 1.1111112
        %v5052 = vmul.f32 %v2427, 1.1111112
        %v5053 = vmul.f32 %v3110, 1.1111112
        %v5054 = vmul.f32 %v2429, 1.1111112
        %v5055 = vmul.f32 %v2431, 1.1111112
        %v5056 = vmul.f32 %v3113, 1.1111112
        %v5057 = vmul.f32 %v2435, 1.1111112
        %v5058 = vmul.f32 %v2437, 1.1111112
        %v5059 = vmul.f32 %v3118, 1.1111112
        %v5060 = vmul.f32 %v2439, 1.1111112
        %v5061 = vmul.f32 %v2441, 1.1111112
        %v5062 = vmul.f32 %v3121, 1.1111112
        %v5063 = vmul.f32 %v2445, 1.1111112
        %v5064 = vmul.f32 %v2447, 1.1111112
        %v5065 = vmul.f32 %v3126, 1.1111112
        %v5066 = vmul.f32 %v2449, 1.1111112
        %v5067 = vmul.f32 %v2451, 1.1111112
        %v5068 = vmul.f32 %v3129, 1.1111112
        %v5069 = vmul.f32 %v2455, 1.1111112
        %v5070 = vmul.f32 %v2457, 1.1111112
        %v5071 = vmul.f32 %v3134, 1.1111112
        %v5072 = vmul.f32 %v2459, 1.1111112
        %v5073 = vmul.f32 %v2461, 1.1111112
        %v5074 = vmul.f32 %v3137, 1.1111112
        %v5075 = vmul.f32 %v2465, 1.1111112
        %v5076 = vmul.f32 %v2467, 1.1111112
        %v5077 = vmul.f32 %v3142, 1.1111112
        %v5078 = vmul.f32 %v2469, 1.1111112
        %v5079 = vmul.f32 %v2471, 1.1111112
        %v5080 = vmul.f32 %v3145, 1.1111112
        %v5081 = vsel %vm4793, %v4937, 0.0
        %v5082 = vsel %vm4794, %v4938, 0.0
        %v5083 = vsel %vm4795, %v4939, 0.0
        %v5084 = vsel %vm4796, %v4940, 0.0
        %v5085 = vsel %vm4797, %v4941, 0.0
        %v5086 = vsel %vm4798, %v4942, 0.0
        %v5087 = vsel %vm4799, %v4943, 0.0
        %v5088 = vsel %vm4800, %v4944, 0.0
        %v5089 = vsel %vm4801, %v4945, 0.0
        %v5090 = vsel %vm4802, %v4946, 0.0
        %v5091 = vsel %vm4803, %v4947, 0.0
        %v5092 = vsel %vm4804, %v4948, 0.0
        %v5093 = vsel %vm4805, %v4949, 0.0
        %v5094 = vsel %vm4806, %v4950, 0.0
        %v5095 = vsel %vm4807, %v4951, 0.0
        %v5096 = vsel %vm4808, %v4952, 0.0
        %v5097 = vsel %vm4809, %v4953, 0.0
        %v5098 = vsel %vm4810, %v4954, 0.0
        %v5099 = vsel %vm4811, %v4955, 0.0
        %v5100 = vsel %vm4812, %v4956, 0.0
        %v5101 = vsel %vm4813, %v4957, 0.0
        %v5102 = vsel %vm4814, %v4958, 0.0
        %v5103 = vsel %vm4815, %v4959, 0.0
        %v5104 = vsel %vm4816, %v4960, 0.0
        %v5105 = vsel %vm4817, %v4961, 0.0
        %v5106 = vsel %vm4818, %v4962, 0.0
        %v5107 = vsel %vm4819, %v4963, 0.0
        %v5108 = vsel %vm4820, %v4964, 0.0
        %v5109 = vsel %vm4821, %v4965, 0.0
        %v5110 = vsel %vm4822, %v4966, 0.0
        %v5111 = vsel %vm4823, %v4967, 0.0
        %v5112 = vsel %vm4824, %v4968, 0.0
        %v5113 = vsel %vm4825, %v4969, 0.0
        %v5114 = vsel %vm4826, %v4970, 0.0
        %v5115 = vsel %vm4827, %v4971, 0.0
        %v5116 = vsel %vm4828, %v4972, 0.0
        %v5117 = vsel %vm4829, %v4973, 0.0
        %v5118 = vsel %vm4830, %v4974, 0.0
        %v5119 = vsel %vm4831, %v4975, 0.0
        %v5120 = vsel %vm4832, %v4976, 0.0
        %v5121 = vsel %vm4833, %v4977, 0.0
        %v5122 = vsel %vm4834, %v4978, 0.0
        %v5123 = vsel %vm4835, %v4979, 0.0
        %v5124 = vsel %vm4836, %v4980, 0.0
        %v5125 = vsel %vm4837, %v4981, 0.0
        %v5126 = vsel %vm4838, %v4982, 0.0
        %v5127 = vsel %vm4839, %v4983, 0.0
        %v5128 = vsel %vm4840, %v4984, 0.0
        %v5129 = vsel %vm4841, %v4985, 0.0
        %v5130 = vsel %vm4842, %v4986, 0.0
        %v5131 = vsel %vm4843, %v4987, 0.0
        %v5132 = vsel %vm4844, %v4988, 0.0
        %v5133 = vsel %vm4845, %v4989, 0.0
        %v5134 = vsel %vm4846, %v4990, 0.0
        %v5135 = vsel %vm4847, %v4991, 0.0
        %v5136 = vsel %vm4848, %v4992, 0.0
        %v5137 = vsel %vm4849, %v4993, 0.0
        %v5138 = vsel %vm4850, %v4994, 0.0
        %v5139 = vsel %vm4851, %v4995, 0.0
        %v5140 = vsel %vm4852, %v4996, 0.0
        %v5141 = vsel %vm4853, %v4997, 0.0
        %v5142 = vsel %vm4854, %v4998, 0.0
        %v5143 = vsel %vm4855, %v4999, 0.0
        %v5144 = vsel %vm4856, %v5000, 0.0
        %v5145 = vsel %vm4857, %v5001, 0.0
        %v5146 = vsel %vm4858, %v5002, 0.0
        %v5147 = vsel %vm4859, %v5003, 0.0
        %v5148 = vsel %vm4860, %v5004, 0.0
        %v5149 = vsel %vm4861, %v5005, 0.0
        %v5150 = vsel %vm4862, %v5006, 0.0
        %v5151 = vsel %vm4863, %v5007, 0.0
        %v5152 = vsel %vm4864, %v5008, 0.0
        %v5153 = vsel %vm4865, %v5009, 0.0
        %v5154 = vsel %vm4866, %v5010, 0.0
        %v5155 = vsel %vm4867, %v5011, 0.0
        %v5156 = vsel %vm4868, %v5012, 0.0
        %v5157 = vsel %vm4869, %v5013, 0.0
        %v5158 = vsel %vm4870, %v5014, 0.0
        %v5159 = vsel %vm4871, %v5015, 0.0
        %v5160 = vsel %vm4872, %v5016, 0.0
        %v5161 = vsel %vm4873, %v5017, 0.0
        %v5162 = vsel %vm4874, %v5018, 0.0
        %v5163 = vsel %vm4875, %v5019, 0.0
        %v5164 = vsel %vm4876, %v5020, 0.0
        %v5165 = vsel %vm4877, %v5021, 0.0
        %v5166 = vsel %vm4878, %v5022, 0.0
        %v5167 = vsel %vm4879, %v5023, 0.0
        %v5168 = vsel %vm4880, %v5024, 0.0
        %v5169 = vsel %vm4881, %v5025, 0.0
        %v5170 = vsel %vm4882, %v5026, 0.0
        %v5171 = vsel %vm4883, %v5027, 0.0
        %v5172 = vsel %vm4884, %v5028, 0.0
        %v5173 = vsel %vm4885, %v5029, 0.0
        %v5174 = vsel %vm4886, %v5030, 0.0
        %v5175 = vsel %vm4887, %v5031, 0.0
        %v5176 = vsel %vm4888, %v5032, 0.0
        %v5177 = vsel %vm4889, %v5033, 0.0
        %v5178 = vsel %vm4890, %v5034, 0.0
        %v5179 = vsel %vm4891, %v5035, 0.0
        %v5180 = vsel %vm4892, %v5036, 0.0
        %v5181 = vsel %vm4893, %v5037, 0.0
        %v5182 = vsel %vm4894, %v5038, 0.0
        %v5183 = vsel %vm4895, %v5039, 0.0
        %v5184 = vsel %vm4896, %v5040, 0.0
        %v5185 = vsel %vm4897, %v5041, 0.0
        %v5186 = vsel %vm4898, %v5042, 0.0
        %v5187 = vsel %vm4899, %v5043, 0.0
        %v5188 = vsel %vm4900, %v5044, 0.0
        %v5189 = vsel %vm4901, %v5045, 0.0
        %v5190 = vsel %vm4902, %v5046, 0.0
        %v5191 = vsel %vm4903, %v5047, 0.0
        %v5192 = vsel %vm4904, %v5048, 0.0
        %v5193 = vsel %vm4905, %v5049, 0.0
        %v5194 = vsel %vm4906, %v5050, 0.0
        %v5195 = vsel %vm4907, %v5051, 0.0
        %v5196 = vsel %vm4908, %v5052, 0.0
        %v5197 = vsel %vm4909, %v5053, 0.0
        %v5198 = vsel %vm4910, %v5054, 0.0
        %v5199 = vsel %vm4911, %v5055, 0.0
        %v5200 = vsel %vm4912, %v5056, 0.0
        %v5201 = vsel %vm4913, %v5057, 0.0
        %v5202 = vsel %vm4914, %v5058, 0.0
        %v5203 = vsel %vm4915, %v5059, 0.0
        %v5204 = vsel %vm4916, %v5060, 0.0
        %v5205 = vsel %vm4917, %v5061, 0.0
        %v5206 = vsel %vm4918, %v5062, 0.0
        %v5207 = vsel %vm4919, %v5063, 0.0
        %v5208 = vsel %vm4920, %v5064, 0.0
        %v5209 = vsel %vm4921, %v5065, 0.0
        %v5210 = vsel %vm4922, %v5066, 0.0
        %v5211 = vsel %vm4923, %v5067, 0.0
        %v5212 = vsel %vm4924, %v5068, 0.0
        %v5213 = vsel %vm4925, %v5069, 0.0
        %v5214 = vsel %vm4926, %v5070, 0.0
        %v5215 = vsel %vm4927, %v5071, 0.0
        %v5216 = vsel %vm4928, %v5072, 0.0
        %v5217 = vsel %vm4929, %v5073, 0.0
        %v5218 = vsel %vm4930, %v5074, 0.0
        %v5219 = vsel %vm4931, %v5075, 0.0
        %v5220 = vsel %vm4932, %v5076, 0.0
        %v5221 = vsel %vm4933, %v5077, 0.0
        %v5222 = vsel %vm4934, %v5078, 0.0
        %v5223 = vsel %vm4935, %v5079, 0.0
        %v5224 = vsel %vm4936, %v5080, 0.0
        %5225 = vst [vmem:[%s240] sm:$0xff] %v5081
        %5226 = vst [vmem:[%s240 + $0x8] sm:$0xff] %v5082
        %5227 = vst [vmem:[%s240 + $0x10] sm:$0xff] %v5083
        %5228 = vst [vmem:[%s240 + $0x18] sm:$0xff] %v5084
        %5229 = vst [vmem:[%s240 + $0x20] sm:$0xff] %v5085
        %5230 = vst [vmem:[%s240 + $0x28] sm:$0xff] %v5086
        %5231 = vst [vmem:[%s240 + $0x30] sm:$0xff] %v5087
        %5232 = vst [vmem:[%s240 + $0x38] sm:$0xff] %v5088
        %5233 = vst [vmem:[%s240 + $0x40] sm:$0xff] %v5089
        %5234 = vst [vmem:[%s240 + $0x48] sm:$0xff] %v5090
        %5235 = vst [vmem:[%s240 + $0x50] sm:$0xff] %v5091
        %5236 = vst [vmem:[%s240 + $0x58] sm:$0xff] %v5092
        %5237 = vst [vmem:[%s240 + $0x60] sm:$0xff] %v5093
        %5238 = vst [vmem:[%s240 + $0x68] sm:$0xff] %v5094
        %5239 = vst [vmem:[%s240 + $0x70] sm:$0xff] %v5095
        %5240 = vst [vmem:[%s240 + $0x78] sm:$0xff] %v5096
        %5241 = vst [vmem:[%s240 + $0x80] sm:$0xff] %v5097
        %5242 = vst [vmem:[%s240 + $0x88] sm:$0xff] %v5098
        %5243 = vst [vmem:[%s240 + $0x90] sm:$0xff] %v5099
        %5244 = vst [vmem:[%s240 + $0x98] sm:$0xff] %v5100
        %5245 = vst [vmem:[%s240 + $0xa0] sm:$0xff] %v5101
        %5246 = vst [vmem:[%s240 + $0xa8] sm:$0xff] %v5102
        %5247 = vst [vmem:[%s240 + $0xb0] sm:$0xff] %v5103
        %5248 = vst [vmem:[%s240 + $0xb8] sm:$0xff] %v5104
        %5249 = vst [vmem:[%s240 + $0xc0] sm:$0xff] %v5105
        %5250 = vst [vmem:[%s240 + $0xc8] sm:$0xff] %v5106
        %5251 = vst [vmem:[%s240 + $0xd0] sm:$0xff] %v5107
        %5252 = vst [vmem:[%s240 + $0xd8] sm:$0xff] %v5108
        %5253 = vst [vmem:[%s240 + $0xe0] sm:$0xff] %v5109
        %5254 = vst [vmem:[%s240 + $0xe8] sm:$0xff] %v5110
        %5255 = vst [vmem:[%s240 + $0xf0] sm:$0xff] %v5111
        %5256 = vst [vmem:[%s240 + $0xf8] sm:$0xff] %v5112
        %5257 = vst [vmem:[%s240 + $0x100] sm:$0xff] %v5113
        %5258 = vst [vmem:[%s240 + $0x108] sm:$0xff] %v5114
        %5259 = vst [vmem:[%s240 + $0x110] sm:$0xff] %v5115
        %5260 = vst [vmem:[%s240 + $0x118] sm:$0xff] %v5116
        %5261 = vst [vmem:[%s240 + $0x120] sm:$0xff] %v5117
        %5262 = vst [vmem:[%s240 + $0x128] sm:$0xff] %v5118
        %5263 = vst [vmem:[%s240 + $0x130] sm:$0xff] %v5119
        %5264 = vst [vmem:[%s240 + $0x138] sm:$0xff] %v5120
        %5265 = vst [vmem:[%s240 + $0x140] sm:$0xff] %v5121
        %5266 = vst [vmem:[%s240 + $0x148] sm:$0xff] %v5122
        %5267 = vst [vmem:[%s240 + $0x150] sm:$0xff] %v5123
        %5268 = vst [vmem:[%s240 + $0x158] sm:$0xff] %v5124
        %5269 = vst [vmem:[%s240 + $0x160] sm:$0xff] %v5125
        %5270 = vst [vmem:[%s240 + $0x168] sm:$0xff] %v5126
        %5271 = vst [vmem:[%s240 + $0x170] sm:$0xff] %v5127
        %5272 = vst [vmem:[%s240 + $0x178] sm:$0xff] %v5128
        %5273 = vst [vmem:[%s240 + $0x180] sm:$0xff] %v5129
        %5274 = vst [vmem:[%s240 + $0x188] sm:$0xff] %v5130
        %5275 = vst [vmem:[%s240 + $0x190] sm:$0xff] %v5131
        %5276 = vst [vmem:[%s240 + $0x198] sm:$0xff] %v5132
        %5277 = vst [vmem:[%s240 + $0x1a0] sm:$0xff] %v5133
        %5278 = vst [vmem:[%s240 + $0x1a8] sm:$0xff] %v5134
        %5279 = vst [vmem:[%s240 + $0x1b0] sm:$0xff] %v5135
        %5280 = vst [vmem:[%s240 + $0x1b8] sm:$0xff] %v5136
        %5281 = vst [vmem:[%s240 + $0x1c0] sm:$0xff] %v5137
        %5282 = vst [vmem:[%s240 + $0x1c8] sm:$0xff] %v5138
        %5283 = vst [vmem:[%s240 + $0x1d0] sm:$0xff] %v5139
        %5284 = vst [vmem:[%s240 + $0x1d8] sm:$0xff] %v5140
        %5285 = vst [vmem:[%s240 + $0x1e0] sm:$0xff] %v5141
        %5286 = vst [vmem:[%s240 + $0x1e8] sm:$0xff] %v5142
        %5287 = vst [vmem:[%s240 + $0x1f0] sm:$0xff] %v5143
        %5288 = vst [vmem:[%s240 + $0x1f8] sm:$0xff] %v5144
        %5289 = vst [vmem:[%s240 + $0x200] sm:$0xff] %v5145
        %5290 = vst [vmem:[%s240 + $0x208] sm:$0xff] %v5146
        %5291 = vst [vmem:[%s240 + $0x210] sm:$0xff] %v5147
        %5292 = vst [vmem:[%s240 + $0x218] sm:$0xff] %v5148
        %5293 = vst [vmem:[%s240 + $0x220] sm:$0xff] %v5149
        %5294 = vst [vmem:[%s240 + $0x228] sm:$0xff] %v5150
        %5295 = vst [vmem:[%s240 + $0x230] sm:$0xff] %v5151
        %5296 = vst [vmem:[%s240 + $0x238] sm:$0xff] %v5152
        %5297 = vst [vmem:[%s240 + $0x240] sm:$0xff] %v5153
        %5298 = vst [vmem:[%s240 + $0x248] sm:$0xff] %v5154
        %5299 = vst [vmem:[%s240 + $0x250] sm:$0xff] %v5155
        %5300 = vst [vmem:[%s240 + $0x258] sm:$0xff] %v5156
        %5301 = vst [vmem:[%s240 + $0x260] sm:$0xff] %v5157
        %5302 = vst [vmem:[%s240 + $0x268] sm:$0xff] %v5158
        %5303 = vst [vmem:[%s240 + $0x270] sm:$0xff] %v5159
        %5304 = vst [vmem:[%s240 + $0x278] sm:$0xff] %v5160
        %5305 = vst [vmem:[%s240 + $0x280] sm:$0xff] %v5161
        %5306 = vst [vmem:[%s240 + $0x288] sm:$0xff] %v5162
        %5307 = vst [vmem:[%s240 + $0x290] sm:$0xff] %v5163
        %5308 = vst [vmem:[%s240 + $0x298] sm:$0xff] %v5164
        %5309 = vst [vmem:[%s240 + $0x2a0] sm:$0xff] %v5165
        %5310 = vst [vmem:[%s240 + $0x2a8] sm:$0xff] %v5166
        %5311 = vst [vmem:[%s240 + $0x2b0] sm:$0xff] %v5167
        %5312 = vst [vmem:[%s240 + $0x2b8] sm:$0xff] %v5168
        %5313 = vst [vmem:[%s240 + $0x2c0] sm:$0xff] %v5169
        %5314 = vst [vmem:[%s240 + $0x2c8] sm:$0xff] %v5170
        %5315 = vst [vmem:[%s240 + $0x2d0] sm:$0xff] %v5171
        %5316 = vst [vmem:[%s240 + $0x2d8] sm:$0xff] %v5172
        %5317 = vst [vmem:[%s240 + $0x2e0] sm:$0xff] %v5173
        %5318 = vst [vmem:[%s240 + $0x2e8] sm:$0xff] %v5174
        %5319 = vst [vmem:[%s240 + $0x2f0] sm:$0xff] %v5175
        %5320 = vst [vmem:[%s240 + $0x2f8] sm:$0xff] %v5176
        %5321 = vst [vmem:[%s240 + $0x300] sm:$0xff] %v5177
        %5322 = vst [vmem:[%s240 + $0x308] sm:$0xff] %v5178
        %5323 = vst [vmem:[%s240 + $0x310] sm:$0xff] %v5179
        %5324 = vst [vmem:[%s240 + $0x318] sm:$0xff] %v5180
        %5325 = vst [vmem:[%s240 + $0x320] sm:$0xff] %v5181
        %5326 = vst [vmem:[%s240 + $0x328] sm:$0xff] %v5182
        %5327 = vst [vmem:[%s240 + $0x330] sm:$0xff] %v5183
        %5328 = vst [vmem:[%s240 + $0x338] sm:$0xff] %v5184
        %5329 = vst [vmem:[%s240 + $0x340] sm:$0xff] %v5185
        %5330 = vst [vmem:[%s240 + $0x348] sm:$0xff] %v5186
        %5331 = vst [vmem:[%s240 + $0x350] sm:$0xff] %v5187
        %5332 = vst [vmem:[%s240 + $0x358] sm:$0xff] %v5188
        %5333 = vst [vmem:[%s240 + $0x360] sm:$0xff] %v5189
        %5334 = vst [vmem:[%s240 + $0x368] sm:$0xff] %v5190
        %5335 = vst [vmem:[%s240 + $0x370] sm:$0xff] %v5191
        %5336 = vst [vmem:[%s240 + $0x378] sm:$0xff] %v5192
        %5337 = vst [vmem:[%s240 + $0x380] sm:$0xff] %v5193
        %5338 = vst [vmem:[%s240 + $0x388] sm:$0xff] %v5194
        %5339 = vst [vmem:[%s240 + $0x390] sm:$0xff] %v5195
        %5340 = vst [vmem:[%s240 + $0x398] sm:$0xff] %v5196
        %5341 = vst [vmem:[%s240 + $0x3a0] sm:$0xff] %v5197
        %5342 = vst [vmem:[%s240 + $0x3a8] sm:$0xff] %v5198
        %5343 = vst [vmem:[%s240 + $0x3b0] sm:$0xff] %v5199
        %5344 = vst [vmem:[%s240 + $0x3b8] sm:$0xff] %v5200
        %5345 = vst [vmem:[%s240 + $0x3c0] sm:$0xff] %v5201
        %5346 = vst [vmem:[%s240 + $0x3c8] sm:$0xff] %v5202
        %5347 = vst [vmem:[%s240 + $0x3d0] sm:$0xff] %v5203
        %5348 = vst [vmem:[%s240 + $0x3d8] sm:$0xff] %v5204
        %5349 = vst [vmem:[%s240 + $0x3e0] sm:$0xff] %v5205
        %5350 = vst [vmem:[%s240 + $0x3e8] sm:$0xff] %v5206
        %5351 = vst [vmem:[%s240 + $0x3f0] sm:$0xff] %v5207
        %5352 = vst [vmem:[%s240 + $0x3f8] sm:$0xff] %v5208
        %5353 = vst [vmem:[%s240 + $0x400] sm:$0xff] %v5209
        %5354 = vst [vmem:[%s240 + $0x408] sm:$0xff] %v5210
        %5355 = vst [vmem:[%s240 + $0x410] sm:$0xff] %v5211
        %5356 = vst [vmem:[%s240 + $0x418] sm:$0xff] %v5212
        %5357 = vst [vmem:[%s240 + $0x420] sm:$0xff] %v5213
        %5358 = vst [vmem:[%s240 + $0x428] sm:$0xff] %v5214
        %5359 = vst [vmem:[%s240 + $0x430] sm:$0xff] %v5215
        %5360 = vst [vmem:[%s240 + $0x438] sm:$0xff] %v5216
        %5361 = vst [vmem:[%s240 + $0x440] sm:$0xff] %v5217
        %5362 = vst [vmem:[%s240 + $0x448] sm:$0xff] %v5218
        %5363 = vst [vmem:[%s240 + $0x450] sm:$0xff] %v5219
        %5364 = vst [vmem:[%s240 + $0x458] sm:$0xff] %v5220
        %5365 = vst [vmem:[%s240 + $0x460] sm:$0xff] %v5221
        %5366 = vst [vmem:[%s240 + $0x468] sm:$0xff] %v5222
        %5367 = vst [vmem:[%s240 + $0x470] sm:$0xff] %v5223
        %5368 = vst [vmem:[%s240 + $0x478] sm:$0xff] %v5224
        %s5369 = sand.u32 %s104, 1
        %s5370 = scalar_lea.sflag [#allocation6], %s5369
        %s5371 = sand.u32 %s104, 1
        %s5372 = smul.addr %s5371, 1152
        %s5373 = scalar_lea.vmem [#allocation10], %s5372
        // Predicated region
        $region45: #{linear_dropout.1} parent=31 // pred_check
          %p5374 = pneg %p114
        $region46: #{linear_dropout.1} parent=31 // pred_check_branch
          %5376 = sbr.rel (%p5374) target = $region48
        $region47: #{linear_dropout.1} parent=31 // pred_region
          %s5377 = smul.u32 3, %s23
          %s5379 = ssub.s32 18432, 18432
          %5380 = vsyncadd %s5370, %s5379
          %s5381 = smul.addr %s5377, 128
          %s5382 = scalar_lea.hbm %s4, %s5381
          %s5383 = sshll.u32 %s5373, 4
          %s5384 = int_to_ptr.vmem [resolvable:$true] %s5383
          %5389 = dma.vmem_to_hbm [thread:$0]  %s5384, 18432, %s5382, %s5370, 384, 768, 24
        $region48: #{linear_dropout.1} parent=31 // pred_fallthru
          _
      $region32: #{linear_dropout.1} parent=5 // pred_fallthru
        _
      %p5390 = scmp.le.s32.totalorder 2, %s18
      // Predicated region
      $region49: #{linear_dropout.1} parent=5 // pred_check
        %p5391 = pneg %p5390
      $region50: #{linear_dropout.1} parent=5 // pred_check_branch
        %5393 = sbr.rel (%p5391) target = $region52
      $region51: #{linear_dropout.1} parent=5 // pred_region
        %s5394 = ssub.s32 %s18, 2
        // Predicated region
        $region53: #{linear_dropout.1} parent=51 // pred_check
          %p5395 = pneg %p120
        $region54: #{linear_dropout.1} parent=51 // pred_check_branch
          %5397 = sbr.rel (%p5395) target = $region56
        $region55: #{linear_dropout.1} parent=51 // pred_region
          %s5398 = sand.u32 %s105, 1
          %s5399 = scalar_lea.sflag [#allocation6], %s5398
          %s5400 = sand.u32 %s105, 1
          %s5401 = smul.addr %s5400, 1152
          %s5402 = scalar_lea.vmem [#allocation10], %s5401
          %5403 = dma.done %s5399, 18432
        $region56: #{linear_dropout.1} parent=51 // pred_fallthru
          _
      $region52: #{linear_dropout.1} parent=5 // pred_fallthru
        _
    $region6: #{linear_dropout.1} parent=1 // loop_footer
      %s22 = sadd.s32 1, %s18
    $region7: #{linear_dropout.1} parent=1 // loop_footer_branch
      %17 = sbr.rel target = $region3
    $region8: #{linear_dropout.1} parent=1 // loop_exit
      _
    %5404 = vsyncpa [#allocation5], 1
    %s5405 = scalar_lea.sflag [#allocation5], 1
    %5406 = vsyncpa %s5405, 1
    %5407 = vsyncpa [#allocation8], 1
    %s5408 = scalar_lea.sflag [#allocation8], 1
    %5409 = vsyncpa %s5408, 1
    %5410 = vsyncpa [#allocation6], 1
    %s5411 = scalar_lea.sflag [#allocation6], 1
    %5412 = vsyncpa %s5411, 1

</llo_original>
